<compile_context>
chip_gen: v6e
topology: v6e:2x2x1
jax: 0.10.0
libtpu: 0.0.40
codegen_flags: <defaults>
</compile_context>

<pallas_src>
import functools

import jax
import jax.numpy as jnp
from jax.experimental import pallas as pl
from jax.experimental.pallas import tpu as pltpu

GROUPS = 32
EPS = 1e-6


# ------------------------------ in-kernel helpers ------------------------------

def _gn_silu(xf, gamma, beta, agg, bcast, count):
    """GroupNorm (affine, biased var) + SiLU on a flattened (H*W, C) f32 tile."""
    s = jnp.sum(xf, axis=0, keepdims=True)                                   # (1, C)
    ss = jnp.sum(xf * xf, axis=0, keepdims=True)                             # (1, C)
    gs = jnp.dot(s, agg, preferred_element_type=jnp.float32)                 # (1, G)
    gss = jnp.dot(ss, agg, preferred_element_type=jnp.float32)               # (1, G)
    mean_g = gs / count
    var_g = jnp.maximum(gss / count - mean_g * mean_g, 0.0)                  # clamp >= 0
    inv_g = jax.lax.rsqrt(var_g + EPS)
    mean_c = jnp.dot(mean_g, bcast, preferred_element_type=jnp.float32)      # (1, C)
    inv_c = jnp.dot(inv_g, bcast, preferred_element_type=jnp.float32)        # (1, C)
    scale = inv_c * gamma
    shift = beta - mean_c * scale
    y = xf * scale + shift
    return y * jax.nn.sigmoid(y)                                             # SiLU


def _conv3x3(h, w_ref, b_ref, H, W):
    """SAME 3x3 conv of a flattened (H*W, Cin) f32 tile -> (H*W, Cout) f32.

    Vertical out-of-range taps read the in-VMEM zero-row padding; the horizontal
    wrap-around (w +/- 1 crossing a row boundary) is masked per tap.  The 9 taps are
    concatenated along channels so the conv is a single bf16 MXU matmul with K = 9*Cin.
    """
    HW, Cin = h.shape
    zpad = jnp.zeros((2 * W, Cin), jnp.float32)
    hp = jnp.concatenate([zpad, h, zpad], axis=0)                            # (H*W + 4W, Cin)
    col = jax.lax.broadcasted_iota(jnp.int32, (HW, 1), 0) % W                # output column
    taps = []
    for dh in range(3):
        for dw in range(3):
            start = 2 * W + (dh - 1) * W + (dw - 1)
            t = hp[start:start + HW, :]
            if dw == 0:                      # left neighbour invalid for w == 0
                t = jnp.where(col >= 1, t, 0.0)
            elif dw == 2:                    # right neighbour invalid for w == W-1
                t = jnp.where(col <= W - 2, t, 0.0)
            taps.append(t)
    slab = jnp.concatenate(taps, axis=1).astype(jnp.bfloat16)                # (H*W, 9*Cin)
    out = jnp.dot(slab, w_ref[...], preferred_element_type=jnp.float32)      # f32 accum
    return out + b_ref[...]


# --------------------------------- fused kernel ---------------------------------

def _resnet_kernel(*refs, H, W, proj):
    if proj:
        (x_ref, g1_ref, be1_ref, agg1_ref, bc1_ref, w1_ref, cb1_ref,
         g2_ref, be2_ref, agg2_ref, bc2_ref, w2_ref, cb2_ref,
         wres_ref, bres_ref, o_ref) = refs
    else:
        (x_ref, g1_ref, be1_ref, agg1_ref, bc1_ref, w1_ref, cb1_ref,
         g2_ref, be2_ref, agg2_ref, bc2_ref, w2_ref, cb2_ref, o_ref) = refs

    HW = H * W
    x = x_ref[0].astype(jnp.float32)                                         # (H*W, Cin)
    cin = x.shape[-1]

    h = _gn_silu(x, g1_ref[...], be1_ref[...], agg1_ref[...], bc1_ref[...],
                 jnp.float32(HW * (cin // GROUPS)))
    h = _conv3x3(h, w1_ref, cb1_ref, H, W)                                   # (H*W, Cout)
    cout = h.shape[-1]
    h = _gn_silu(h, g2_ref[...], be2_ref[...], agg2_ref[...], bc2_ref[...],
                 jnp.float32(HW * (cout // GROUPS)))
    out = _conv3x3(h, w2_ref, cb2_ref, H, W)                                 # (H*W, Cout)

    if proj:   # fused 1x1-conv residual path (uses the original x already in VMEM)
        res = jnp.dot(x.astype(jnp.bfloat16), wres_ref[...],
                      preferred_element_type=jnp.float32) + bres_ref[...]
    else:
        res = x
    o_ref[0] = (out + res).astype(o_ref.dtype)


# --------------------------------- host wrapper ---------------------------------

def _group_mats(c):
    cpg = c // GROUPS
    eye = jnp.eye(GROUPS, dtype=jnp.float32)
    agg = jnp.kron(eye, jnp.ones((cpg, 1), jnp.float32))    # (C, G): channel -> its group
    bcast = jnp.kron(eye, jnp.ones((1, cpg), jnp.float32))  # (G, C): group -> its channels
    return agg, bcast


def resnet_forward(x_nchw, params, dim_in, dim_out):
    N, C, H, W = x_nchw.shape
    assert C == dim_in
    HW = H * W
    proj = dim_in != dim_out

    # NCHW -> flattened NHWC: rows = H*W (sublanes), channels on the lane axis.
    x = jnp.transpose(x_nchw, (0, 2, 3, 1)).astype(jnp.float32).reshape(N, HW, dim_in)

    agg1, bc1 = _group_mats(dim_in)
    agg2, bc2 = _group_mats(dim_out)
    # HWIO (3,3,Cin,Cout) -> (9*Cin, Cout) matching the (dh, dw, cin) im2col order.
    w1 = params["w1"].reshape(9 * dim_in, dim_out).astype(jnp.bfloat16)
    w2 = params["w2"].reshape(9 * dim_out, dim_out).astype(jnp.bfloat16)

    args = [x,
            params["gn1_g"].reshape(1, dim_in), params["gn1_b"].reshape(1, dim_in),
            agg1, bc1, w1, params["b1"].reshape(1, dim_out),
            params["gn2_g"].reshape(1, dim_out), params["gn2_b"].reshape(1, dim_out),
            agg2, bc2, w2, params["b2"].reshape(1, dim_out)]
    if proj:
        args += [params["wres"].astype(jnp.bfloat16), params["bres"].reshape(1, dim_out)]

    def _shared_spec(a):
        shp = a.shape
        return pl.BlockSpec(shp, lambda n: (0,) * len(shp))

    in_specs = [pl.BlockSpec((1, HW, dim_in), lambda n: (n, 0, 0))]
    in_specs += [_shared_spec(a) for a in args[1:]]

    kern = functools.partial(_resnet_kernel, H=H, W=W, proj=proj)
    out = pl.pallas_call(
        kern,
        out_shape=jax.ShapeDtypeStruct((N, HW, dim_out), jnp.float32),
        grid=(N,),
        in_specs=in_specs,
        out_specs=pl.BlockSpec((1, HW, dim_out), lambda n: (n, 0, 0)),
        compiler_params=pltpu.CompilerParams(dimension_semantics=("parallel",)),
    )(*args)

    return jnp.transpose(out.reshape(N, H, W, dim_out), (0, 3, 1, 2))        # -> NCHW


# ------------------------------- params & reference ------------------------------

def resnet_init(key, dim_in, dim_out):
    ks = jax.random.split(key, 8)
    p = {
        "gn1_g": 1.0 + 0.1 * jax.random.normal(ks[0], (dim_in,), jnp.float32),
        "gn1_b": 0.1 * jax.random.normal(ks[1], (dim_in,), jnp.float32),
        "w1": 0.05 * jax.random.normal(ks[2], (3, 3, dim_in, dim_out), jnp.float32),
        "b1": 0.05 * jax.random.normal(ks[3], (dim_out,), jnp.float32),
        "gn2_g": 1.0 + 0.1 * jax.random.normal(ks[4], (dim_out,), jnp.float32),
        "gn2_b": 0.1 * jax.random.normal(ks[5], (dim_out,), jnp.float32),
        "w2": 0.05 * jax.random.normal(ks[6], (3, 3, dim_out, dim_out), jnp.float32),
        "b2": 0.05 * jax.random.normal(ks[7], (dim_out,), jnp.float32),
    }
    if dim_in != dim_out:
        kr = jax.random.split(ks[7], 2)
        p["wres"] = 0.05 * jax.random.normal(kr[0], (dim_in, dim_out), jnp.float32)
        p["bres"] = 0.05 * jax.random.normal(kr[1], (dim_out,), jnp.float32)
    return p


def _ref_gn_silu(x, gamma, beta):
    N, H, W, C = x.shape
    xr = x.reshape(N, H, W, GROUPS, C // GROUPS)
    mean = xr.mean(axis=(1, 2, 4), keepdims=True)
    var = xr.var(axis=(1, 2, 4), keepdims=True)
    y = ((xr - mean) / jnp.sqrt(var + EPS)).reshape(N, H, W, C) * gamma + beta
    return y * jax.nn.sigmoid(y)


def _ref_conv(x, w, b):
    # Same numeric recipe as the kernel: bf16 operands, f32 accumulation.
    y = jax.lax.conv_general_dilated(
        x.astype(jnp.bfloat16), w.astype(jnp.bfloat16), (1, 1), "SAME",
        dimension_numbers=("NHWC", "HWIO", "NHWC"),
        preferred_element_type=jnp.float32)
    return y + b


def resnet_reference(x_nchw, params, dim_in, dim_out):
    x = jnp.transpose(x_nchw, (0, 2, 3, 1)).astype(jnp.float32)
    h = _ref_gn_silu(x, params["gn1_g"], params["gn1_b"])
    h = _ref_conv(h, params["w1"], params["b1"])
    h = _ref_gn_silu(h, params["gn2_g"], params["gn2_b"])
    if dim_in != dim_out:
        res = _ref_conv(x, params["wres"].reshape(1, 1, dim_in, dim_out), params["bres"])
    else:
        res = x
    out = _ref_conv(h, params["w2"], params["b2"]) + res
    return jnp.transpose(out, (0, 3, 1, 2))


# -------------------------------------- main -------------------------------------

if __name__ == "__main__":
    dim_in, dim_out = 32, 64            # GroupNorm(32) requires channels % 32 == 0
    N, H, W = 2, 16, 16

    key = jax.random.PRNGKey(0)
    kx, kp = jax.random.split(key)
    x = jax.random.normal(kx, (N, dim_in, H, W), jnp.float32)       # NCHW like PyTorch
    params = resnet_init(kp, dim_in, dim_out)

    fwd = jax.jit(functools.partial(resnet_forward, dim_in=dim_in, dim_out=dim_out))
    ref_fn = jax.jit(functools.partial(resnet_reference, dim_in=dim_in, dim_out=dim_out))

    out = jax.block_until_ready(fwd(x, params))
    ref = jax.block_until_ready(ref_fn(x, params))

    assert out.shape == (N, dim_out, H, W), out.shape
    max_err = float(jnp.max(jnp.abs(out - ref)))
    assert jnp.allclose(out, ref, rtol=1e-2, atol=1e-2), max_err
    print("KERNEL_OK")
</pallas_src>

<mosaic_0001>
module attributes {stable_mosaic.version = 11 : i64} {
  func.func @_resnet_kernel(%arg0: i32, %arg1: memref<1x256x32xf32, #tpu.memory_space<vmem>>, %arg2: memref<1x32xf32, #tpu.memory_space<vmem>>, %arg3: memref<1x32xf32, #tpu.memory_space<vmem>>, %arg4: memref<32x32xf32, #tpu.memory_space<vmem>>, %arg5: memref<32x32xf32, #tpu.memory_space<vmem>>, %arg6: memref<288x64xbf16, #tpu.memory_space<vmem>>, %arg7: memref<1x64xf32, #tpu.memory_space<vmem>>, %arg8: memref<1x64xf32, #tpu.memory_space<vmem>>, %arg9: memref<1x64xf32, #tpu.memory_space<vmem>>, %arg10: memref<64x32xf32, #tpu.memory_space<vmem>>, %arg11: memref<32x64xf32, #tpu.memory_space<vmem>>, %arg12: memref<576x64xbf16, #tpu.memory_space<vmem>>, %arg13: memref<1x64xf32, #tpu.memory_space<vmem>>, %arg14: memref<32x64xbf16, #tpu.memory_space<vmem>>, %arg15: memref<1x64xf32, #tpu.memory_space<vmem>>, %arg16: memref<1x256x64xf32, #tpu.memory_space<vmem>>) attributes {dimension_semantics = [#tpu.dimension_semantics<parallel>], iteration_bounds = array<i64: 2>, scalar_prefetch = 0 : i64, scratch_operands = 0 : i64, tpu.core_type = #tpu.core_type<tc>, window_params = [{transform_indices = @transform_0, window_bounds = array<i64: 1, 256, 32>}, {pipeline_mode = #tpu.pipeline_mode<synchronous>, transform_indices = @transform_1, window_bounds = array<i64: 1, 32>}, {pipeline_mode = #tpu.pipeline_mode<synchronous>, transform_indices = @transform_2, window_bounds = array<i64: 1, 32>}, {pipeline_mode = #tpu.pipeline_mode<synchronous>, transform_indices = @transform_3, window_bounds = array<i64: 32, 32>}, {pipeline_mode = #tpu.pipeline_mode<synchronous>, transform_indices = @transform_4, window_bounds = array<i64: 32, 32>}, {pipeline_mode = #tpu.pipeline_mode<synchronous>, transform_indices = @transform_5, window_bounds = array<i64: 288, 64>}, {pipeline_mode = #tpu.pipeline_mode<synchronous>, transform_indices = @transform_6, window_bounds = array<i64: 1, 64>}, {pipeline_mode = #tpu.pipeline_mode<synchronous>, transform_indices = @transform_7, window_bounds = array<i64: 1, 64>}, {pipeline_mode = #tpu.pipeline_mode<synchronous>, transform_indices = @transform_8, window_bounds = array<i64: 1, 64>}, {pipeline_mode = #tpu.pipeline_mode<synchronous>, transform_indices = @transform_9, window_bounds = array<i64: 64, 32>}, {pipeline_mode = #tpu.pipeline_mode<synchronous>, transform_indices = @transform_10, window_bounds = array<i64: 32, 64>}, {pipeline_mode = #tpu.pipeline_mode<synchronous>, transform_indices = @transform_11, window_bounds = array<i64: 576, 64>}, {pipeline_mode = #tpu.pipeline_mode<synchronous>, transform_indices = @transform_12, window_bounds = array<i64: 1, 64>}, {pipeline_mode = #tpu.pipeline_mode<synchronous>, transform_indices = @transform_13, window_bounds = array<i64: 32, 64>}, {pipeline_mode = #tpu.pipeline_mode<synchronous>, transform_indices = @transform_14, window_bounds = array<i64: 1, 64>}, {transform_indices = @transform_15, window_bounds = array<i64: 1, 256, 64>}]} {
    %c0 = arith.constant 0 : index
    %c0_0 = arith.constant 0 : index
    %c0_1 = arith.constant 0 : index
    %0 = vector.load %arg1[%c0, %c0_0, %c0_1] : memref<1x256x32xf32, #tpu.memory_space<vmem>>, vector<1x256x32xf32>
    %1 = vector.shape_cast %0 : vector<1x256x32xf32> to vector<256x32xf32>
    %c0_2 = arith.constant 0 : index
    %c0_3 = arith.constant 0 : index
    %2 = vector.load %arg2[%c0_2, %c0_3] : memref<1x32xf32, #tpu.memory_space<vmem>>, vector<1x32xf32>
    %c0_4 = arith.constant 0 : index
    %c0_5 = arith.constant 0 : index
    %3 = vector.load %arg3[%c0_4, %c0_5] : memref<1x32xf32, #tpu.memory_space<vmem>>, vector<1x32xf32>
    %c0_6 = arith.constant 0 : index
    %c0_7 = arith.constant 0 : index
    %4 = vector.load %arg4[%c0_6, %c0_7] : memref<32x32xf32, #tpu.memory_space<vmem>>, vector<32x32xf32>
    %c0_8 = arith.constant 0 : index
    %c0_9 = arith.constant 0 : index
    %5 = vector.load %arg5[%c0_8, %c0_9] : memref<32x32xf32, #tpu.memory_space<vmem>>, vector<32x32xf32>
    %cst = arith.constant dense<0.000000e+00> : vector<32xf32>
    %6 = vector.multi_reduction <add>, %1, %cst [0] : vector<256x32xf32> to vector<32xf32>
    %7 = vector.shape_cast %6 : vector<32xf32> to vector<1x32xf32>
    %8 = arith.mulf %1, %1 : vector<256x32xf32>
    %cst_10 = arith.constant dense<0.000000e+00> : vector<32xf32>
    %9 = vector.multi_reduction <add>, %8, %cst_10 [0] : vector<256x32xf32> to vector<32xf32>
    %10 = vector.shape_cast %9 : vector<32xf32> to vector<1x32xf32>
    %cst_11 = arith.constant dense<0.000000e+00> : vector<1x32xf32>
    %11 = tpu.matmul %7, %4, %cst_11 {dimension_numbers = #tpu.dot_dimension_numbers<[1], [0], [0], [1], [0, 0, 1, 1], [], []>} : vector<1x32xf32>, vector<32x32xf32>, vector<1x32xf32> -> vector<1x32xf32>
    %cst_12 = arith.constant dense<0.000000e+00> : vector<1x32xf32>
    %12 = tpu.matmul %10, %4, %cst_12 {dimension_numbers = #tpu.dot_dimension_numbers<[1], [0], [0], [1], [0, 0, 1, 1], [], []>} : vector<1x32xf32>, vector<32x32xf32>, vector<1x32xf32> -> vector<1x32xf32>
    %cst_13 = arith.constant 2.560000e+02 : f32
    %13 = vector.broadcast %cst_13 : f32 to vector<1x32xf32>
    %14 = arith.divf %11, %13 : vector<1x32xf32>
    %cst_14 = arith.constant 2.560000e+02 : f32
    %15 = vector.broadcast %cst_14 : f32 to vector<1x32xf32>
    %16 = arith.divf %12, %15 : vector<1x32xf32>
    %17 = arith.mulf %14, %14 : vector<1x32xf32>
    %18 = arith.subf %16, %17 : vector<1x32xf32>
    %cst_15 = arith.constant 0.000000e+00 : f32
    %19 = vector.broadcast %cst_15 : f32 to vector<1x32xf32>
    %20 = arith.maximumf %18, %19 : vector<1x32xf32>
    %cst_16 = arith.constant 9.99999997E-7 : f32
    %21 = vector.broadcast %cst_16 : f32 to vector<1x32xf32>
    %22 = arith.addf %20, %21 : vector<1x32xf32>
    %23 = math.rsqrt %22 : vector<1x32xf32>
    %cst_17 = arith.constant dense<0.000000e+00> : vector<1x32xf32>
    %24 = tpu.matmul %14, %5, %cst_17 {dimension_numbers = #tpu.dot_dimension_numbers<[1], [0], [0], [1], [0, 0, 1, 1], [], []>} : vector<1x32xf32>, vector<32x32xf32>, vector<1x32xf32> -> vector<1x32xf32>
    %cst_18 = arith.constant dense<0.000000e+00> : vector<1x32xf32>
    %25 = tpu.matmul %23, %5, %cst_18 {dimension_numbers = #tpu.dot_dimension_numbers<[1], [0], [0], [1], [0, 0, 1, 1], [], []>} : vector<1x32xf32>, vector<32x32xf32>, vector<1x32xf32> -> vector<1x32xf32>
    %26 = arith.mulf %25, %2 : vector<1x32xf32>
    %27 = arith.mulf %24, %26 : vector<1x32xf32>
    %28 = arith.subf %3, %27 : vector<1x32xf32>
    %29 = vector.broadcast %26 : vector<1x32xf32> to vector<256x32xf32>
    %30 = arith.mulf %1, %29 : vector<256x32xf32>
    %31 = vector.broadcast %28 : vector<1x32xf32> to vector<256x32xf32>
    %32 = arith.addf %30, %31 : vector<256x32xf32>
    %33 = arith.negf %32 : vector<256x32xf32>
    %34 = math.exp %33 : vector<256x32xf32>
    %cst_19 = arith.constant 1.000000e+00 : f32
    %35 = vector.broadcast %cst_19 : f32 to vector<256x32xf32>
    %36 = arith.addf %35, %34 : vector<256x32xf32>
    %37 = arith.divf %35, %36 : vector<256x32xf32>
    %38 = arith.mulf %32, %37 : vector<256x32xf32>
    %cst_20 = arith.constant 0.000000e+00 : f32
    %39 = vector.broadcast %cst_20 : f32 to vector<32x32xf32>
    %40 = tpu.concatenate %39, %38, %39 in 0 : vector<32x32xf32>, vector<256x32xf32>, vector<32x32xf32> -> vector<320x32xf32>
    %41 = tpu.iota {dimensions = array<i32: 0>} : vector<256x1xi32>
    %c16_i32 = arith.constant 16 : i32
    %c0_i32 = arith.constant 0 : i32
    %42 = arith.cmpi eq, %c16_i32, %c0_i32 : i32
    %c1_i32 = arith.constant 1 : i32
    %43 = arith.select %42, %c1_i32, %c16_i32 : i32
    %44 = vector.broadcast %43 : i32 to vector<256x1xi32>
    %45 = arith.remsi %41, %44 : vector<256x1xi32>
    %c0_i32_21 = arith.constant 0 : i32
    %46 = vector.broadcast %c0_i32_21 : i32 to vector<256x1xi32>
    %47 = arith.cmpi ne, %45, %46 : vector<256x1xi32>
    %c0_i32_22 = arith.constant 0 : i32
    %48 = vector.broadcast %c0_i32_22 : i32 to vector<256x1xi32>
    %49 = arith.cmpi slt, %45, %48 : vector<256x1xi32>
    %c0_i32_23 = arith.constant 0 : i32
    %50 = arith.cmpi slt, %43, %c0_i32_23 : i32
    %51 = vector.broadcast %50 : i1 to vector<256x1xi1>
    %52 = vector.broadcast %51 : vector<256x1xi1> to vector<256x1xi1>
    %53 = arith.xori %49, %52 : vector<256x1xi1>
    %54 = arith.andi %53, %47 : vector<256x1xi1>
    %55 = vector.broadcast %43 : i32 to vector<256x1xi32>
    %56 = arith.addi %45, %55 : vector<256x1xi32>
    %57 = arith.select %54, %56, %45 : vector<256x1xi1>, vector<256x1xi32>
    %58 = vector.extract_strided_slice %40 {offsets = [15, 0], sizes = [256, 32], strides = [1, 1]} : vector<320x32xf32> to vector<256x32xf32>
    %c1_i32_24 = arith.constant 1 : i32
    %59 = vector.broadcast %c1_i32_24 : i32 to vector<256x1xi32>
    %60 = arith.cmpi sge, %57, %59 : vector<256x1xi32>
    %cst_25 = arith.constant 0.000000e+00 : f32
    %61 = vector.shape_cast %60 : vector<256x1xi1> to vector<256x1xi1>
    %62 = vector.broadcast %61 : vector<256x1xi1> to vector<256x32xi1>
    %63 = vector.broadcast %cst_25 : f32 to vector<256x32xf32>
    %64 = arith.select %62, %58, %63 : vector<256x32xi1>, vector<256x32xf32>
    %65 = vector.extract_strided_slice %40 {offsets = [16, 0], sizes = [256, 32], strides = [1, 1]} : vector<320x32xf32> to vector<256x32xf32>
    %66 = vector.extract_strided_slice %40 {offsets = [17, 0], sizes = [256, 32], strides = [1, 1]} : vector<320x32xf32> to vector<256x32xf32>
    %c14_i32 = arith.constant 14 : i32
    %67 = vector.broadcast %c14_i32 : i32 to vector<256x1xi32>
    %68 = arith.cmpi sle, %57, %67 : vector<256x1xi32>
    %cst_26 = arith.constant 0.000000e+00 : f32
    %69 = vector.shape_cast %68 : vector<256x1xi1> to vector<256x1xi1>
    %70 = vector.broadcast %69 : vector<256x1xi1> to vector<256x32xi1>
    %71 = vector.broadcast %cst_26 : f32 to vector<256x32xf32>
    %72 = arith.select %70, %66, %71 : vector<256x32xi1>, vector<256x32xf32>
    %73 = vector.extract_strided_slice %40 {offsets = [31, 0], sizes = [256, 32], strides = [1, 1]} : vector<320x32xf32> to vector<256x32xf32>
    %c1_i32_27 = arith.constant 1 : i32
    %74 = vector.broadcast %c1_i32_27 : i32 to vector<256x1xi32>
    %75 = arith.cmpi sge, %57, %74 : vector<256x1xi32>
    %cst_28 = arith.constant 0.000000e+00 : f32
    %76 = vector.shape_cast %75 : vector<256x1xi1> to vector<256x1xi1>
    %77 = vector.broadcast %76 : vector<256x1xi1> to vector<256x32xi1>
    %78 = vector.broadcast %cst_28 : f32 to vector<256x32xf32>
    %79 = arith.select %77, %73, %78 : vector<256x32xi1>, vector<256x32xf32>
    %80 = vector.extract_strided_slice %40 {offsets = [32, 0], sizes = [256, 32], strides = [1, 1]} : vector<320x32xf32> to vector<256x32xf32>
    %81 = vector.extract_strided_slice %40 {offsets = [33, 0], sizes = [256, 32], strides = [1, 1]} : vector<320x32xf32> to vector<256x32xf32>
    %c14_i32_29 = arith.constant 14 : i32
    %82 = vector.broadcast %c14_i32_29 : i32 to vector<256x1xi32>
    %83 = arith.cmpi sle, %57, %82 : vector<256x1xi32>
    %cst_30 = arith.constant 0.000000e+00 : f32
    %84 = vector.shape_cast %83 : vector<256x1xi1> to vector<256x1xi1>
    %85 = vector.broadcast %84 : vector<256x1xi1> to vector<256x32xi1>
    %86 = vector.broadcast %cst_30 : f32 to vector<256x32xf32>
    %87 = arith.select %85, %81, %86 : vector<256x32xi1>, vector<256x32xf32>
    %88 = vector.extract_strided_slice %40 {offsets = [47, 0], sizes = [256, 32], strides = [1, 1]} : vector<320x32xf32> to vector<256x32xf32>
    %c1_i32_31 = arith.constant 1 : i32
    %89 = vector.broadcast %c1_i32_31 : i32 to vector<256x1xi32>
    %90 = arith.cmpi sge, %57, %89 : vector<256x1xi32>
    %cst_32 = arith.constant 0.000000e+00 : f32
    %91 = vector.shape_cast %90 : vector<256x1xi1> to vector<256x1xi1>
    %92 = vector.broadcast %91 : vector<256x1xi1> to vector<256x32xi1>
    %93 = vector.broadcast %cst_32 : f32 to vector<256x32xf32>
    %94 = arith.select %92, %88, %93 : vector<256x32xi1>, vector<256x32xf32>
    %95 = vector.extract_strided_slice %40 {offsets = [48, 0], sizes = [256, 32], strides = [1, 1]} : vector<320x32xf32> to vector<256x32xf32>
    %96 = vector.extract_strided_slice %40 {offsets = [49, 0], sizes = [256, 32], strides = [1, 1]} : vector<320x32xf32> to vector<256x32xf32>
    %c14_i32_33 = arith.constant 14 : i32
    %97 = vector.broadcast %c14_i32_33 : i32 to vector<256x1xi32>
    %98 = arith.cmpi sle, %57, %97 : vector<256x1xi32>
    %cst_34 = arith.constant 0.000000e+00 : f32
    %99 = vector.shape_cast %98 : vector<256x1xi1> to vector<256x1xi1>
    %100 = vector.broadcast %99 : vector<256x1xi1> to vector<256x32xi1>
    %101 = vector.broadcast %cst_34 : f32 to vector<256x32xf32>
    %102 = arith.select %100, %96, %101 : vector<256x32xi1>, vector<256x32xf32>
    %103 = tpu.concatenate %64, %65, %72, %79, %80, %87, %94, %95, %102 in 1 : vector<256x32xf32>, vector<256x32xf32>, vector<256x32xf32>, vector<256x32xf32>, vector<256x32xf32>, vector<256x32xf32>, vector<256x32xf32>, vector<256x32xf32>, vector<256x32xf32> -> vector<256x288xf32>
    %104 = arith.truncf %103 : vector<256x288xf32> to vector<256x288xbf16>
    %c0_35 = arith.constant 0 : index
    %c0_36 = arith.constant 0 : index
    %105 = vector.load %arg6[%c0_35, %c0_36] : memref<288x64xbf16, #tpu.memory_space<vmem>>, vector<288x64xbf16>
    %cst_37 = arith.constant dense<0.000000e+00> : vector<256x64xf32>
    %106 = tpu.matmul %104, %105, %cst_37 {dimension_numbers = #tpu.dot_dimension_numbers<[1], [0], [0], [1], [0, 0, 1, 1], [], []>} : vector<256x288xbf16>, vector<288x64xbf16>, vector<256x64xf32> -> vector<256x64xf32>
    %c0_38 = arith.constant 0 : index
    %c0_39 = arith.constant 0 : index
    %107 = vector.load %arg7[%c0_38, %c0_39] : memref<1x64xf32, #tpu.memory_space<vmem>>, vector<1x64xf32>
    %108 = vector.broadcast %107 : vector<1x64xf32> to vector<256x64xf32>
    %109 = arith.addf %106, %108 : vector<256x64xf32>
    %c0_40 = arith.constant 0 : index
    %c0_41 = arith.constant 0 : index
    %110 = vector.load %arg8[%c0_40, %c0_41] : memref<1x64xf32, #tpu.memory_space<vmem>>, vector<1x64xf32>
    %c0_42 = arith.constant 0 : index
    %c0_43 = arith.constant 0 : index
    %111 = vector.load %arg9[%c0_42, %c0_43] : memref<1x64xf32, #tpu.memory_space<vmem>>, vector<1x64xf32>
    %c0_44 = arith.constant 0 : index
    %c0_45 = arith.constant 0 : index
    %112 = vector.load %arg10[%c0_44, %c0_45] : memref<64x32xf32, #tpu.memory_space<vmem>>, vector<64x32xf32>
    %c0_46 = arith.constant 0 : index
    %c0_47 = arith.constant 0 : index
    %113 = vector.load %arg11[%c0_46, %c0_47] : memref<32x64xf32, #tpu.memory_space<vmem>>, vector<32x64xf32>
    %cst_48 = arith.constant dense<0.000000e+00> : vector<64xf32>
    %114 = vector.multi_reduction <add>, %109, %cst_48 [0] : vector<256x64xf32> to vector<64xf32>
    %115 = vector.shape_cast %114 : vector<64xf32> to vector<1x64xf32>
    %116 = arith.mulf %109, %109 : vector<256x64xf32>
    %cst_49 = arith.constant dense<0.000000e+00> : vector<64xf32>
    %117 = vector.multi_reduction <add>, %116, %cst_49 [0] : vector<256x64xf32> to vector<64xf32>
    %118 = vector.shape_cast %117 : vector<64xf32> to vector<1x64xf32>
    %cst_50 = arith.constant dense<0.000000e+00> : vector<1x32xf32>
    %119 = tpu.matmul %115, %112, %cst_50 {dimension_numbers = #tpu.dot_dimension_numbers<[1], [0], [0], [1], [0, 0, 1, 1], [], []>} : vector<1x64xf32>, vector<64x32xf32>, vector<1x32xf32> -> vector<1x32xf32>
    %cst_51 = arith.constant dense<0.000000e+00> : vector<1x32xf32>
    %120 = tpu.matmul %118, %112, %cst_51 {dimension_numbers = #tpu.dot_dimension_numbers<[1], [0], [0], [1], [0, 0, 1, 1], [], []>} : vector<1x64xf32>, vector<64x32xf32>, vector<1x32xf32> -> vector<1x32xf32>
    %cst_52 = arith.constant 5.120000e+02 : f32
    %121 = vector.broadcast %cst_52 : f32 to vector<1x32xf32>
    %122 = arith.divf %119, %121 : vector<1x32xf32>
    %cst_53 = arith.constant 5.120000e+02 : f32
    %123 = vector.broadcast %cst_53 : f32 to vector<1x32xf32>
    %124 = arith.divf %120, %123 : vector<1x32xf32>
    %125 = arith.mulf %122, %122 : vector<1x32xf32>
    %126 = arith.subf %124, %125 : vector<1x32xf32>
    %cst_54 = arith.constant 0.000000e+00 : f32
    %127 = vector.broadcast %cst_54 : f32 to vector<1x32xf32>
    %128 = arith.maximumf %126, %127 : vector<1x32xf32>
    %cst_55 = arith.constant 9.99999997E-7 : f32
    %129 = vector.broadcast %cst_55 : f32 to vector<1x32xf32>
    %130 = arith.addf %128, %129 : vector<1x32xf32>
    %131 = math.rsqrt %130 : vector<1x32xf32>
    %cst_56 = arith.constant dense<0.000000e+00> : vector<1x64xf32>
    %132 = tpu.matmul %122, %113, %cst_56 {dimension_numbers = #tpu.dot_dimension_numbers<[1], [0], [0], [1], [0, 0, 1, 1], [], []>} : vector<1x32xf32>, vector<32x64xf32>, vector<1x64xf32> -> vector<1x64xf32>
    %cst_57 = arith.constant dense<0.000000e+00> : vector<1x64xf32>
    %133 = tpu.matmul %131, %113, %cst_57 {dimension_numbers = #tpu.dot_dimension_numbers<[1], [0], [0], [1], [0, 0, 1, 1], [], []>} : vector<1x32xf32>, vector<32x64xf32>, vector<1x64xf32> -> vector<1x64xf32>
    %134 = arith.mulf %133, %110 : vector<1x64xf32>
    %135 = arith.mulf %132, %134 : vector<1x64xf32>
    %136 = arith.subf %111, %135 : vector<1x64xf32>
    %137 = vector.broadcast %134 : vector<1x64xf32> to vector<256x64xf32>
    %138 = arith.mulf %109, %137 : vector<256x64xf32>
    %139 = vector.broadcast %136 : vector<1x64xf32> to vector<256x64xf32>
    %140 = arith.addf %138, %139 : vector<256x64xf32>
    %141 = arith.negf %140 : vector<256x64xf32>
    %142 = math.exp %141 : vector<256x64xf32>
    %cst_58 = arith.constant 1.000000e+00 : f32
    %143 = vector.broadcast %cst_58 : f32 to vector<256x64xf32>
    %144 = arith.addf %143, %142 : vector<256x64xf32>
    %145 = arith.divf %143, %144 : vector<256x64xf32>
    %146 = arith.mulf %140, %145 : vector<256x64xf32>
    %cst_59 = arith.constant 0.000000e+00 : f32
    %147 = vector.broadcast %cst_59 : f32 to vector<32x64xf32>
    %148 = tpu.concatenate %147, %146, %147 in 0 : vector<32x64xf32>, vector<256x64xf32>, vector<32x64xf32> -> vector<320x64xf32>
    %149 = tpu.iota {dimensions = array<i32: 0>} : vector<256x1xi32>
    %c16_i32_60 = arith.constant 16 : i32
    %c0_i32_61 = arith.constant 0 : i32
    %150 = arith.cmpi eq, %c16_i32_60, %c0_i32_61 : i32
    %c1_i32_62 = arith.constant 1 : i32
    %151 = arith.select %150, %c1_i32_62, %c16_i32_60 : i32
    %152 = vector.broadcast %151 : i32 to vector<256x1xi32>
    %153 = arith.remsi %149, %152 : vector<256x1xi32>
    %c0_i32_63 = arith.constant 0 : i32
    %154 = vector.broadcast %c0_i32_63 : i32 to vector<256x1xi32>
    %155 = arith.cmpi ne, %153, %154 : vector<256x1xi32>
    %c0_i32_64 = arith.constant 0 : i32
    %156 = vector.broadcast %c0_i32_64 : i32 to vector<256x1xi32>
    %157 = arith.cmpi slt, %153, %156 : vector<256x1xi32>
    %c0_i32_65 = arith.constant 0 : i32
    %158 = arith.cmpi slt, %151, %c0_i32_65 : i32
    %159 = vector.broadcast %158 : i1 to vector<256x1xi1>
    %160 = vector.broadcast %159 : vector<256x1xi1> to vector<256x1xi1>
    %161 = arith.xori %157, %160 : vector<256x1xi1>
    %162 = arith.andi %161, %155 : vector<256x1xi1>
    %163 = vector.broadcast %151 : i32 to vector<256x1xi32>
    %164 = arith.addi %153, %163 : vector<256x1xi32>
    %165 = arith.select %162, %164, %153 : vector<256x1xi1>, vector<256x1xi32>
    %166 = vector.extract_strided_slice %148 {offsets = [15, 0], sizes = [256, 64], strides = [1, 1]} : vector<320x64xf32> to vector<256x64xf32>
    %c1_i32_66 = arith.constant 1 : i32
    %167 = vector.broadcast %c1_i32_66 : i32 to vector<256x1xi32>
    %168 = arith.cmpi sge, %165, %167 : vector<256x1xi32>
    %cst_67 = arith.constant 0.000000e+00 : f32
    %169 = vector.shape_cast %168 : vector<256x1xi1> to vector<256x1xi1>
    %170 = vector.broadcast %169 : vector<256x1xi1> to vector<256x64xi1>
    %171 = vector.broadcast %cst_67 : f32 to vector<256x64xf32>
    %172 = arith.select %170, %166, %171 : vector<256x64xi1>, vector<256x64xf32>
    %173 = vector.extract_strided_slice %148 {offsets = [16, 0], sizes = [256, 64], strides = [1, 1]} : vector<320x64xf32> to vector<256x64xf32>
    %174 = vector.extract_strided_slice %148 {offsets = [17, 0], sizes = [256, 64], strides = [1, 1]} : vector<320x64xf32> to vector<256x64xf32>
    %c14_i32_68 = arith.constant 14 : i32
    %175 = vector.broadcast %c14_i32_68 : i32 to vector<256x1xi32>
    %176 = arith.cmpi sle, %165, %175 : vector<256x1xi32>
    %cst_69 = arith.constant 0.000000e+00 : f32
    %177 = vector.shape_cast %176 : vector<256x1xi1> to vector<256x1xi1>
    %178 = vector.broadcast %177 : vector<256x1xi1> to vector<256x64xi1>
    %179 = vector.broadcast %cst_69 : f32 to vector<256x64xf32>
    %180 = arith.select %178, %174, %179 : vector<256x64xi1>, vector<256x64xf32>
    %181 = vector.extract_strided_slice %148 {offsets = [31, 0], sizes = [256, 64], strides = [1, 1]} : vector<320x64xf32> to vector<256x64xf32>
    %c1_i32_70 = arith.constant 1 : i32
    %182 = vector.broadcast %c1_i32_70 : i32 to vector<256x1xi32>
    %183 = arith.cmpi sge, %165, %182 : vector<256x1xi32>
    %cst_71 = arith.constant 0.000000e+00 : f32
    %184 = vector.shape_cast %183 : vector<256x1xi1> to vector<256x1xi1>
    %185 = vector.broadcast %184 : vector<256x1xi1> to vector<256x64xi1>
    %186 = vector.broadcast %cst_71 : f32 to vector<256x64xf32>
    %187 = arith.select %185, %181, %186 : vector<256x64xi1>, vector<256x64xf32>
    %188 = vector.extract_strided_slice %148 {offsets = [32, 0], sizes = [256, 64], strides = [1, 1]} : vector<320x64xf32> to vector<256x64xf32>
    %189 = vector.extract_strided_slice %148 {offsets = [33, 0], sizes = [256, 64], strides = [1, 1]} : vector<320x64xf32> to vector<256x64xf32>
    %c14_i32_72 = arith.constant 14 : i32
    %190 = vector.broadcast %c14_i32_72 : i32 to vector<256x1xi32>
    %191 = arith.cmpi sle, %165, %190 : vector<256x1xi32>
    %cst_73 = arith.constant 0.000000e+00 : f32
    %192 = vector.shape_cast %191 : vector<256x1xi1> to vector<256x1xi1>
    %193 = vector.broadcast %192 : vector<256x1xi1> to vector<256x64xi1>
    %194 = vector.broadcast %cst_73 : f32 to vector<256x64xf32>
    %195 = arith.select %193, %189, %194 : vector<256x64xi1>, vector<256x64xf32>
    %196 = vector.extract_strided_slice %148 {offsets = [47, 0], sizes = [256, 64], strides = [1, 1]} : vector<320x64xf32> to vector<256x64xf32>
    %c1_i32_74 = arith.constant 1 : i32
    %197 = vector.broadcast %c1_i32_74 : i32 to vector<256x1xi32>
    %198 = arith.cmpi sge, %165, %197 : vector<256x1xi32>
    %cst_75 = arith.constant 0.000000e+00 : f32
    %199 = vector.shape_cast %198 : vector<256x1xi1> to vector<256x1xi1>
    %200 = vector.broadcast %199 : vector<256x1xi1> to vector<256x64xi1>
    %201 = vector.broadcast %cst_75 : f32 to vector<256x64xf32>
    %202 = arith.select %200, %196, %201 : vector<256x64xi1>, vector<256x64xf32>
    %203 = vector.extract_strided_slice %148 {offsets = [48, 0], sizes = [256, 64], strides = [1, 1]} : vector<320x64xf32> to vector<256x64xf32>
    %204 = vector.extract_strided_slice %148 {offsets = [49, 0], sizes = [256, 64], strides = [1, 1]} : vector<320x64xf32> to vector<256x64xf32>
    %c14_i32_76 = arith.constant 14 : i32
    %205 = vector.broadcast %c14_i32_76 : i32 to vector<256x1xi32>
    %206 = arith.cmpi sle, %165, %205 : vector<256x1xi32>
    %cst_77 = arith.constant 0.000000e+00 : f32
    %207 = vector.shape_cast %206 : vector<256x1xi1> to vector<256x1xi1>
    %208 = vector.broadcast %207 : vector<256x1xi1> to vector<256x64xi1>
    %209 = vector.broadcast %cst_77 : f32 to vector<256x64xf32>
    %210 = arith.select %208, %204, %209 : vector<256x64xi1>, vector<256x64xf32>
    %211 = tpu.concatenate %172, %173, %180, %187, %188, %195, %202, %203, %210 in 1 : vector<256x64xf32>, vector<256x64xf32>, vector<256x64xf32>, vector<256x64xf32>, vector<256x64xf32>, vector<256x64xf32>, vector<256x64xf32>, vector<256x64xf32>, vector<256x64xf32> -> vector<256x576xf32>
    %212 = arith.truncf %211 : vector<256x576xf32> to vector<256x576xbf16>
    %c0_78 = arith.constant 0 : index
    %c0_79 = arith.constant 0 : index
    %213 = vector.load %arg12[%c0_78, %c0_79] : memref<576x64xbf16, #tpu.memory_space<vmem>>, vector<576x64xbf16>
    %cst_80 = arith.constant dense<0.000000e+00> : vector<256x64xf32>
    %214 = tpu.matmul %212, %213, %cst_80 {dimension_numbers = #tpu.dot_dimension_numbers<[1], [0], [0], [1], [0, 0, 1, 1], [], []>} : vector<256x576xbf16>, vector<576x64xbf16>, vector<256x64xf32> -> vector<256x64xf32>
    %c0_81 = arith.constant 0 : index
    %c0_82 = arith.constant 0 : index
    %215 = vector.load %arg13[%c0_81, %c0_82] : memref<1x64xf32, #tpu.memory_space<vmem>>, vector<1x64xf32>
    %216 = vector.broadcast %215 : vector<1x64xf32> to vector<256x64xf32>
    %217 = arith.addf %214, %216 : vector<256x64xf32>
    %218 = arith.truncf %1 : vector<256x32xf32> to vector<256x32xbf16>
    %c0_83 = arith.constant 0 : index
    %c0_84 = arith.constant 0 : index
    %219 = vector.load %arg14[%c0_83, %c0_84] : memref<32x64xbf16, #tpu.memory_space<vmem>>, vector<32x64xbf16>
    %cst_85 = arith.constant dense<0.000000e+00> : vector<256x64xf32>
    %220 = tpu.matmul %218, %219, %cst_85 {dimension_numbers = #tpu.dot_dimension_numbers<[1], [0], [0], [1], [0, 0, 1, 1], [], []>} : vector<256x32xbf16>, vector<32x64xbf16>, vector<256x64xf32> -> vector<256x64xf32>
    %c0_86 = arith.constant 0 : index
    %c0_87 = arith.constant 0 : index
    %221 = vector.load %arg15[%c0_86, %c0_87] : memref<1x64xf32, #tpu.memory_space<vmem>>, vector<1x64xf32>
    %222 = vector.broadcast %221 : vector<1x64xf32> to vector<256x64xf32>
    %223 = arith.addf %220, %222 : vector<256x64xf32>
    %224 = arith.addf %217, %223 : vector<256x64xf32>
    %c0_88 = arith.constant 0 : index
    %c0_89 = arith.constant 0 : index
    %c0_90 = arith.constant 0 : index
    %225 = vector.load %arg16[%c0_88, %c0_89, %c0_90] : memref<1x256x64xf32, #tpu.memory_space<vmem>>, vector<1x256x64xf32>
    %226 = vector.shape_cast %225 : vector<1x256x64xf32> to vector<256x64xf32>
    %227 = vector.shape_cast %224 : vector<256x64xf32> to vector<1x256x64xf32>
    tpu.vector_store %arg16[%c0_88, %c0_89, %c0_90], %227 {strides = array<i32>} : memref<1x256x64xf32, #tpu.memory_space<vmem>>, vector<1x256x64xf32>,
    return
  }
  func.func @transform_0(%arg0: i32) -> (i32, i32, i32) {
    %c0_i32 = arith.constant 0 : i32
    %c0_i32_0 = arith.constant 0 : i32
    %c0_i32_1 = arith.constant 0 : i32
    return %arg0, %c0_i32, %c0_i32_0 : i32, i32, i32
  }
  func.func @transform_1(%arg0: i32) -> (i32, i32) {
    %c0_i32 = arith.constant 0 : i32
    %c0_i32_0 = arith.constant 0 : i32
    %c0_i32_1 = arith.constant 0 : i32
    return %c0_i32, %c0_i32_0 : i32, i32
  }
  func.func @transform_2(%arg0: i32) -> (i32, i32) {
    %c0_i32 = arith.constant 0 : i32
    %c0_i32_0 = arith.constant 0 : i32
    %c0_i32_1 = arith.constant 0 : i32
    return %c0_i32, %c0_i32_0 : i32, i32
  }
  func.func @transform_3(%arg0: i32) -> (i32, i32) {
    %c0_i32 = arith.constant 0 : i32
    %c0_i32_0 = arith.constant 0 : i32
    %c0_i32_1 = arith.constant 0 : i32
    return %c0_i32, %c0_i32_0 : i32, i32
  }
  func.func @transform_4(%arg0: i32) -> (i32, i32) {
    %c0_i32 = arith.constant 0 : i32
    %c0_i32_0 = arith.constant 0 : i32
    %c0_i32_1 = arith.constant 0 : i32
    return %c0_i32, %c0_i32_0 : i32, i32
  }
  func.func @transform_5(%arg0: i32) -> (i32, i32) {
    %c0_i32 = arith.constant 0 : i32
    %c0_i32_0 = arith.constant 0 : i32
    %c0_i32_1 = arith.constant 0 : i32
    return %c0_i32, %c0_i32_0 : i32, i32
  }
  func.func @transform_6(%arg0: i32) -> (i32, i32) {
    %c0_i32 = arith.constant 0 : i32
    %c0_i32_0 = arith.constant 0 : i32
    %c0_i32_1 = arith.constant 0 : i32
    return %c0_i32, %c0_i32_0 : i32, i32
  }
  func.func @transform_7(%arg0: i32) -> (i32, i32) {
    %c0_i32 = arith.constant 0 : i32
    %c0_i32_0 = arith.constant 0 : i32
    %c0_i32_1 = arith.constant 0 : i32
    return %c0_i32, %c0_i32_0 : i32, i32
  }
  func.func @transform_8(%arg0: i32) -> (i32, i32) {
    %c0_i32 = arith.constant 0 : i32
    %c0_i32_0 = arith.constant 0 : i32
    %c0_i32_1 = arith.constant 0 : i32
    return %c0_i32, %c0_i32_0 : i32, i32
  }
  func.func @transform_9(%arg0: i32) -> (i32, i32) {
    %c0_i32 = arith.constant 0 : i32
    %c0_i32_0 = arith.constant 0 : i32
    %c0_i32_1 = arith.constant 0 : i32
    return %c0_i32, %c0_i32_0 : i32, i32
  }
  func.func @transform_10(%arg0: i32) -> (i32, i32) {
    %c0_i32 = arith.constant 0 : i32
    %c0_i32_0 = arith.constant 0 : i32
    %c0_i32_1 = arith.constant 0 : i32
    return %c0_i32, %c0_i32_0 : i32, i32
  }
  func.func @transform_11(%arg0: i32) -> (i32, i32) {
    %c0_i32 = arith.constant 0 : i32
    %c0_i32_0 = arith.constant 0 : i32
    %c0_i32_1 = arith.constant 0 : i32
    return %c0_i32, %c0_i32_0 : i32, i32
  }
  func.func @transform_12(%arg0: i32) -> (i32, i32) {
    %c0_i32 = arith.constant 0 : i32
    %c0_i32_0 = arith.constant 0 : i32
    %c0_i32_1 = arith.constant 0 : i32
    return %c0_i32, %c0_i32_0 : i32, i32
  }
  func.func @transform_13(%arg0: i32) -> (i32, i32) {
    %c0_i32 = arith.constant 0 : i32
    %c0_i32_0 = arith.constant 0 : i32
    %c0_i32_1 = arith.constant 0 : i32
    return %c0_i32, %c0_i32_0 : i32, i32
  }
  func.func @transform_14(%arg0: i32) -> (i32, i32) {
    %c0_i32 = arith.constant 0 : i32
    %c0_i32_0 = arith.constant 0 : i32
    %c0_i32_1 = arith.constant 0 : i32
    return %c0_i32, %c0_i32_0 : i32, i32
  }
  func.func @transform_15(%arg0: i32) -> (i32, i32, i32) {
    %c0_i32 = arith.constant 0 : i32
    %c0_i32_0 = arith.constant 0 : i32
    %c0_i32_1 = arith.constant 0 : i32
    return %arg0, %c0_i32, %c0_i32_0 : i32, i32, i32
  }
}

</mosaic_0001>

<llo_original>
// kernel: resnet_forward.1
$region0: #{resnet_forward.1}
  #allocation0 [shape = 'u32[]', space=smem, size = 0x4, offset = 0x4, fixed_abs, tag = 'smem constant byte address 0x4 - core index']
  #allocation1 [shape = 'u32[144,128]{1,0:T(1,128)}', space=vmem, size = 0x12000, scoped, tag = 'internal scratch']
  %s0 = inlined_call_operand.vmem [shape: f32[2,256,32], index: 0, kind: input, shape index: {}]
  %s1 = inlined_call_operand.vmem [shape: f32[1,32], index: 1, kind: input, shape index: {}]
  %s2 = inlined_call_operand.vmem [shape: f32[1,32], index: 2, kind: input, shape index: {}]
  %s3 = inlined_call_operand.vmem [shape: f32[32,32], index: 3, kind: input, shape index: {}, may-alias: {3,4}]
  %s4 = inlined_call_operand.vmem [shape: f32[32,32], index: 4, kind: input, shape index: {}, may-alias: {3,4}]
  %s5 = inlined_call_operand.vmem [shape: bf16[288,64], index: 5, kind: input, shape index: {}]
  %s6 = inlined_call_operand.vmem [shape: f32[1,64], index: 6, kind: input, shape index: {}]
  %s7 = inlined_call_operand.vmem [shape: f32[1,64], index: 7, kind: input, shape index: {}]
  %s8 = inlined_call_operand.vmem [shape: f32[1,64], index: 8, kind: input, shape index: {}]
  %s9 = inlined_call_operand.vmem [shape: f32[64,32], index: 9, kind: input, shape index: {}]
  %s10 = inlined_call_operand.vmem [shape: f32[32,64], index: 10, kind: input, shape index: {}]
  %s11 = inlined_call_operand.vmem [shape: bf16[576,64], index: 11, kind: input, shape index: {}]
  %s12 = inlined_call_operand.vmem [shape: f32[1,64], index: 12, kind: input, shape index: {}]
  %s13 = inlined_call_operand.vmem [shape: bf16[32,64], index: 13, kind: input, shape index: {}]
  %s14 = inlined_call_operand.vmem [shape: f32[1,64], index: 14, kind: input, shape index: {}]
  %s15 = inlined_call_operand.hbm [shape: f32[2,256,64], index: 15, kind: output, shape index: {}]
  %s16 = sld [smem:[#allocation0]]
  $region93: #{resnet_forward.1} parent=0
    _
  %s18 = ssub.s32 1, %s16
  %s19 = scalar_select 0, %s18, %s16
  $region1: #{resnet_forward.1} parent=0
    #allocation2 [shape = 'u8[262144]{0}', space=vmem, size = 0x40000, scoped, tag = 'output window, operand 0']
    #allocation3 [shape = 's32[2]{0}', space=sflag, size = 0x8, scoped, tag = 'scoped memory for resnet_forward.1']
    %20 = vsyncpa [#allocation3], 0
    %s21 = scalar_lea.sflag [#allocation3], 1
    %22 = vsyncpa %s21, 0
    loop: start=0, step=1, limit=4
    $region2: #{resnet_forward.1} parent=1 // loop_pre_header
      _
    $region3: #{resnet_forward.1} parent=1 // loop_header
      %s24 = sphi 0, %s28
      %p25 = scmp.ge.s32.totalorder %s24, 4
      %s34 = sphi 0, %s36
      %s37 = sphi 0, %s34
      %s38 = sphi 0, %s37
      %s54 = sphi 0, %s38
      %s58 = sphi 0, %s58
      %s60 = sphi 0, %s58
      %s61 = sphi 0, %s60
      %s75 = sphi 0, %s61
      %s79 = sphi 0, %s79
      %s81 = sphi 0, %s79
      %s82 = sphi 0, %s81
      %s96 = sphi 0, %s82
      %s100 = sphi 0, %s100
      %s102 = sphi 0, %s100
      %s103 = sphi 0, %s102
      %s117 = sphi 0, %s103
      %s121 = sphi 0, %s121
      %s123 = sphi 0, %s121
      %s124 = sphi 0, %s123
      %s138 = sphi 0, %s124
      %s142 = sphi 0, %s142
      %s144 = sphi 0, %s142
      %s145 = sphi 0, %s144
      %s159 = sphi 0, %s145
      %s163 = sphi 0, %s163
      %s165 = sphi 0, %s163
      %s166 = sphi 0, %s165
      %s180 = sphi 0, %s166
      %s184 = sphi 0, %s184
      %s186 = sphi 0, %s184
      %s187 = sphi 0, %s186
      %s201 = sphi 0, %s187
      %s205 = sphi 0, %s205
      %s207 = sphi 0, %s205
      %s208 = sphi 0, %s207
      %s222 = sphi 0, %s208
      %s226 = sphi 0, %s226
      %s228 = sphi 0, %s226
      %s229 = sphi 0, %s228
      %s243 = sphi 0, %s229
      %s247 = sphi 0, %s247
      %s249 = sphi 0, %s247
      %s250 = sphi 0, %s249
      %s264 = sphi 0, %s250
      %s268 = sphi 0, %s268
      %s270 = sphi 0, %s268
      %s271 = sphi 0, %s270
      %s285 = sphi 0, %s271
      %s289 = sphi 0, %s289
      %s291 = sphi 0, %s289
      %s292 = sphi 0, %s291
      %s306 = sphi 0, %s292
      %s310 = sphi 0, %s310
      %s312 = sphi 0, %s310
      %s313 = sphi 0, %s312
      %s327 = sphi 0, %s313
      %s331 = sphi 0, %s331
      %s333 = sphi 0, %s331
      %s334 = sphi 0, %s333
      %s348 = sphi 0, %s334
      %s354 = sphi 0, %s356
      %s357 = sphi 0, %s354
      %s358 = sphi 0, %s357
      %s374 = sphi 0, %s358
    $region4: #{resnet_forward.1} parent=1 // loop_header_branch
      %27 = sbr.rel (%p25) target = $region8
    $region5: #{resnet_forward.1} parent=1 // loop_body
      %s29 = ssub.s32 %s24, 1
      %s30 = ssub.s32 %s24, 2
      %s31 = sadd.s32 %s24, 1
      %s32 = ssub.s32 %s24, %s31
      %p33 = scmp.eq.s32.totalorder %s32, 0
      %s35 = sadd.s32 %s34, 1
      %s36 = scalar_select %p33, %s34, %s35
      %p39 = pneg %p33
      %p40 = scmp.eq.s32.totalorder %s24, 1
      %p41 = por %p39, %p40
      %p42 = scmp.ne.s32.totalorder %s34, %s37
      %p43 = scmp.eq.s32.totalorder %s24, 0
      %p44 = por %p42, %p43
      %p45 = scmp.ne.s32.totalorder %s34, %s37
      %p46 = scmp.eq.s32.totalorder %s29, 1
      %p47 = por %p45, %p46
      %p48 = scmp.ne.s32.totalorder %s37, %s38
      %p49 = scmp.eq.s32.totalorder %s29, 0
      %p50 = por %p48, %p49
      %p51 = scmp.ne.s32.totalorder %s37, %s38
      %p52 = scmp.eq.s32.totalorder %s30, 1
      %p53 = por %p51, %p52
      %p55 = scmp.ne.s32.totalorder %s38, %s54
      %p56 = scmp.eq.s32.totalorder %s30, 0
      %p57 = por %p55, %p56
      %s59 = sadd.s32 %s58, 1
      %p62 = scmp.eq.s32.totalorder %s24, 1
      %p63 = scmp.ne.s32.totalorder %s58, %s60
      %p64 = scmp.eq.s32.totalorder %s24, 0
      %p65 = por %p63, %p64
      %p66 = scmp.ne.s32.totalorder %s58, %s60
      %p67 = scmp.eq.s32.totalorder %s29, 1
      %p68 = por %p66, %p67
      %p69 = scmp.ne.s32.totalorder %s60, %s61
      %p70 = scmp.eq.s32.totalorder %s29, 0
      %p71 = por %p69, %p70
      %p72 = scmp.ne.s32.totalorder %s60, %s61
      %p73 = scmp.eq.s32.totalorder %s30, 1
      %p74 = por %p72, %p73
      %p76 = scmp.ne.s32.totalorder %s61, %s75
      %p77 = scmp.eq.s32.totalorder %s30, 0
      %p78 = por %p76, %p77
      %s80 = sadd.s32 %s79, 1
      %p83 = scmp.eq.s32.totalorder %s24, 1
      %p84 = scmp.ne.s32.totalorder %s79, %s81
      %p85 = scmp.eq.s32.totalorder %s24, 0
      %p86 = por %p84, %p85
      %p87 = scmp.ne.s32.totalorder %s79, %s81
      %p88 = scmp.eq.s32.totalorder %s29, 1
      %p89 = por %p87, %p88
      %p90 = scmp.ne.s32.totalorder %s81, %s82
      %p91 = scmp.eq.s32.totalorder %s29, 0
      %p92 = por %p90, %p91
      %p93 = scmp.ne.s32.totalorder %s81, %s82
      %p94 = scmp.eq.s32.totalorder %s30, 1
      %p95 = por %p93, %p94
      %p97 = scmp.ne.s32.totalorder %s82, %s96
      %p98 = scmp.eq.s32.totalorder %s30, 0
      %p99 = por %p97, %p98
      %s101 = sadd.s32 %s100, 1
      %p104 = scmp.eq.s32.totalorder %s24, 1
      %p105 = scmp.ne.s32.totalorder %s100, %s102
      %p106 = scmp.eq.s32.totalorder %s24, 0
      %p107 = por %p105, %p106
      %p108 = scmp.ne.s32.totalorder %s100, %s102
      %p109 = scmp.eq.s32.totalorder %s29, 1
      %p110 = por %p108, %p109
      %p111 = scmp.ne.s32.totalorder %s102, %s103
      %p112 = scmp.eq.s32.totalorder %s29, 0
      %p113 = por %p111, %p112
      %p114 = scmp.ne.s32.totalorder %s102, %s103
      %p115 = scmp.eq.s32.totalorder %s30, 1
      %p116 = por %p114, %p115
      %p118 = scmp.ne.s32.totalorder %s103, %s117
      %p119 = scmp.eq.s32.totalorder %s30, 0
      %p120 = por %p118, %p119
      %s122 = sadd.s32 %s121, 1
      %p125 = scmp.eq.s32.totalorder %s24, 1
      %p126 = scmp.ne.s32.totalorder %s121, %s123
      %p127 = scmp.eq.s32.totalorder %s24, 0
      %p128 = por %p126, %p127
      %p129 = scmp.ne.s32.totalorder %s121, %s123
      %p130 = scmp.eq.s32.totalorder %s29, 1
      %p131 = por %p129, %p130
      %p132 = scmp.ne.s32.totalorder %s123, %s124
      %p133 = scmp.eq.s32.totalorder %s29, 0
      %p134 = por %p132, %p133
      %p135 = scmp.ne.s32.totalorder %s123, %s124
      %p136 = scmp.eq.s32.totalorder %s30, 1
      %p137 = por %p135, %p136
      %p139 = scmp.ne.s32.totalorder %s124, %s138
      %p140 = scmp.eq.s32.totalorder %s30, 0
      %p141 = por %p139, %p140
      %s143 = sadd.s32 %s142, 1
      %p146 = scmp.eq.s32.totalorder %s24, 1
      %p147 = scmp.ne.s32.totalorder %s142, %s144
      %p148 = scmp.eq.s32.totalorder %s24, 0
      %p149 = por %p147, %p148
      %p150 = scmp.ne.s32.totalorder %s142, %s144
      %p151 = scmp.eq.s32.totalorder %s29, 1
      %p152 = por %p150, %p151
      %p153 = scmp.ne.s32.totalorder %s144, %s145
      %p154 = scmp.eq.s32.totalorder %s29, 0
      %p155 = por %p153, %p154
      %p156 = scmp.ne.s32.totalorder %s144, %s145
      %p157 = scmp.eq.s32.totalorder %s30, 1
      %p158 = por %p156, %p157
      %p160 = scmp.ne.s32.totalorder %s145, %s159
      %p161 = scmp.eq.s32.totalorder %s30, 0
      %p162 = por %p160, %p161
      %s164 = sadd.s32 %s163, 1
      %p167 = scmp.eq.s32.totalorder %s24, 1
      %p168 = scmp.ne.s32.totalorder %s163, %s165
      %p169 = scmp.eq.s32.totalorder %s24, 0
      %p170 = por %p168, %p169
      %p171 = scmp.ne.s32.totalorder %s163, %s165
      %p172 = scmp.eq.s32.totalorder %s29, 1
      %p173 = por %p171, %p172
      %p174 = scmp.ne.s32.totalorder %s165, %s166
      %p175 = scmp.eq.s32.totalorder %s29, 0
      %p176 = por %p174, %p175
      %p177 = scmp.ne.s32.totalorder %s165, %s166
      %p178 = scmp.eq.s32.totalorder %s30, 1
      %p179 = por %p177, %p178
      %p181 = scmp.ne.s32.totalorder %s166, %s180
      %p182 = scmp.eq.s32.totalorder %s30, 0
      %p183 = por %p181, %p182
      %s185 = sadd.s32 %s184, 1
      %p188 = scmp.eq.s32.totalorder %s24, 1
      %p189 = scmp.ne.s32.totalorder %s184, %s186
      %p190 = scmp.eq.s32.totalorder %s24, 0
      %p191 = por %p189, %p190
      %p192 = scmp.ne.s32.totalorder %s184, %s186
      %p193 = scmp.eq.s32.totalorder %s29, 1
      %p194 = por %p192, %p193
      %p195 = scmp.ne.s32.totalorder %s186, %s187
      %p196 = scmp.eq.s32.totalorder %s29, 0
      %p197 = por %p195, %p196
      %p198 = scmp.ne.s32.totalorder %s186, %s187
      %p199 = scmp.eq.s32.totalorder %s30, 1
      %p200 = por %p198, %p199
      %p202 = scmp.ne.s32.totalorder %s187, %s201
      %p203 = scmp.eq.s32.totalorder %s30, 0
      %p204 = por %p202, %p203
      %s206 = sadd.s32 %s205, 1
      %p209 = scmp.eq.s32.totalorder %s24, 1
      %p210 = scmp.ne.s32.totalorder %s205, %s207
      %p211 = scmp.eq.s32.totalorder %s24, 0
      %p212 = por %p210, %p211
      %p213 = scmp.ne.s32.totalorder %s205, %s207
      %p214 = scmp.eq.s32.totalorder %s29, 1
      %p215 = por %p213, %p214
      %p216 = scmp.ne.s32.totalorder %s207, %s208
      %p217 = scmp.eq.s32.totalorder %s29, 0
      %p218 = por %p216, %p217
      %p219 = scmp.ne.s32.totalorder %s207, %s208
      %p220 = scmp.eq.s32.totalorder %s30, 1
      %p221 = por %p219, %p220
      %p223 = scmp.ne.s32.totalorder %s208, %s222
      %p224 = scmp.eq.s32.totalorder %s30, 0
      %p225 = por %p223, %p224
      %s227 = sadd.s32 %s226, 1
      %p230 = scmp.eq.s32.totalorder %s24, 1
      %p231 = scmp.ne.s32.totalorder %s226, %s228
      %p232 = scmp.eq.s32.totalorder %s24, 0
      %p233 = por %p231, %p232
      %p234 = scmp.ne.s32.totalorder %s226, %s228
      %p235 = scmp.eq.s32.totalorder %s29, 1
      %p236 = por %p234, %p235
      %p237 = scmp.ne.s32.totalorder %s228, %s229
      %p238 = scmp.eq.s32.totalorder %s29, 0
      %p239 = por %p237, %p238
      %p240 = scmp.ne.s32.totalorder %s228, %s229
      %p241 = scmp.eq.s32.totalorder %s30, 1
      %p242 = por %p240, %p241
      %p244 = scmp.ne.s32.totalorder %s229, %s243
      %p245 = scmp.eq.s32.totalorder %s30, 0
      %p246 = por %p244, %p245
      %s248 = sadd.s32 %s247, 1
      %p251 = scmp.eq.s32.totalorder %s24, 1
      %p252 = scmp.ne.s32.totalorder %s247, %s249
      %p253 = scmp.eq.s32.totalorder %s24, 0
      %p254 = por %p252, %p253
      %p255 = scmp.ne.s32.totalorder %s247, %s249
      %p256 = scmp.eq.s32.totalorder %s29, 1
      %p257 = por %p255, %p256
      %p258 = scmp.ne.s32.totalorder %s249, %s250
      %p259 = scmp.eq.s32.totalorder %s29, 0
      %p260 = por %p258, %p259
      %p261 = scmp.ne.s32.totalorder %s249, %s250
      %p262 = scmp.eq.s32.totalorder %s30, 1
      %p263 = por %p261, %p262
      %p265 = scmp.ne.s32.totalorder %s250, %s264
      %p266 = scmp.eq.s32.totalorder %s30, 0
      %p267 = por %p265, %p266
      %s269 = sadd.s32 %s268, 1
      %p272 = scmp.eq.s32.totalorder %s24, 1
      %p273 = scmp.ne.s32.totalorder %s268, %s270
      %p274 = scmp.eq.s32.totalorder %s24, 0
      %p275 = por %p273, %p274
      %p276 = scmp.ne.s32.totalorder %s268, %s270
      %p277 = scmp.eq.s32.totalorder %s29, 1
      %p278 = por %p276, %p277
      %p279 = scmp.ne.s32.totalorder %s270, %s271
      %p280 = scmp.eq.s32.totalorder %s29, 0
      %p281 = por %p279, %p280
      %p282 = scmp.ne.s32.totalorder %s270, %s271
      %p283 = scmp.eq.s32.totalorder %s30, 1
      %p284 = por %p282, %p283
      %p286 = scmp.ne.s32.totalorder %s271, %s285
      %p287 = scmp.eq.s32.totalorder %s30, 0
      %p288 = por %p286, %p287
      %s290 = sadd.s32 %s289, 1
      %p293 = scmp.eq.s32.totalorder %s24, 1
      %p294 = scmp.ne.s32.totalorder %s289, %s291
      %p295 = scmp.eq.s32.totalorder %s24, 0
      %p296 = por %p294, %p295
      %p297 = scmp.ne.s32.totalorder %s289, %s291
      %p298 = scmp.eq.s32.totalorder %s29, 1
      %p299 = por %p297, %p298
      %p300 = scmp.ne.s32.totalorder %s291, %s292
      %p301 = scmp.eq.s32.totalorder %s29, 0
      %p302 = por %p300, %p301
      %p303 = scmp.ne.s32.totalorder %s291, %s292
      %p304 = scmp.eq.s32.totalorder %s30, 1
      %p305 = por %p303, %p304
      %p307 = scmp.ne.s32.totalorder %s292, %s306
      %p308 = scmp.eq.s32.totalorder %s30, 0
      %p309 = por %p307, %p308
      %s311 = sadd.s32 %s310, 1
      %p314 = scmp.eq.s32.totalorder %s24, 1
      %p315 = scmp.ne.s32.totalorder %s310, %s312
      %p316 = scmp.eq.s32.totalorder %s24, 0
      %p317 = por %p315, %p316
      %p318 = scmp.ne.s32.totalorder %s310, %s312
      %p319 = scmp.eq.s32.totalorder %s29, 1
      %p320 = por %p318, %p319
      %p321 = scmp.ne.s32.totalorder %s312, %s313
      %p322 = scmp.eq.s32.totalorder %s29, 0
      %p323 = por %p321, %p322
      %p324 = scmp.ne.s32.totalorder %s312, %s313
      %p325 = scmp.eq.s32.totalorder %s30, 1
      %p326 = por %p324, %p325
      %p328 = scmp.ne.s32.totalorder %s313, %s327
      %p329 = scmp.eq.s32.totalorder %s30, 0
      %p330 = por %p328, %p329
      %s332 = sadd.s32 %s331, 1
      %p335 = scmp.eq.s32.totalorder %s24, 1
      %p336 = scmp.ne.s32.totalorder %s331, %s333
      %p337 = scmp.eq.s32.totalorder %s24, 0
      %p338 = por %p336, %p337
      %p339 = scmp.ne.s32.totalorder %s331, %s333
      %p340 = scmp.eq.s32.totalorder %s29, 1
      %p341 = por %p339, %p340
      %p342 = scmp.ne.s32.totalorder %s333, %s334
      %p343 = scmp.eq.s32.totalorder %s29, 0
      %p344 = por %p342, %p343
      %p345 = scmp.ne.s32.totalorder %s333, %s334
      %p346 = scmp.eq.s32.totalorder %s30, 1
      %p347 = por %p345, %p346
      %p349 = scmp.ne.s32.totalorder %s334, %s348
      %p350 = scmp.eq.s32.totalorder %s30, 0
      %p351 = por %p349, %p350
      %s352 = ssub.s32 %s24, %s31
      %p353 = scmp.eq.s32.totalorder %s352, 0
      %s355 = sadd.s32 %s354, 1
      %s356 = scalar_select %p353, %s354, %s355
      %p359 = pneg %p353
      %p360 = scmp.eq.s32.totalorder %s24, 1
      %p361 = por %p359, %p360
      %p362 = scmp.ne.s32.totalorder %s354, %s357
      %p363 = scmp.eq.s32.totalorder %s24, 0
      %p364 = por %p362, %p363
      %p365 = scmp.ne.s32.totalorder %s354, %s357
      %p366 = scmp.eq.s32.totalorder %s29, 1
      %p367 = por %p365, %p366
      %p368 = scmp.ne.s32.totalorder %s357, %s358
      %p369 = scmp.eq.s32.totalorder %s29, 0
      %p370 = por %p368, %p369
      %p371 = scmp.ne.s32.totalorder %s357, %s358
      %p372 = scmp.eq.s32.totalorder %s30, 1
      %p373 = por %p371, %p372
      %p375 = scmp.ne.s32.totalorder %s358, %s374
      %p376 = scmp.eq.s32.totalorder %s30, 0
      %p377 = por %p375, %p376
      %p378 = scmp.le.s32.totalorder 1, %s24
      %p379 = scmp.lt.s32.totalorder %s24, 3
      %p380 = pnand %p378, %p379
      %p381 = pneg %p380
      // Predicated region
      $region9: #{resnet_forward.1} parent=5 // pred_check
        _
      $region10: #{resnet_forward.1} parent=5 // pred_check_branch
        %383 = sbr.rel (%p380) target = $region12
      $region11: #{resnet_forward.1} parent=5 // pred_region
        %s384 = ssub.s32 %s24, 1
        // Predicated region
        $region13: #{resnet_forward.1} parent=11 // pred_check
          %p385 = pneg %p71
        $region14: #{resnet_forward.1} parent=11 // pred_check_branch
          %387 = sbr.rel (%p385) target = $region16
        $region15: #{resnet_forward.1} parent=11 // pred_region
          _
        $region16: #{resnet_forward.1} parent=11 // pred_fallthru
          _
        // Predicated region
        $region17: #{resnet_forward.1} parent=11 // pred_check
          %p388 = pneg %p92
        $region18: #{resnet_forward.1} parent=11 // pred_check_branch
          %390 = sbr.rel (%p388) target = $region20
        $region19: #{resnet_forward.1} parent=11 // pred_region
          _
        $region20: #{resnet_forward.1} parent=11 // pred_fallthru
          _
        // Predicated region
        $region21: #{resnet_forward.1} parent=11 // pred_check
          %p391 = pneg %p113
        $region22: #{resnet_forward.1} parent=11 // pred_check_branch
          %393 = sbr.rel (%p391) target = $region24
        $region23: #{resnet_forward.1} parent=11 // pred_region
          _
        $region24: #{resnet_forward.1} parent=11 // pred_fallthru
          _
        // Predicated region
        $region25: #{resnet_forward.1} parent=11 // pred_check
          %p394 = pneg %p134
        $region26: #{resnet_forward.1} parent=11 // pred_check_branch
          %396 = sbr.rel (%p394) target = $region28
        $region27: #{resnet_forward.1} parent=11 // pred_region
          _
        $region28: #{resnet_forward.1} parent=11 // pred_fallthru
          _
        // Predicated region
        $region29: #{resnet_forward.1} parent=11 // pred_check
          %p397 = pneg %p155
        $region30: #{resnet_forward.1} parent=11 // pred_check_branch
          %399 = sbr.rel (%p397) target = $region32
        $region31: #{resnet_forward.1} parent=11 // pred_region
          _
        $region32: #{resnet_forward.1} parent=11 // pred_fallthru
          _
        // Predicated region
        $region33: #{resnet_forward.1} parent=11 // pred_check
          %p400 = pneg %p176
        $region34: #{resnet_forward.1} parent=11 // pred_check_branch
          %402 = sbr.rel (%p400) target = $region36
        $region35: #{resnet_forward.1} parent=11 // pred_region
          _
        $region36: #{resnet_forward.1} parent=11 // pred_fallthru
          _
        // Predicated region
        $region37: #{resnet_forward.1} parent=11 // pred_check
          %p403 = pneg %p197
        $region38: #{resnet_forward.1} parent=11 // pred_check_branch
          %405 = sbr.rel (%p403) target = $region40
        $region39: #{resnet_forward.1} parent=11 // pred_region
          _
        $region40: #{resnet_forward.1} parent=11 // pred_fallthru
          _
        // Predicated region
        $region41: #{resnet_forward.1} parent=11 // pred_check
          %p406 = pneg %p218
        $region42: #{resnet_forward.1} parent=11 // pred_check_branch
          %408 = sbr.rel (%p406) target = $region44
        $region43: #{resnet_forward.1} parent=11 // pred_region
          _
        $region44: #{resnet_forward.1} parent=11 // pred_fallthru
          _
        // Predicated region
        $region45: #{resnet_forward.1} parent=11 // pred_check
          %p409 = pneg %p239
        $region46: #{resnet_forward.1} parent=11 // pred_check_branch
          %411 = sbr.rel (%p409) target = $region48
        $region47: #{resnet_forward.1} parent=11 // pred_region
          _
        $region48: #{resnet_forward.1} parent=11 // pred_fallthru
          _
        // Predicated region
        $region49: #{resnet_forward.1} parent=11 // pred_check
          %p412 = pneg %p260
        $region50: #{resnet_forward.1} parent=11 // pred_check_branch
          %414 = sbr.rel (%p412) target = $region52
        $region51: #{resnet_forward.1} parent=11 // pred_region
          _
        $region52: #{resnet_forward.1} parent=11 // pred_fallthru
          _
        // Predicated region
        $region53: #{resnet_forward.1} parent=11 // pred_check
          %p415 = pneg %p281
        $region54: #{resnet_forward.1} parent=11 // pred_check_branch
          %417 = sbr.rel (%p415) target = $region56
        $region55: #{resnet_forward.1} parent=11 // pred_region
          _
        $region56: #{resnet_forward.1} parent=11 // pred_fallthru
          _
        // Predicated region
        $region57: #{resnet_forward.1} parent=11 // pred_check
          %p418 = pneg %p302
        $region58: #{resnet_forward.1} parent=11 // pred_check_branch
          %420 = sbr.rel (%p418) target = $region60
        $region59: #{resnet_forward.1} parent=11 // pred_region
          _
        $region60: #{resnet_forward.1} parent=11 // pred_fallthru
          _
        // Predicated region
        $region61: #{resnet_forward.1} parent=11 // pred_check
          %p421 = pneg %p323
        $region62: #{resnet_forward.1} parent=11 // pred_check_branch
          %423 = sbr.rel (%p421) target = $region64
        $region63: #{resnet_forward.1} parent=11 // pred_region
          _
        $region64: #{resnet_forward.1} parent=11 // pred_fallthru
          _
        // Predicated region
        $region65: #{resnet_forward.1} parent=11 // pred_check
          %p424 = pneg %p344
        $region66: #{resnet_forward.1} parent=11 // pred_check_branch
          %426 = sbr.rel (%p424) target = $region68
        $region67: #{resnet_forward.1} parent=11 // pred_region
          _
        $region68: #{resnet_forward.1} parent=11 // pred_fallthru
          _
      $region12: #{resnet_forward.1} parent=5 // pred_fallthru
        _
      %p427 = scmp.lt.s32.totalorder %s24, 2
      // Predicated region
      $region69: #{resnet_forward.1} parent=5 // pred_check
        %p428 = pneg %p427
      $region70: #{resnet_forward.1} parent=5 // pred_check_branch
        %430 = sbr.rel (%p428) target = $region72
      $region71: #{resnet_forward.1} parent=5 // pred_region
        // Predicated region
        $region73: #{resnet_forward.1} parent=71 // pred_check
          %p431 = pneg %p44
        $region74: #{resnet_forward.1} parent=71 // pred_check_branch
          %433 = sbr.rel (%p431) target = $region76
        $region75: #{resnet_forward.1} parent=71 // pred_region
          %p434 = scmp.lt.s32.totalorder %s24, 1
          %s435 = scalar_select %p434, %s24, 1
          %s436 = smul.addr %s435, 32
          %s437 = smul.addr %s436, 8
          %s438 = scalar_lea.vmem %s0, %s437
        $region76: #{resnet_forward.1} parent=71 // pred_fallthru
          _
      $region72: #{resnet_forward.1} parent=5 // pred_fallthru
        _
      %p439 = scmp.le.s32.totalorder 1, %s24
      %p440 = scmp.lt.s32.totalorder %s24, 3
      %p441 = pnand %p439, %p440
      %p442 = pneg %p441
      // Predicated region
      $region77: #{resnet_forward.1} parent=5 // pred_check
        _
      $region78: #{resnet_forward.1} parent=5 // pred_check_branch
        %444 = sbr.rel (%p441) target = $region80
      $region79: #{resnet_forward.1} parent=5 // pred_region
        %s445 = ssub.s32 %s24, 1
        %p446 = scmp.lt.s32.totalorder %s29, 1
        %s447 = scalar_select %p446, %s29, 1
        %s448 = smul.addr %s447, 32
        %s449 = smul.addr %s448, 8
        %s450 = scalar_lea.vmem %s0, %s449
        %p451 = pneg %p50
        %p452 = pneg %p47
        %p453 = pneg %p71
        %p454 = pneg %p68
        %p455 = pneg %p92
        %p456 = pneg %p89
        %p457 = pneg %p113
        %p458 = pneg %p110
        %p459 = pneg %p134
        %p460 = pneg %p131
        %p461 = pneg %p155
        %p462 = pneg %p152
        %p463 = pneg %p176
        %p464 = pneg %p173
        %p465 = pneg %p197
        %p466 = pneg %p194
        %p467 = pneg %p218
        %p468 = pneg %p215
        %p469 = pneg %p239
        %p470 = pneg %p236
        %p471 = pneg %p260
        %p472 = pneg %p257
        %p473 = pneg %p281
        %p474 = pneg %p278
        %p475 = pneg %p302
        %p476 = pneg %p299
        %p477 = pneg %p323
        %p478 = pneg %p320
        %p479 = pneg %p344
        %p480 = pneg %p341
        %p481 = pneg %p370
        %p482 = pneg %p367
        %s483 = sand.u32 %s357, 1
        %s484 = scalar_lea.sflag [#allocation3], %s483
        %s485 = sand.u32 %s357, 1
        %s486 = smul.addr %s485, 256
        %s487 = scalar_lea.vmem [#allocation2], %s486
        %p488 = scmp.lt.s32.totalorder %s29, 1
        %s489 = scalar_select %p488, %s29, 1
        %s490 = smul.addr %s489, 32
        %s491 = smul.addr %s490, 8
        %s492 = scalar_lea.vmem %s0, %s491
        %v494 = vld [vmem:[%s492] sm:$0xff]
        %v495 = vld [vmem:[%s492 + $0x8] sm:$0xff]
        %v496 = vld [vmem:[%s492 + $0x10] sm:$0xff]
        %v497 = vld [vmem:[%s492 + $0x18] sm:$0xff]
        %v498 = vld [vmem:[%s492 + $0x20] sm:$0xff]
        %v499 = vld [vmem:[%s492 + $0x28] sm:$0xff]
        %v500 = vld [vmem:[%s492 + $0x30] sm:$0xff]
        %v501 = vld [vmem:[%s492 + $0x38] sm:$0xff]
        %v502 = vld [vmem:[%s492 + $0x40] sm:$0xff]
        %v503 = vld [vmem:[%s492 + $0x48] sm:$0xff]
        %v504 = vld [vmem:[%s492 + $0x50] sm:$0xff]
        %v505 = vld [vmem:[%s492 + $0x58] sm:$0xff]
        %v506 = vld [vmem:[%s492 + $0x60] sm:$0xff]
        %v507 = vld [vmem:[%s492 + $0x68] sm:$0xff]
        %v508 = vld [vmem:[%s492 + $0x70] sm:$0xff]
        %v509 = vld [vmem:[%s492 + $0x78] sm:$0xff]
        %v510 = vld [vmem:[%s492 + $0x80] sm:$0xff]
        %v511 = vld [vmem:[%s492 + $0x88] sm:$0xff]
        %v512 = vld [vmem:[%s492 + $0x90] sm:$0xff]
        %v513 = vld [vmem:[%s492 + $0x98] sm:$0xff]
        %v514 = vld [vmem:[%s492 + $0xa0] sm:$0xff]
        %v515 = vld [vmem:[%s492 + $0xa8] sm:$0xff]
        %v516 = vld [vmem:[%s492 + $0xb0] sm:$0xff]
        %v517 = vld [vmem:[%s492 + $0xb8] sm:$0xff]
        %v518 = vld [vmem:[%s492 + $0xc0] sm:$0xff]
        %v519 = vld [vmem:[%s492 + $0xc8] sm:$0xff]
        %v520 = vld [vmem:[%s492 + $0xd0] sm:$0xff]
        %v521 = vld [vmem:[%s492 + $0xd8] sm:$0xff]
        %v522 = vld [vmem:[%s492 + $0xe0] sm:$0xff]
        %v523 = vld [vmem:[%s492 + $0xe8] sm:$0xff]
        %v524 = vld [vmem:[%s492 + $0xf0] sm:$0xff]
        %v525 = vld [vmem:[%s492 + $0xf8] sm:$0xff]
        %v526 = vld [vmem:[%s1] sm:$0x1]
        %v527 = vld [vmem:[%s2] sm:$0x1]
        %v528 = vld [vmem:[%s3] sm:$0xff]
        %v529 = vld [vmem:[%s3 + $0x8] sm:$0xff]
        %v530 = vld [vmem:[%s3 + $0x10] sm:$0xff]
        %v531 = vld [vmem:[%s3 + $0x18] sm:$0xff]
        %v532 = vld [vmem:[%s4] sm:$0xff]
        %v533 = vld [vmem:[%s4 + $0x8] sm:$0xff]
        %v534 = vld [vmem:[%s4 + $0x10] sm:$0xff]
        %v535 = vld [vmem:[%s4 + $0x18] sm:$0xff]
        %vm536 = vcmask 261120
        %v537 = vsel %vm536, %v494, 0.0
        %v538 = vsel %vm536, %v495, 0.0
        %v539 = vadd.f32 %v537, %v538
        %v540 = vsel %vm536, %v496, 0.0
        %v541 = vadd.f32 %v539, %v540
        %v542 = vsel %vm536, %v497, 0.0
        %v543 = vadd.f32 %v541, %v542
        %v544 = vsel %vm536, %v498, 0.0
        %v545 = vadd.f32 %v543, %v544
        %v546 = vsel %vm536, %v499, 0.0
        %v547 = vadd.f32 %v545, %v546
        %v548 = vsel %vm536, %v500, 0.0
        %v549 = vadd.f32 %v547, %v548
        %v550 = vsel %vm536, %v501, 0.0
        %v551 = vadd.f32 %v549, %v550
        %v552 = vsel %vm536, %v502, 0.0
        %v553 = vadd.f32 %v551, %v552
        %v554 = vsel %vm536, %v503, 0.0
        %v555 = vadd.f32 %v553, %v554
        %v556 = vsel %vm536, %v504, 0.0
        %v557 = vadd.f32 %v555, %v556
        %v558 = vsel %vm536, %v505, 0.0
        %v559 = vadd.f32 %v557, %v558
        %v560 = vsel %vm536, %v506, 0.0
        %v561 = vadd.f32 %v559, %v560
        %v562 = vsel %vm536, %v507, 0.0
        %v563 = vadd.f32 %v561, %v562
        %v564 = vsel %vm536, %v508, 0.0
        %v565 = vadd.f32 %v563, %v564
        %v566 = vsel %vm536, %v509, 0.0
        %v567 = vadd.f32 %v565, %v566
        %v568 = vsel %vm536, %v510, 0.0
        %v569 = vadd.f32 %v567, %v568
        %v570 = vsel %vm536, %v511, 0.0
        %v571 = vadd.f32 %v569, %v570
        %v572 = vsel %vm536, %v512, 0.0
        %v573 = vadd.f32 %v571, %v572
        %v574 = vsel %vm536, %v513, 0.0
        %v575 = vadd.f32 %v573, %v574
        %v576 = vsel %vm536, %v514, 0.0
        %v577 = vadd.f32 %v575, %v576
        %v578 = vsel %vm536, %v515, 0.0
        %v579 = vadd.f32 %v577, %v578
        %v580 = vsel %vm536, %v516, 0.0
        %v581 = vadd.f32 %v579, %v580
        %v582 = vsel %vm536, %v517, 0.0
        %v583 = vadd.f32 %v581, %v582
        %v584 = vsel %vm536, %v518, 0.0
        %v585 = vadd.f32 %v583, %v584
        %v586 = vsel %vm536, %v519, 0.0
        %v587 = vadd.f32 %v585, %v586
        %v588 = vsel %vm536, %v520, 0.0
        %v589 = vadd.f32 %v587, %v588
        %v590 = vsel %vm536, %v521, 0.0
        %v591 = vadd.f32 %v589, %v590
        %v592 = vsel %vm536, %v522, 0.0
        %v593 = vadd.f32 %v591, %v592
        %v594 = vsel %vm536, %v523, 0.0
        %v595 = vadd.f32 %v593, %v594
        %v596 = vsel %vm536, %v524, 0.0
        %v597 = vadd.f32 %v595, %v596
        %v598 = vsel %vm536, %v525, 0.0
        %v599 = vadd.f32 %v597, %v598
        %v600 = vrot.slane %v599, 4
        %v601 = vadd.f32 %v599, %v600
        %v602 = vrot.slane %v601, 2
        %v603 = vadd.f32 %v601, %v602
        %v604 = vrot.slane %v603, 1
        %v605 = vadd.f32 %v603, %v604
        %v606 = vmul.f32 %v494, %v494
        %v607 = vmul.f32 %v495, %v495
        %v608 = vmul.f32 %v496, %v496
        %v609 = vmul.f32 %v497, %v497
        %v610 = vmul.f32 %v498, %v498
        %v611 = vmul.f32 %v499, %v499
        %v612 = vmul.f32 %v500, %v500
        %v613 = vmul.f32 %v501, %v501
        %v614 = vmul.f32 %v502, %v502
        %v615 = vmul.f32 %v503, %v503
        %v616 = vmul.f32 %v504, %v504
        %v617 = vmul.f32 %v505, %v505
        %v618 = vmul.f32 %v506, %v506
        %v619 = vmul.f32 %v507, %v507
        %v620 = vmul.f32 %v508, %v508
        %v621 = vmul.f32 %v509, %v509
        %v622 = vmul.f32 %v510, %v510
        %v623 = vmul.f32 %v511, %v511
        %v624 = vmul.f32 %v512, %v512
        %v625 = vmul.f32 %v513, %v513
        %v626 = vmul.f32 %v514, %v514
        %v627 = vmul.f32 %v515, %v515
        %v628 = vmul.f32 %v516, %v516
        %v629 = vmul.f32 %v517, %v517
        %v630 = vmul.f32 %v518, %v518
        %v631 = vmul.f32 %v519, %v519
        %v632 = vmul.f32 %v520, %v520
        %v633 = vmul.f32 %v521, %v521
        %v634 = vmul.f32 %v522, %v522
        %v635 = vmul.f32 %v523, %v523
        %v636 = vmul.f32 %v524, %v524
        %v637 = vmul.f32 %v525, %v525
        %v638 = vsel %vm536, %v606, 0.0
        %v639 = vsel %vm536, %v607, 0.0
        %v640 = vadd.f32 %v638, %v639
        %v641 = vsel %vm536, %v608, 0.0
        %v642 = vadd.f32 %v640, %v641
        %v643 = vsel %vm536, %v609, 0.0
        %v644 = vadd.f32 %v642, %v643
        %v645 = vsel %vm536, %v610, 0.0
        %v646 = vadd.f32 %v644, %v645
        %v647 = vsel %vm536, %v611, 0.0
        %v648 = vadd.f32 %v646, %v647
        %v649 = vsel %vm536, %v612, 0.0
        %v650 = vadd.f32 %v648, %v649
        %v651 = vsel %vm536, %v613, 0.0
        %v652 = vadd.f32 %v650, %v651
        %v653 = vsel %vm536, %v614, 0.0
        %v654 = vadd.f32 %v652, %v653
        %v655 = vsel %vm536, %v615, 0.0
        %v656 = vadd.f32 %v654, %v655
        %v657 = vsel %vm536, %v616, 0.0
        %v658 = vadd.f32 %v656, %v657
        %v659 = vsel %vm536, %v617, 0.0
        %v660 = vadd.f32 %v658, %v659
        %v661 = vsel %vm536, %v618, 0.0
        %v662 = vadd.f32 %v660, %v661
        %v663 = vsel %vm536, %v619, 0.0
        %v664 = vadd.f32 %v662, %v663
        %v665 = vsel %vm536, %v620, 0.0
        %v666 = vadd.f32 %v664, %v665
        %v667 = vsel %vm536, %v621, 0.0
        %v668 = vadd.f32 %v666, %v667
        %v669 = vsel %vm536, %v622, 0.0
        %v670 = vadd.f32 %v668, %v669
        %v671 = vsel %vm536, %v623, 0.0
        %v672 = vadd.f32 %v670, %v671
        %v673 = vsel %vm536, %v624, 0.0
        %v674 = vadd.f32 %v672, %v673
        %v675 = vsel %vm536, %v625, 0.0
        %v676 = vadd.f32 %v674, %v675
        %v677 = vsel %vm536, %v626, 0.0
        %v678 = vadd.f32 %v676, %v677
        %v679 = vsel %vm536, %v627, 0.0
        %v680 = vadd.f32 %v678, %v679
        %v681 = vsel %vm536, %v628, 0.0
        %v682 = vadd.f32 %v680, %v681
        %v683 = vsel %vm536, %v629, 0.0
        %v684 = vadd.f32 %v682, %v683
        %v685 = vsel %vm536, %v630, 0.0
        %v686 = vadd.f32 %v684, %v685
        %v687 = vsel %vm536, %v631, 0.0
        %v688 = vadd.f32 %v686, %v687
        %v689 = vsel %vm536, %v632, 0.0
        %v690 = vadd.f32 %v688, %v689
        %v691 = vsel %vm536, %v633, 0.0
        %v692 = vadd.f32 %v690, %v691
        %v693 = vsel %vm536, %v634, 0.0
        %v694 = vadd.f32 %v692, %v693
        %v695 = vsel %vm536, %v635, 0.0
        %v696 = vadd.f32 %v694, %v695
        %v697 = vsel %vm536, %v636, 0.0
        %v698 = vadd.f32 %v696, %v697
        %v699 = vsel %vm536, %v637, 0.0
        %v700 = vadd.f32 %v698, %v699
        %v701 = vrot.slane %v700, 4
        %v702 = vadd.f32 %v700, %v701
        %v703 = vrot.slane %v702, 2
        %v704 = vadd.f32 %v702, %v703
        %v705 = vrot.slane %v704, 1
        %v706 = vadd.f32 %v704, %v705
        %v708 = vsel %vm536, %v605, 0
        %710 = vmatprep.subr.mxu0 0.0
        %711 = vmatpush1.msra.mxu0 0.0
        %712 = vmatprep.subr.mxu0 0.0
        %713 = vmatpush1.msra.mxu0 0.0
        %714 = vmatprep.subr.mxu0 0.0
        %715 = vmatpush1.msra.mxu0 0.0
        %716 = vmatprep.subr.mxu0 0.0
        %717 = vmatpush1.msra.mxu0 0.0
        %718 = vmatprep.subr.mxu0 0.0
        %719 = vmatpush1.msra.mxu0 0.0
        %720 = vmatprep.subr.mxu0 0.0
        %721 = vmatpush1.msra.mxu0 0.0
        %722 = vmatprep.subr.mxu0 0.0
        %723 = vmatpush1.msra.mxu0 0.0
        %724 = vmatprep.subr.mxu0 0.0
        %725 = vmatpush1.msra.mxu0 0.0
        %726 = vmatprep.subr.mxu0 0.0
        %727 = vmatpush1.msra.mxu0 0.0
        %728 = vmatprep.subr.mxu0 0.0
        %729 = vmatpush1.msra.mxu0 0.0
        %730 = vmatprep.subr.mxu0 0.0
        %731 = vmatpush1.msra.mxu0 0.0
        %732 = vmatprep.subr.mxu0 0.0
        %733 = vmatpush1.msra.mxu0 0.0
        %734 = vmatprep.subr.mxu0 0.0
        %735 = vmatpush1.msra.mxu0 %v531
        %736 = vmatprep.subr.mxu0 0.0
        %737 = vmatpush1.msra.mxu0 %v530
        %738 = vmatprep.subr.mxu0 0.0
        %739 = vmatpush1.msra.mxu0 %v529
        %740 = vmatprep.subr.mxu0 0.0
        %741 = vmatpush1.msra.mxu0 %v528
        %742 = vmatprep.subr.mxu0 0.0
        %743 = vmatpush2.msra.mxu0 0.0
        %744 = vmatprep.subr.mxu0 0.0
        %745 = vmatpush2.msra.mxu0 0.0
        %746 = vmatprep.subr.mxu0 0.0
        %747 = vmatpush2.msra.mxu0 0.0
        %748 = vmatprep.subr.mxu0 0.0
        %749 = vmatpush2.msra.mxu0 0.0
        %750 = vmatprep.subr.mxu0 0.0
        %751 = vmatpush2.msra.mxu0 0.0
        %752 = vmatprep.subr.mxu0 0.0
        %753 = vmatpush2.msra.mxu0 0.0
        %754 = vmatprep.subr.mxu0 0.0
        %755 = vmatpush2.msra.mxu0 0.0
        %756 = vmatprep.subr.mxu0 0.0
        %757 = vmatpush2.msra.mxu0 0.0
        %758 = vmatprep.subr.mxu0 0.0
        %759 = vmatpush2.msra.mxu0 0.0
        %760 = vmatprep.subr.mxu0 0.0
        %761 = vmatpush2.msra.mxu0 0.0
        %762 = vmatprep.subr.mxu0 0.0
        %763 = vmatpush2.msra.mxu0 0.0
        %764 = vmatprep.subr.mxu0 0.0
        %765 = vmatpush2.msra.mxu0 0.0
        %766 = vmatprep.subr.mxu0 0.0
        %767 = vmatpush2.msra.mxu0 0.0
        %768 = vmatprep.subr.mxu0 0.0
        %769 = vmatpush2.msra.mxu0 0.0
        %770 = vmatprep.subr.mxu0 0.0
        %771 = vmatpush2.msra.mxu0 0.0
        %772 = vmatprep.subr.mxu0 0.0
        %773 = vmatpush2.msra.mxu0 0.0
        %774 = vmatprep.mubr.f32.mxu0 0.0
        %775 = vmatmul.mubr.f32.gmra.mxu0 %v708
        %v776 = vpop.f32.mrf.mxu0
        %v777 = vadd.f32 0.0, %v776
        %v778 = vpop.f32.mrf.mxu0
        %779 = vdwg.mxu0
        %v781 = vsel %vm536, %v706, 0
        %783 = vmatprep.subr.mxu0 0.0
        %784 = vmatpush1.msra.mxu0 0.0
        %785 = vmatprep.subr.mxu0 0.0
        %786 = vmatpush1.msra.mxu0 0.0
        %787 = vmatprep.subr.mxu0 0.0
        %788 = vmatpush1.msra.mxu0 0.0
        %789 = vmatprep.subr.mxu0 0.0
        %790 = vmatpush1.msra.mxu0 0.0
        %791 = vmatprep.subr.mxu0 0.0
        %792 = vmatpush1.msra.mxu0 0.0
        %793 = vmatprep.subr.mxu0 0.0
        %794 = vmatpush1.msra.mxu0 0.0
        %795 = vmatprep.subr.mxu0 0.0
        %796 = vmatpush1.msra.mxu0 0.0
        %797 = vmatprep.subr.mxu0 0.0
        %798 = vmatpush1.msra.mxu0 0.0
        %799 = vmatprep.subr.mxu0 0.0
        %800 = vmatpush1.msra.mxu0 0.0
        %801 = vmatprep.subr.mxu0 0.0
        %802 = vmatpush1.msra.mxu0 0.0
        %803 = vmatprep.subr.mxu0 0.0
        %804 = vmatpush1.msra.mxu0 0.0
        %805 = vmatprep.subr.mxu0 0.0
        %806 = vmatpush1.msra.mxu0 0.0
        %807 = vmatprep.subr.mxu0 0.0
        %808 = vmatpush1.msra.mxu0 %v531
        %809 = vmatprep.subr.mxu0 0.0
        %810 = vmatpush1.msra.mxu0 %v530
        %811 = vmatprep.subr.mxu0 0.0
        %812 = vmatpush1.msra.mxu0 %v529
        %813 = vmatprep.subr.mxu0 0.0
        %814 = vmatpush1.msra.mxu0 %v528
        %815 = vmatprep.subr.mxu0 0.0
        %816 = vmatpush2.msra.mxu0 0.0
        %817 = vmatprep.subr.mxu0 0.0
        %818 = vmatpush2.msra.mxu0 0.0
        %819 = vmatprep.subr.mxu0 0.0
        %820 = vmatpush2.msra.mxu0 0.0
        %821 = vmatprep.subr.mxu0 0.0
        %822 = vmatpush2.msra.mxu0 0.0
        %823 = vmatprep.subr.mxu0 0.0
        %824 = vmatpush2.msra.mxu0 0.0
        %825 = vmatprep.subr.mxu0 0.0
        %826 = vmatpush2.msra.mxu0 0.0
        %827 = vmatprep.subr.mxu0 0.0
        %828 = vmatpush2.msra.mxu0 0.0
        %829 = vmatprep.subr.mxu0 0.0
        %830 = vmatpush2.msra.mxu0 0.0
        %831 = vmatprep.subr.mxu0 0.0
        %832 = vmatpush2.msra.mxu0 0.0
        %833 = vmatprep.subr.mxu0 0.0
        %834 = vmatpush2.msra.mxu0 0.0
        %835 = vmatprep.subr.mxu0 0.0
        %836 = vmatpush2.msra.mxu0 0.0
        %837 = vmatprep.subr.mxu0 0.0
        %838 = vmatpush2.msra.mxu0 0.0
        %839 = vmatprep.subr.mxu0 0.0
        %840 = vmatpush2.msra.mxu0 0.0
        %841 = vmatprep.subr.mxu0 0.0
        %842 = vmatpush2.msra.mxu0 0.0
        %843 = vmatprep.subr.mxu0 0.0
        %844 = vmatpush2.msra.mxu0 0.0
        %845 = vmatprep.subr.mxu0 0.0
        %846 = vmatpush2.msra.mxu0 0.0
        %847 = vmatprep.mubr.f32.mxu0 0.0
        %848 = vmatmul.mubr.f32.gmra.mxu0 %v781
        %v849 = vpop.f32.mrf.mxu0
        %v850 = vadd.f32 0.0, %v849
        %v851 = vpop.f32.mrf.mxu0
        %852 = vdwg.mxu0
        %v853 = vrcp.pop 256.0
        %v854 = vmul.f32 %v777, %v853
        %v855 = vmul.f32 %v850, %v853
        %v856 = vmul.f32 %v854, %v854
        %v857 = vsub.f32 %v855, %v856
        %v858 = vmax.f32 %v857, 0.0
        %v859 = vadd.f32 %v858, 1e-06
        %v860 = vrsqrt.pop %v859
        %v862 = vsel %vm536, %v854, 0
        %864 = vmatprep.subr.mxu0 0.0
        %865 = vmatpush1.msra.mxu0 0.0
        %866 = vmatprep.subr.mxu0 0.0
        %867 = vmatpush1.msra.mxu0 0.0
        %868 = vmatprep.subr.mxu0 0.0
        %869 = vmatpush1.msra.mxu0 0.0
        %870 = vmatprep.subr.mxu0 0.0
        %871 = vmatpush1.msra.mxu0 0.0
        %872 = vmatprep.subr.mxu0 0.0
        %873 = vmatpush1.msra.mxu0 0.0
        %874 = vmatprep.subr.mxu0 0.0
        %875 = vmatpush1.msra.mxu0 0.0
        %876 = vmatprep.subr.mxu0 0.0
        %877 = vmatpush1.msra.mxu0 0.0
        %878 = vmatprep.subr.mxu0 0.0
        %879 = vmatpush1.msra.mxu0 0.0
        %880 = vmatprep.subr.mxu0 0.0
        %881 = vmatpush1.msra.mxu0 0.0
        %882 = vmatprep.subr.mxu0 0.0
        %883 = vmatpush1.msra.mxu0 0.0
        %884 = vmatprep.subr.mxu0 0.0
        %885 = vmatpush1.msra.mxu0 0.0
        %886 = vmatprep.subr.mxu0 0.0
        %887 = vmatpush1.msra.mxu0 0.0
        %888 = vmatprep.subr.mxu0 0.0
        %889 = vmatpush1.msra.mxu0 %v535
        %890 = vmatprep.subr.mxu0 0.0
        %891 = vmatpush1.msra.mxu0 %v534
        %892 = vmatprep.subr.mxu0 0.0
        %893 = vmatpush1.msra.mxu0 %v533
        %894 = vmatprep.subr.mxu0 0.0
        %895 = vmatpush1.msra.mxu0 %v532
        %896 = vmatprep.subr.mxu0 0.0
        %897 = vmatpush2.msra.mxu0 0.0
        %898 = vmatprep.subr.mxu0 0.0
        %899 = vmatpush2.msra.mxu0 0.0
        %900 = vmatprep.subr.mxu0 0.0
        %901 = vmatpush2.msra.mxu0 0.0
        %902 = vmatprep.subr.mxu0 0.0
        %903 = vmatpush2.msra.mxu0 0.0
        %904 = vmatprep.subr.mxu0 0.0
        %905 = vmatpush2.msra.mxu0 0.0
        %906 = vmatprep.subr.mxu0 0.0
        %907 = vmatpush2.msra.mxu0 0.0
        %908 = vmatprep.subr.mxu0 0.0
        %909 = vmatpush2.msra.mxu0 0.0
        %910 = vmatprep.subr.mxu0 0.0
        %911 = vmatpush2.msra.mxu0 0.0
        %912 = vmatprep.subr.mxu0 0.0
        %913 = vmatpush2.msra.mxu0 0.0
        %914 = vmatprep.subr.mxu0 0.0
        %915 = vmatpush2.msra.mxu0 0.0
        %916 = vmatprep.subr.mxu0 0.0
        %917 = vmatpush2.msra.mxu0 0.0
        %918 = vmatprep.subr.mxu0 0.0
        %919 = vmatpush2.msra.mxu0 0.0
        %920 = vmatprep.subr.mxu0 0.0
        %921 = vmatpush2.msra.mxu0 0.0
        %922 = vmatprep.subr.mxu0 0.0
        %923 = vmatpush2.msra.mxu0 0.0
        %924 = vmatprep.subr.mxu0 0.0
        %925 = vmatpush2.msra.mxu0 0.0
        %926 = vmatprep.subr.mxu0 0.0
        %927 = vmatpush2.msra.mxu0 0.0
        %928 = vmatprep.mubr.f32.mxu0 0.0
        %929 = vmatmul.mubr.f32.gmra.mxu0 %v862
        %v930 = vpop.f32.mrf.mxu0
        %v931 = vadd.f32 0.0, %v930
        %v932 = vpop.f32.mrf.mxu0
        %933 = vdwg.mxu0
        %v935 = vsel %vm536, %v860, 0
        %937 = vmatprep.subr.mxu0 0.0
        %938 = vmatpush1.msra.mxu0 0.0
        %939 = vmatprep.subr.mxu0 0.0
        %940 = vmatpush1.msra.mxu0 0.0
        %941 = vmatprep.subr.mxu0 0.0
        %942 = vmatpush1.msra.mxu0 0.0
        %943 = vmatprep.subr.mxu0 0.0
        %944 = vmatpush1.msra.mxu0 0.0
        %945 = vmatprep.subr.mxu0 0.0
        %946 = vmatpush1.msra.mxu0 0.0
        %947 = vmatprep.subr.mxu0 0.0
        %948 = vmatpush1.msra.mxu0 0.0
        %949 = vmatprep.subr.mxu0 0.0
        %950 = vmatpush1.msra.mxu0 0.0
        %951 = vmatprep.subr.mxu0 0.0
        %952 = vmatpush1.msra.mxu0 0.0
        %953 = vmatprep.subr.mxu0 0.0
        %954 = vmatpush1.msra.mxu0 0.0
        %955 = vmatprep.subr.mxu0 0.0
        %956 = vmatpush1.msra.mxu0 0.0
        %957 = vmatprep.subr.mxu0 0.0
        %958 = vmatpush1.msra.mxu0 0.0
        %959 = vmatprep.subr.mxu0 0.0
        %960 = vmatpush1.msra.mxu0 0.0
        %961 = vmatprep.subr.mxu0 0.0
        %962 = vmatpush1.msra.mxu0 %v535
        %963 = vmatprep.subr.mxu0 0.0
        %964 = vmatpush1.msra.mxu0 %v534
        %965 = vmatprep.subr.mxu0 0.0
        %966 = vmatpush1.msra.mxu0 %v533
        %967 = vmatprep.subr.mxu0 0.0
        %968 = vmatpush1.msra.mxu0 %v532
        %969 = vmatprep.subr.mxu0 0.0
        %970 = vmatpush2.msra.mxu0 0.0
        %971 = vmatprep.subr.mxu0 0.0
        %972 = vmatpush2.msra.mxu0 0.0
        %973 = vmatprep.subr.mxu0 0.0
        %974 = vmatpush2.msra.mxu0 0.0
        %975 = vmatprep.subr.mxu0 0.0
        %976 = vmatpush2.msra.mxu0 0.0
        %977 = vmatprep.subr.mxu0 0.0
        %978 = vmatpush2.msra.mxu0 0.0
        %979 = vmatprep.subr.mxu0 0.0
        %980 = vmatpush2.msra.mxu0 0.0
        %981 = vmatprep.subr.mxu0 0.0
        %982 = vmatpush2.msra.mxu0 0.0
        %983 = vmatprep.subr.mxu0 0.0
        %984 = vmatpush2.msra.mxu0 0.0
        %985 = vmatprep.subr.mxu0 0.0
        %986 = vmatpush2.msra.mxu0 0.0
        %987 = vmatprep.subr.mxu0 0.0
        %988 = vmatpush2.msra.mxu0 0.0
        %989 = vmatprep.subr.mxu0 0.0
        %990 = vmatpush2.msra.mxu0 0.0
        %991 = vmatprep.subr.mxu0 0.0
        %992 = vmatpush2.msra.mxu0 0.0
        %993 = vmatprep.subr.mxu0 0.0
        %994 = vmatpush2.msra.mxu0 0.0
        %995 = vmatprep.subr.mxu0 0.0
        %996 = vmatpush2.msra.mxu0 0.0
        %997 = vmatprep.subr.mxu0 0.0
        %998 = vmatpush2.msra.mxu0 0.0
        %999 = vmatprep.subr.mxu0 0.0
        %1000 = vmatpush2.msra.mxu0 0.0
        %1001 = vmatprep.mubr.f32.mxu0 0.0
        %1002 = vmatmul.mubr.f32.gmra.mxu0 %v935
        %v1003 = vpop.f32.mrf.mxu0
        %v1004 = vadd.f32 0.0, %v1003
        %v1005 = vpop.f32.mrf.mxu0
        %1006 = vdwg.mxu0
        %v1007 = vmul.f32 %v1004, %v526
        %v1008 = vmul.f32 %v931, %v1007
        %v1009 = vsub.f32 %v527, %v1008
        %v1010 = vlaneseq
        %v1011 = vshrl.u32 %v1010, 7
        %v1012 = vsub.s32 0, %v1011
        %v1013 = vrot.slane %v1007, %v1012
        %v1014 = vmul.f32 %v494, %v1013
        %v1015 = vmul.f32 %v495, %v1013
        %v1016 = vmul.f32 %v496, %v1013
        %v1017 = vmul.f32 %v497, %v1013
        %v1018 = vmul.f32 %v498, %v1013
        %v1019 = vmul.f32 %v499, %v1013
        %v1020 = vmul.f32 %v500, %v1013
        %v1021 = vmul.f32 %v501, %v1013
        %v1022 = vmul.f32 %v502, %v1013
        %v1023 = vmul.f32 %v503, %v1013
        %v1024 = vmul.f32 %v504, %v1013
        %v1025 = vmul.f32 %v505, %v1013
        %v1026 = vmul.f32 %v506, %v1013
        %v1027 = vmul.f32 %v507, %v1013
        %v1028 = vmul.f32 %v508, %v1013
        %v1029 = vmul.f32 %v509, %v1013
        %v1030 = vmul.f32 %v510, %v1013
        %v1031 = vmul.f32 %v511, %v1013
        %v1032 = vmul.f32 %v512, %v1013
        %v1033 = vmul.f32 %v513, %v1013
        %v1034 = vmul.f32 %v514, %v1013
        %v1035 = vmul.f32 %v515, %v1013
        %v1036 = vmul.f32 %v516, %v1013
        %v1037 = vmul.f32 %v517, %v1013
        %v1038 = vmul.f32 %v518, %v1013
        %v1039 = vmul.f32 %v519, %v1013
        %v1040 = vmul.f32 %v520, %v1013
        %v1041 = vmul.f32 %v521, %v1013
        %v1042 = vmul.f32 %v522, %v1013
        %v1043 = vmul.f32 %v523, %v1013
        %v1044 = vmul.f32 %v524, %v1013
        %v1045 = vmul.f32 %v525, %v1013
        %v1047 = vlaneseq
        %v1048 = vshrl.u32 %v1047, 7
        %v1049 = vsub.s32 0, %v1048
        %v1050 = vrot.slane %v1009, %v1049
        %v1052 = vadd.f32 %v1014, %v1050
        %v1053 = vadd.f32 %v1015, %v1050
        %v1054 = vadd.f32 %v1016, %v1050
        %v1055 = vadd.f32 %v1017, %v1050
        %v1056 = vadd.f32 %v1018, %v1050
        %v1057 = vadd.f32 %v1019, %v1050
        %v1058 = vadd.f32 %v1020, %v1050
        %v1059 = vadd.f32 %v1021, %v1050
        %v1060 = vadd.f32 %v1022, %v1050
        %v1061 = vadd.f32 %v1023, %v1050
        %v1062 = vadd.f32 %v1024, %v1050
        %v1063 = vadd.f32 %v1025, %v1050
        %v1064 = vadd.f32 %v1026, %v1050
        %v1065 = vadd.f32 %v1027, %v1050
        %v1066 = vadd.f32 %v1028, %v1050
        %v1067 = vadd.f32 %v1029, %v1050
        %v1068 = vadd.f32 %v1030, %v1050
        %v1069 = vadd.f32 %v1031, %v1050
        %v1070 = vadd.f32 %v1032, %v1050
        %v1071 = vadd.f32 %v1033, %v1050
        %v1072 = vadd.f32 %v1034, %v1050
        %v1073 = vadd.f32 %v1035, %v1050
        %v1074 = vadd.f32 %v1036, %v1050
        %v1075 = vadd.f32 %v1037, %v1050
        %v1076 = vadd.f32 %v1038, %v1050
        %v1077 = vadd.f32 %v1039, %v1050
        %v1078 = vadd.f32 %v1040, %v1050
        %v1079 = vadd.f32 %v1041, %v1050
        %v1080 = vadd.f32 %v1042, %v1050
        %v1081 = vadd.f32 %v1043, %v1050
        %v1082 = vadd.f32 %v1044, %v1050
        %v1083 = vadd.f32 %v1045, %v1050
        %v1084 = vxor.u32 %v1052, 2147483648
        %v1085 = vxor.u32 %v1053, 2147483648
        %v1086 = vxor.u32 %v1054, 2147483648
        %v1087 = vxor.u32 %v1055, 2147483648
        %v1088 = vxor.u32 %v1056, 2147483648
        %v1089 = vxor.u32 %v1057, 2147483648
        %v1090 = vxor.u32 %v1058, 2147483648
        %v1091 = vxor.u32 %v1059, 2147483648
        %v1092 = vxor.u32 %v1060, 2147483648
        %v1093 = vxor.u32 %v1061, 2147483648
        %v1094 = vxor.u32 %v1062, 2147483648
        %v1095 = vxor.u32 %v1063, 2147483648
        %v1096 = vxor.u32 %v1064, 2147483648
        %v1097 = vxor.u32 %v1065, 2147483648
        %v1098 = vxor.u32 %v1066, 2147483648
        %v1099 = vxor.u32 %v1067, 2147483648
        %v1100 = vxor.u32 %v1068, 2147483648
        %v1101 = vxor.u32 %v1069, 2147483648
        %v1102 = vxor.u32 %v1070, 2147483648
        %v1103 = vxor.u32 %v1071, 2147483648
        %v1104 = vxor.u32 %v1072, 2147483648
        %v1105 = vxor.u32 %v1073, 2147483648
        %v1106 = vxor.u32 %v1074, 2147483648
        %v1107 = vxor.u32 %v1075, 2147483648
        %v1108 = vxor.u32 %v1076, 2147483648
        %v1109 = vxor.u32 %v1077, 2147483648
        %v1110 = vxor.u32 %v1078, 2147483648
        %v1111 = vxor.u32 %v1079, 2147483648
        %v1112 = vxor.u32 %v1080, 2147483648
        %v1113 = vxor.u32 %v1081, 2147483648
        %v1114 = vxor.u32 %v1082, 2147483648
        %v1115 = vxor.u32 %v1083, 2147483648
        %v1116 = vmul.f32 %v1084, 1.442695
        %v1117 = vpow.pop %v1116
        %v1118 = vmul.f32 %v1085, 1.442695
        %v1119 = vpow.pop %v1118
        %v1120 = vmul.f32 %v1086, 1.442695
        %v1121 = vpow.pop %v1120
        %v1122 = vmul.f32 %v1087, 1.442695
        %v1123 = vpow.pop %v1122
        %v1124 = vmul.f32 %v1088, 1.442695
        %v1125 = vpow.pop %v1124
        %v1126 = vmul.f32 %v1089, 1.442695
        %v1127 = vpow.pop %v1126
        %v1128 = vmul.f32 %v1090, 1.442695
        %v1129 = vpow.pop %v1128
        %v1130 = vmul.f32 %v1091, 1.442695
        %v1131 = vpow.pop %v1130
        %v1132 = vmul.f32 %v1092, 1.442695
        %v1133 = vpow.pop %v1132
        %v1134 = vmul.f32 %v1093, 1.442695
        %v1135 = vpow.pop %v1134
        %v1136 = vmul.f32 %v1094, 1.442695
        %v1137 = vpow.pop %v1136
        %v1138 = vmul.f32 %v1095, 1.442695
        %v1139 = vpow.pop %v1138
        %v1140 = vmul.f32 %v1096, 1.442695
        %v1141 = vpow.pop %v1140
        %v1142 = vmul.f32 %v1097, 1.442695
        %v1143 = vpow.pop %v1142
        %v1144 = vmul.f32 %v1098, 1.442695
        %v1145 = vpow.pop %v1144
        %v1146 = vmul.f32 %v1099, 1.442695
        %v1147 = vpow.pop %v1146
        %v1148 = vmul.f32 %v1100, 1.442695
        %v1149 = vpow.pop %v1148
        %v1150 = vmul.f32 %v1101, 1.442695
        %v1151 = vpow.pop %v1150
        %v1152 = vmul.f32 %v1102, 1.442695
        %v1153 = vpow.pop %v1152
        %v1154 = vmul.f32 %v1103, 1.442695
        %v1155 = vpow.pop %v1154
        %v1156 = vmul.f32 %v1104, 1.442695
        %v1157 = vpow.pop %v1156
        %v1158 = vmul.f32 %v1105, 1.442695
        %v1159 = vpow.pop %v1158
        %v1160 = vmul.f32 %v1106, 1.442695
        %v1161 = vpow.pop %v1160
        %v1162 = vmul.f32 %v1107, 1.442695
        %v1163 = vpow.pop %v1162
        %v1164 = vmul.f32 %v1108, 1.442695
        %v1165 = vpow.pop %v1164
        %v1166 = vmul.f32 %v1109, 1.442695
        %v1167 = vpow.pop %v1166
        %v1168 = vmul.f32 %v1110, 1.442695
        %v1169 = vpow.pop %v1168
        %v1170 = vmul.f32 %v1111, 1.442695
        %v1171 = vpow.pop %v1170
        %v1172 = vmul.f32 %v1112, 1.442695
        %v1173 = vpow.pop %v1172
        %v1174 = vmul.f32 %v1113, 1.442695
        %v1175 = vpow.pop %v1174
        %v1176 = vmul.f32 %v1114, 1.442695
        %v1177 = vpow.pop %v1176
        %v1178 = vmul.f32 %v1115, 1.442695
        %v1179 = vpow.pop %v1178
        %v1180 = vadd.f32 %v1117, 1.0
        %v1181 = vadd.f32 %v1119, 1.0
        %v1182 = vadd.f32 %v1121, 1.0
        %v1183 = vadd.f32 %v1123, 1.0
        %v1184 = vadd.f32 %v1125, 1.0
        %v1185 = vadd.f32 %v1127, 1.0
        %v1186 = vadd.f32 %v1129, 1.0
        %v1187 = vadd.f32 %v1131, 1.0
        %v1188 = vadd.f32 %v1133, 1.0
        %v1189 = vadd.f32 %v1135, 1.0
        %v1190 = vadd.f32 %v1137, 1.0
        %v1191 = vadd.f32 %v1139, 1.0
        %v1192 = vadd.f32 %v1141, 1.0
        %v1193 = vadd.f32 %v1143, 1.0
        %v1194 = vadd.f32 %v1145, 1.0
        %v1195 = vadd.f32 %v1147, 1.0
        %v1196 = vadd.f32 %v1149, 1.0
        %v1197 = vadd.f32 %v1151, 1.0
        %v1198 = vadd.f32 %v1153, 1.0
        %v1199 = vadd.f32 %v1155, 1.0
        %v1200 = vadd.f32 %v1157, 1.0
        %v1201 = vadd.f32 %v1159, 1.0
        %v1202 = vadd.f32 %v1161, 1.0
        %v1203 = vadd.f32 %v1163, 1.0
        %v1204 = vadd.f32 %v1165, 1.0
        %v1205 = vadd.f32 %v1167, 1.0
        %v1206 = vadd.f32 %v1169, 1.0
        %v1207 = vadd.f32 %v1171, 1.0
        %v1208 = vadd.f32 %v1173, 1.0
        %v1209 = vadd.f32 %v1175, 1.0
        %v1210 = vadd.f32 %v1177, 1.0
        %v1211 = vadd.f32 %v1179, 1.0
        %v1212 = vrcp.pop %v1180
        %v1213 = vmul.f32 1.0, %v1212
        %v1214 = vrcp.pop %v1181
        %v1215 = vmul.f32 1.0, %v1214
        %v1216 = vrcp.pop %v1182
        %v1217 = vmul.f32 1.0, %v1216
        %v1218 = vrcp.pop %v1183
        %v1219 = vmul.f32 1.0, %v1218
        %v1220 = vrcp.pop %v1184
        %v1221 = vmul.f32 1.0, %v1220
        %v1222 = vrcp.pop %v1185
        %v1223 = vmul.f32 1.0, %v1222
        %v1224 = vrcp.pop %v1186
        %v1225 = vmul.f32 1.0, %v1224
        %v1226 = vrcp.pop %v1187
        %v1227 = vmul.f32 1.0, %v1226
        %v1228 = vrcp.pop %v1188
        %v1229 = vmul.f32 1.0, %v1228
        %v1230 = vrcp.pop %v1189
        %v1231 = vmul.f32 1.0, %v1230
        %v1232 = vrcp.pop %v1190
        %v1233 = vmul.f32 1.0, %v1232
        %v1234 = vrcp.pop %v1191
        %v1235 = vmul.f32 1.0, %v1234
        %v1236 = vrcp.pop %v1192
        %v1237 = vmul.f32 1.0, %v1236
        %v1238 = vrcp.pop %v1193
        %v1239 = vmul.f32 1.0, %v1238
        %v1240 = vrcp.pop %v1194
        %v1241 = vmul.f32 1.0, %v1240
        %v1242 = vrcp.pop %v1195
        %v1243 = vmul.f32 1.0, %v1242
        %v1244 = vrcp.pop %v1196
        %v1245 = vmul.f32 1.0, %v1244
        %v1246 = vrcp.pop %v1197
        %v1247 = vmul.f32 1.0, %v1246
        %v1248 = vrcp.pop %v1198
        %v1249 = vmul.f32 1.0, %v1248
        %v1250 = vrcp.pop %v1199
        %v1251 = vmul.f32 1.0, %v1250
        %v1252 = vrcp.pop %v1200
        %v1253 = vmul.f32 1.0, %v1252
        %v1254 = vrcp.pop %v1201
        %v1255 = vmul.f32 1.0, %v1254
        %v1256 = vrcp.pop %v1202
        %v1257 = vmul.f32 1.0, %v1256
        %v1258 = vrcp.pop %v1203
        %v1259 = vmul.f32 1.0, %v1258
        %v1260 = vrcp.pop %v1204
        %v1261 = vmul.f32 1.0, %v1260
        %v1262 = vrcp.pop %v1205
        %v1263 = vmul.f32 1.0, %v1262
        %v1264 = vrcp.pop %v1206
        %v1265 = vmul.f32 1.0, %v1264
        %v1266 = vrcp.pop %v1207
        %v1267 = vmul.f32 1.0, %v1266
        %v1268 = vrcp.pop %v1208
        %v1269 = vmul.f32 1.0, %v1268
        %v1270 = vrcp.pop %v1209
        %v1271 = vmul.f32 1.0, %v1270
        %v1272 = vrcp.pop %v1210
        %v1273 = vmul.f32 1.0, %v1272
        %v1274 = vrcp.pop %v1211
        %v1275 = vmul.f32 1.0, %v1274
        %v1276 = vmul.f32 %v1052, %v1213
        %v1277 = vmul.f32 %v1053, %v1215
        %v1278 = vmul.f32 %v1054, %v1217
        %v1279 = vmul.f32 %v1055, %v1219
        %v1280 = vmul.f32 %v1056, %v1221
        %v1281 = vmul.f32 %v1057, %v1223
        %v1282 = vmul.f32 %v1058, %v1225
        %v1283 = vmul.f32 %v1059, %v1227
        %v1284 = vmul.f32 %v1060, %v1229
        %v1285 = vmul.f32 %v1061, %v1231
        %v1286 = vmul.f32 %v1062, %v1233
        %v1287 = vmul.f32 %v1063, %v1235
        %v1288 = vmul.f32 %v1064, %v1237
        %v1289 = vmul.f32 %v1065, %v1239
        %v1290 = vmul.f32 %v1066, %v1241
        %v1291 = vmul.f32 %v1067, %v1243
        %v1292 = vmul.f32 %v1068, %v1245
        %v1293 = vmul.f32 %v1069, %v1247
        %v1294 = vmul.f32 %v1070, %v1249
        %v1295 = vmul.f32 %v1071, %v1251
        %v1296 = vmul.f32 %v1072, %v1253
        %v1297 = vmul.f32 %v1073, %v1255
        %v1298 = vmul.f32 %v1074, %v1257
        %v1299 = vmul.f32 %v1075, %v1259
        %v1300 = vmul.f32 %v1076, %v1261
        %v1301 = vmul.f32 %v1077, %v1263
        %v1302 = vmul.f32 %v1078, %v1265
        %v1303 = vmul.f32 %v1079, %v1267
        %v1304 = vmul.f32 %v1080, %v1269
        %v1305 = vmul.f32 %v1081, %v1271
        %v1306 = vmul.f32 %v1082, %v1273
        %v1307 = vmul.f32 %v1083, %v1275
        %v1308 = vlaneseq
        %v1309 = vshrl.u32 %v1308, 7
        %v1310 = vadd.s32 %v1309, 8
        %v1311 = vadd.s32 %v1309, 16
        %v1312 = vadd.s32 %v1309, 24
        %v1313 = vadd.s32 %v1309, 32
        %v1314 = vadd.s32 %v1309, 40
        %v1315 = vadd.s32 %v1309, 48
        %v1316 = vadd.s32 %v1309, 56
        %v1317 = vadd.s32 %v1309, 64
        %v1318 = vadd.s32 %v1309, 72
        %v1319 = vadd.s32 %v1309, 80
        %v1320 = vadd.s32 %v1309, 88
        %v1321 = vadd.s32 %v1309, 96
        %v1322 = vadd.s32 %v1309, 104
        %v1323 = vadd.s32 %v1309, 112
        %v1324 = vadd.s32 %v1309, 120
        %v1325 = vadd.s32 %v1309, 128
        %v1326 = vadd.s32 %v1309, 136
        %v1327 = vadd.s32 %v1309, 144
        %v1328 = vadd.s32 %v1309, 152
        %v1329 = vadd.s32 %v1309, 160
        %v1330 = vadd.s32 %v1309, 168
        %v1331 = vadd.s32 %v1309, 176
        %v1332 = vadd.s32 %v1309, 184
        %v1333 = vadd.s32 %v1309, 192
        %v1334 = vadd.s32 %v1309, 200
        %v1335 = vadd.s32 %v1309, 208
        %v1336 = vadd.s32 %v1309, 216
        %v1337 = vadd.s32 %v1309, 224
        %v1338 = vadd.s32 %v1309, 232
        %v1339 = vadd.s32 %v1309, 240
        %v1340 = vadd.s32 %v1309, 248
        %vm1341 = vcmp.lt.s32.totalorder %v1309, 0
        %v1342 = vsub.s32 0, %v1309
        %v1343 = vsel %vm1341, %v1342, %v1309
        %v1344 = vshrl.u32 %v1343, 4
        %v1345 = vand.u32 %v1343, 15
        %v1346 = vsub.s32 0, %v1345
        %v1347 = vsel %vm1341, %v1346, %v1345
        %vm1348 = vcmp.lt.s32.totalorder %v1310, 0
        %v1349 = vsub.s32 0, %v1310
        %v1350 = vsel %vm1348, %v1349, %v1310
        %v1351 = vshrl.u32 %v1350, 4
        %v1352 = vand.u32 %v1350, 15
        %v1353 = vsub.s32 0, %v1352
        %v1354 = vsel %vm1348, %v1353, %v1352
        %vm1355 = vcmp.lt.s32.totalorder %v1311, 0
        %v1356 = vsub.s32 0, %v1311
        %v1357 = vsel %vm1355, %v1356, %v1311
        %v1358 = vshrl.u32 %v1357, 4
        %v1359 = vand.u32 %v1357, 15
        %v1360 = vsub.s32 0, %v1359
        %v1361 = vsel %vm1355, %v1360, %v1359
        %vm1362 = vcmp.lt.s32.totalorder %v1312, 0
        %v1363 = vsub.s32 0, %v1312
        %v1364 = vsel %vm1362, %v1363, %v1312
        %v1365 = vshrl.u32 %v1364, 4
        %v1366 = vand.u32 %v1364, 15
        %v1367 = vsub.s32 0, %v1366
        %v1368 = vsel %vm1362, %v1367, %v1366
        %vm1369 = vcmp.lt.s32.totalorder %v1313, 0
        %v1370 = vsub.s32 0, %v1313
        %v1371 = vsel %vm1369, %v1370, %v1313
        %v1372 = vshrl.u32 %v1371, 4
        %v1373 = vand.u32 %v1371, 15
        %v1374 = vsub.s32 0, %v1373
        %v1375 = vsel %vm1369, %v1374, %v1373
        %vm1376 = vcmp.lt.s32.totalorder %v1314, 0
        %v1377 = vsub.s32 0, %v1314
        %v1378 = vsel %vm1376, %v1377, %v1314
        %v1379 = vshrl.u32 %v1378, 4
        %v1380 = vand.u32 %v1378, 15
        %v1381 = vsub.s32 0, %v1380
        %v1382 = vsel %vm1376, %v1381, %v1380
        %vm1383 = vcmp.lt.s32.totalorder %v1315, 0
        %v1384 = vsub.s32 0, %v1315
        %v1385 = vsel %vm1383, %v1384, %v1315
        %v1386 = vshrl.u32 %v1385, 4
        %v1387 = vand.u32 %v1385, 15
        %v1388 = vsub.s32 0, %v1387
        %v1389 = vsel %vm1383, %v1388, %v1387
        %vm1390 = vcmp.lt.s32.totalorder %v1316, 0
        %v1391 = vsub.s32 0, %v1316
        %v1392 = vsel %vm1390, %v1391, %v1316
        %v1393 = vshrl.u32 %v1392, 4
        %v1394 = vand.u32 %v1392, 15
        %v1395 = vsub.s32 0, %v1394
        %v1396 = vsel %vm1390, %v1395, %v1394
        %vm1397 = vcmp.lt.s32.totalorder %v1317, 0
        %v1398 = vsub.s32 0, %v1317
        %v1399 = vsel %vm1397, %v1398, %v1317
        %v1400 = vshrl.u32 %v1399, 4
        %v1401 = vand.u32 %v1399, 15
        %v1402 = vsub.s32 0, %v1401
        %v1403 = vsel %vm1397, %v1402, %v1401
        %vm1404 = vcmp.lt.s32.totalorder %v1318, 0
        %v1405 = vsub.s32 0, %v1318
        %v1406 = vsel %vm1404, %v1405, %v1318
        %v1407 = vshrl.u32 %v1406, 4
        %v1408 = vand.u32 %v1406, 15
        %v1409 = vsub.s32 0, %v1408
        %v1410 = vsel %vm1404, %v1409, %v1408
        %vm1411 = vcmp.lt.s32.totalorder %v1319, 0
        %v1412 = vsub.s32 0, %v1319
        %v1413 = vsel %vm1411, %v1412, %v1319
        %v1414 = vshrl.u32 %v1413, 4
        %v1415 = vand.u32 %v1413, 15
        %v1416 = vsub.s32 0, %v1415
        %v1417 = vsel %vm1411, %v1416, %v1415
        %vm1418 = vcmp.lt.s32.totalorder %v1320, 0
        %v1419 = vsub.s32 0, %v1320
        %v1420 = vsel %vm1418, %v1419, %v1320
        %v1421 = vshrl.u32 %v1420, 4
        %v1422 = vand.u32 %v1420, 15
        %v1423 = vsub.s32 0, %v1422
        %v1424 = vsel %vm1418, %v1423, %v1422
        %vm1425 = vcmp.lt.s32.totalorder %v1321, 0
        %v1426 = vsub.s32 0, %v1321
        %v1427 = vsel %vm1425, %v1426, %v1321
        %v1428 = vshrl.u32 %v1427, 4
        %v1429 = vand.u32 %v1427, 15
        %v1430 = vsub.s32 0, %v1429
        %v1431 = vsel %vm1425, %v1430, %v1429
        %vm1432 = vcmp.lt.s32.totalorder %v1322, 0
        %v1433 = vsub.s32 0, %v1322
        %v1434 = vsel %vm1432, %v1433, %v1322
        %v1435 = vshrl.u32 %v1434, 4
        %v1436 = vand.u32 %v1434, 15
        %v1437 = vsub.s32 0, %v1436
        %v1438 = vsel %vm1432, %v1437, %v1436
        %vm1439 = vcmp.lt.s32.totalorder %v1323, 0
        %v1440 = vsub.s32 0, %v1323
        %v1441 = vsel %vm1439, %v1440, %v1323
        %v1442 = vshrl.u32 %v1441, 4
        %v1443 = vand.u32 %v1441, 15
        %v1444 = vsub.s32 0, %v1443
        %v1445 = vsel %vm1439, %v1444, %v1443
        %vm1446 = vcmp.lt.s32.totalorder %v1324, 0
        %v1447 = vsub.s32 0, %v1324
        %v1448 = vsel %vm1446, %v1447, %v1324
        %v1449 = vshrl.u32 %v1448, 4
        %v1450 = vand.u32 %v1448, 15
        %v1451 = vsub.s32 0, %v1450
        %v1452 = vsel %vm1446, %v1451, %v1450
        %vm1453 = vcmp.lt.s32.totalorder %v1325, 0
        %v1454 = vsub.s32 0, %v1325
        %v1455 = vsel %vm1453, %v1454, %v1325
        %v1456 = vshrl.u32 %v1455, 4
        %v1457 = vand.u32 %v1455, 15
        %v1458 = vsub.s32 0, %v1457
        %v1459 = vsel %vm1453, %v1458, %v1457
        %vm1460 = vcmp.lt.s32.totalorder %v1326, 0
        %v1461 = vsub.s32 0, %v1326
        %v1462 = vsel %vm1460, %v1461, %v1326
        %v1463 = vshrl.u32 %v1462, 4
        %v1464 = vand.u32 %v1462, 15
        %v1465 = vsub.s32 0, %v1464
        %v1466 = vsel %vm1460, %v1465, %v1464
        %vm1467 = vcmp.lt.s32.totalorder %v1327, 0
        %v1468 = vsub.s32 0, %v1327
        %v1469 = vsel %vm1467, %v1468, %v1327
        %v1470 = vshrl.u32 %v1469, 4
        %v1471 = vand.u32 %v1469, 15
        %v1472 = vsub.s32 0, %v1471
        %v1473 = vsel %vm1467, %v1472, %v1471
        %vm1474 = vcmp.lt.s32.totalorder %v1328, 0
        %v1475 = vsub.s32 0, %v1328
        %v1476 = vsel %vm1474, %v1475, %v1328
        %v1477 = vshrl.u32 %v1476, 4
        %v1478 = vand.u32 %v1476, 15
        %v1479 = vsub.s32 0, %v1478
        %v1480 = vsel %vm1474, %v1479, %v1478
        %vm1481 = vcmp.lt.s32.totalorder %v1329, 0
        %v1482 = vsub.s32 0, %v1329
        %v1483 = vsel %vm1481, %v1482, %v1329
        %v1484 = vshrl.u32 %v1483, 4
        %v1485 = vand.u32 %v1483, 15
        %v1486 = vsub.s32 0, %v1485
        %v1487 = vsel %vm1481, %v1486, %v1485
        %vm1488 = vcmp.lt.s32.totalorder %v1330, 0
        %v1489 = vsub.s32 0, %v1330
        %v1490 = vsel %vm1488, %v1489, %v1330
        %v1491 = vshrl.u32 %v1490, 4
        %v1492 = vand.u32 %v1490, 15
        %v1493 = vsub.s32 0, %v1492
        %v1494 = vsel %vm1488, %v1493, %v1492
        %vm1495 = vcmp.lt.s32.totalorder %v1331, 0
        %v1496 = vsub.s32 0, %v1331
        %v1497 = vsel %vm1495, %v1496, %v1331
        %v1498 = vshrl.u32 %v1497, 4
        %v1499 = vand.u32 %v1497, 15
        %v1500 = vsub.s32 0, %v1499
        %v1501 = vsel %vm1495, %v1500, %v1499
        %vm1502 = vcmp.lt.s32.totalorder %v1332, 0
        %v1503 = vsub.s32 0, %v1332
        %v1504 = vsel %vm1502, %v1503, %v1332
        %v1505 = vshrl.u32 %v1504, 4
        %v1506 = vand.u32 %v1504, 15
        %v1507 = vsub.s32 0, %v1506
        %v1508 = vsel %vm1502, %v1507, %v1506
        %vm1509 = vcmp.lt.s32.totalorder %v1333, 0
        %v1510 = vsub.s32 0, %v1333
        %v1511 = vsel %vm1509, %v1510, %v1333
        %v1512 = vshrl.u32 %v1511, 4
        %v1513 = vand.u32 %v1511, 15
        %v1514 = vsub.s32 0, %v1513
        %v1515 = vsel %vm1509, %v1514, %v1513
        %vm1516 = vcmp.lt.s32.totalorder %v1334, 0
        %v1517 = vsub.s32 0, %v1334
        %v1518 = vsel %vm1516, %v1517, %v1334
        %v1519 = vshrl.u32 %v1518, 4
        %v1520 = vand.u32 %v1518, 15
        %v1521 = vsub.s32 0, %v1520
        %v1522 = vsel %vm1516, %v1521, %v1520
        %vm1523 = vcmp.lt.s32.totalorder %v1335, 0
        %v1524 = vsub.s32 0, %v1335
        %v1525 = vsel %vm1523, %v1524, %v1335
        %v1526 = vshrl.u32 %v1525, 4
        %v1527 = vand.u32 %v1525, 15
        %v1528 = vsub.s32 0, %v1527
        %v1529 = vsel %vm1523, %v1528, %v1527
        %vm1530 = vcmp.lt.s32.totalorder %v1336, 0
        %v1531 = vsub.s32 0, %v1336
        %v1532 = vsel %vm1530, %v1531, %v1336
        %v1533 = vshrl.u32 %v1532, 4
        %v1534 = vand.u32 %v1532, 15
        %v1535 = vsub.s32 0, %v1534
        %v1536 = vsel %vm1530, %v1535, %v1534
        %vm1537 = vcmp.lt.s32.totalorder %v1337, 0
        %v1538 = vsub.s32 0, %v1337
        %v1539 = vsel %vm1537, %v1538, %v1337
        %v1540 = vshrl.u32 %v1539, 4
        %v1541 = vand.u32 %v1539, 15
        %v1542 = vsub.s32 0, %v1541
        %v1543 = vsel %vm1537, %v1542, %v1541
        %vm1544 = vcmp.lt.s32.totalorder %v1338, 0
        %v1545 = vsub.s32 0, %v1338
        %v1546 = vsel %vm1544, %v1545, %v1338
        %v1547 = vshrl.u32 %v1546, 4
        %v1548 = vand.u32 %v1546, 15
        %v1549 = vsub.s32 0, %v1548
        %v1550 = vsel %vm1544, %v1549, %v1548
        %vm1551 = vcmp.lt.s32.totalorder %v1339, 0
        %v1552 = vsub.s32 0, %v1339
        %v1553 = vsel %vm1551, %v1552, %v1339
        %v1554 = vshrl.u32 %v1553, 4
        %v1555 = vand.u32 %v1553, 15
        %v1556 = vsub.s32 0, %v1555
        %v1557 = vsel %vm1551, %v1556, %v1555
        %vm1558 = vcmp.lt.s32.totalorder %v1340, 0
        %v1559 = vsub.s32 0, %v1340
        %v1560 = vsel %vm1558, %v1559, %v1340
        %v1561 = vshrl.u32 %v1560, 4
        %v1562 = vand.u32 %v1560, 15
        %v1563 = vsub.s32 0, %v1562
        %v1564 = vsel %vm1558, %v1563, %v1562
        %vm1565 = vcmp.ne.s32.totalorder %v1347, 0
        %vm1566 = vcmp.ne.s32.totalorder %v1354, 0
        %vm1567 = vcmp.ne.s32.totalorder %v1361, 0
        %vm1568 = vcmp.ne.s32.totalorder %v1368, 0
        %vm1569 = vcmp.ne.s32.totalorder %v1375, 0
        %vm1570 = vcmp.ne.s32.totalorder %v1382, 0
        %vm1571 = vcmp.ne.s32.totalorder %v1389, 0
        %vm1572 = vcmp.ne.s32.totalorder %v1396, 0
        %vm1573 = vcmp.ne.s32.totalorder %v1403, 0
        %vm1574 = vcmp.ne.s32.totalorder %v1410, 0
        %vm1575 = vcmp.ne.s32.totalorder %v1417, 0
        %vm1576 = vcmp.ne.s32.totalorder %v1424, 0
        %vm1577 = vcmp.ne.s32.totalorder %v1431, 0
        %vm1578 = vcmp.ne.s32.totalorder %v1438, 0
        %vm1579 = vcmp.ne.s32.totalorder %v1445, 0
        %vm1580 = vcmp.ne.s32.totalorder %v1452, 0
        %vm1581 = vcmp.ne.s32.totalorder %v1459, 0
        %vm1582 = vcmp.ne.s32.totalorder %v1466, 0
        %vm1583 = vcmp.ne.s32.totalorder %v1473, 0
        %vm1584 = vcmp.ne.s32.totalorder %v1480, 0
        %vm1585 = vcmp.ne.s32.totalorder %v1487, 0
        %vm1586 = vcmp.ne.s32.totalorder %v1494, 0
        %vm1587 = vcmp.ne.s32.totalorder %v1501, 0
        %vm1588 = vcmp.ne.s32.totalorder %v1508, 0
        %vm1589 = vcmp.ne.s32.totalorder %v1515, 0
        %vm1590 = vcmp.ne.s32.totalorder %v1522, 0
        %vm1591 = vcmp.ne.s32.totalorder %v1529, 0
        %vm1592 = vcmp.ne.s32.totalorder %v1536, 0
        %vm1593 = vcmp.ne.s32.totalorder %v1543, 0
        %vm1594 = vcmp.ne.s32.totalorder %v1550, 0
        %vm1595 = vcmp.ne.s32.totalorder %v1557, 0
        %vm1596 = vcmp.ne.s32.totalorder %v1564, 0
        %vm1597 = vcmp.lt.s32.totalorder %v1347, 0
        %vm1598 = vcmp.lt.s32.totalorder %v1354, 0
        %vm1599 = vcmp.lt.s32.totalorder %v1361, 0
        %vm1600 = vcmp.lt.s32.totalorder %v1368, 0
        %vm1601 = vcmp.lt.s32.totalorder %v1375, 0
        %vm1602 = vcmp.lt.s32.totalorder %v1382, 0
        %vm1603 = vcmp.lt.s32.totalorder %v1389, 0
        %vm1604 = vcmp.lt.s32.totalorder %v1396, 0
        %vm1605 = vcmp.lt.s32.totalorder %v1403, 0
        %vm1606 = vcmp.lt.s32.totalorder %v1410, 0
        %vm1607 = vcmp.lt.s32.totalorder %v1417, 0
        %vm1608 = vcmp.lt.s32.totalorder %v1424, 0
        %vm1609 = vcmp.lt.s32.totalorder %v1431, 0
        %vm1610 = vcmp.lt.s32.totalorder %v1438, 0
        %vm1611 = vcmp.lt.s32.totalorder %v1445, 0
        %vm1612 = vcmp.lt.s32.totalorder %v1452, 0
        %vm1613 = vcmp.lt.s32.totalorder %v1459, 0
        %vm1614 = vcmp.lt.s32.totalorder %v1466, 0
        %vm1615 = vcmp.lt.s32.totalorder %v1473, 0
        %vm1616 = vcmp.lt.s32.totalorder %v1480, 0
        %vm1617 = vcmp.lt.s32.totalorder %v1487, 0
        %vm1618 = vcmp.lt.s32.totalorder %v1494, 0
        %vm1619 = vcmp.lt.s32.totalorder %v1501, 0
        %vm1620 = vcmp.lt.s32.totalorder %v1508, 0
        %vm1621 = vcmp.lt.s32.totalorder %v1515, 0
        %vm1622 = vcmp.lt.s32.totalorder %v1522, 0
        %vm1623 = vcmp.lt.s32.totalorder %v1529, 0
        %vm1624 = vcmp.lt.s32.totalorder %v1536, 0
        %vm1625 = vcmp.lt.s32.totalorder %v1543, 0
        %vm1626 = vcmp.lt.s32.totalorder %v1550, 0
        %vm1627 = vcmp.lt.s32.totalorder %v1557, 0
        %vm1628 = vcmp.lt.s32.totalorder %v1564, 0
        %vm1629 = vmand %vm1597, %vm1565
        %vm1630 = vmand %vm1598, %vm1566
        %vm1631 = vmand %vm1599, %vm1567
        %vm1632 = vmand %vm1600, %vm1568
        %vm1633 = vmand %vm1601, %vm1569
        %vm1634 = vmand %vm1602, %vm1570
        %vm1635 = vmand %vm1603, %vm1571
        %vm1636 = vmand %vm1604, %vm1572
        %vm1637 = vmand %vm1605, %vm1573
        %vm1638 = vmand %vm1606, %vm1574
        %vm1639 = vmand %vm1607, %vm1575
        %vm1640 = vmand %vm1608, %vm1576
        %vm1641 = vmand %vm1609, %vm1577
        %vm1642 = vmand %vm1610, %vm1578
        %vm1643 = vmand %vm1611, %vm1579
        %vm1644 = vmand %vm1612, %vm1580
        %vm1645 = vmand %vm1613, %vm1581
        %vm1646 = vmand %vm1614, %vm1582
        %vm1647 = vmand %vm1615, %vm1583
        %vm1648 = vmand %vm1616, %vm1584
        %vm1649 = vmand %vm1617, %vm1585
        %vm1650 = vmand %vm1618, %vm1586
        %vm1651 = vmand %vm1619, %vm1587
        %vm1652 = vmand %vm1620, %vm1588
        %vm1653 = vmand %vm1621, %vm1589
        %vm1654 = vmand %vm1622, %vm1590
        %vm1655 = vmand %vm1623, %vm1591
        %vm1656 = vmand %vm1624, %vm1592
        %vm1657 = vmand %vm1625, %vm1593
        %vm1658 = vmand %vm1626, %vm1594
        %vm1659 = vmand %vm1627, %vm1595
        %vm1660 = vmand %vm1628, %vm1596
        %v1661 = vadd.s32 %v1347, 16
        %v1662 = vadd.s32 %v1354, 16
        %v1663 = vadd.s32 %v1361, 16
        %v1664 = vadd.s32 %v1368, 16
        %v1665 = vadd.s32 %v1375, 16
        %v1666 = vadd.s32 %v1382, 16
        %v1667 = vadd.s32 %v1389, 16
        %v1668 = vadd.s32 %v1396, 16
        %v1669 = vadd.s32 %v1403, 16
        %v1670 = vadd.s32 %v1410, 16
        %v1671 = vadd.s32 %v1417, 16
        %v1672 = vadd.s32 %v1424, 16
        %v1673 = vadd.s32 %v1431, 16
        %v1674 = vadd.s32 %v1438, 16
        %v1675 = vadd.s32 %v1445, 16
        %v1676 = vadd.s32 %v1452, 16
        %v1677 = vadd.s32 %v1459, 16
        %v1678 = vadd.s32 %v1466, 16
        %v1679 = vadd.s32 %v1473, 16
        %v1680 = vadd.s32 %v1480, 16
        %v1681 = vadd.s32 %v1487, 16
        %v1682 = vadd.s32 %v1494, 16
        %v1683 = vadd.s32 %v1501, 16
        %v1684 = vadd.s32 %v1508, 16
        %v1685 = vadd.s32 %v1515, 16
        %v1686 = vadd.s32 %v1522, 16
        %v1687 = vadd.s32 %v1529, 16
        %v1688 = vadd.s32 %v1536, 16
        %v1689 = vadd.s32 %v1543, 16
        %v1690 = vadd.s32 %v1550, 16
        %v1691 = vadd.s32 %v1557, 16
        %v1692 = vadd.s32 %v1564, 16
        %v1693 = vsel %vm1629, %v1661, %v1347
        %v1694 = vsel %vm1630, %v1662, %v1354
        %v1695 = vsel %vm1631, %v1663, %v1361
        %v1696 = vsel %vm1632, %v1664, %v1368
        %v1697 = vsel %vm1633, %v1665, %v1375
        %v1698 = vsel %vm1634, %v1666, %v1382
        %v1699 = vsel %vm1635, %v1667, %v1389
        %v1700 = vsel %vm1636, %v1668, %v1396
        %v1701 = vsel %vm1637, %v1669, %v1403
        %v1702 = vsel %vm1638, %v1670, %v1410
        %v1703 = vsel %vm1639, %v1671, %v1417
        %v1704 = vsel %vm1640, %v1672, %v1424
        %v1705 = vsel %vm1641, %v1673, %v1431
        %v1706 = vsel %vm1642, %v1674, %v1438
        %v1707 = vsel %vm1643, %v1675, %v1445
        %v1708 = vsel %vm1644, %v1676, %v1452
        %v1709 = vsel %vm1645, %v1677, %v1459
        %v1710 = vsel %vm1646, %v1678, %v1466
        %v1711 = vsel %vm1647, %v1679, %v1473
        %v1712 = vsel %vm1648, %v1680, %v1480
        %v1713 = vsel %vm1649, %v1681, %v1487
        %v1714 = vsel %vm1650, %v1682, %v1494
        %v1715 = vsel %vm1651, %v1683, %v1501
        %v1716 = vsel %vm1652, %v1684, %v1508
        %v1717 = vsel %vm1653, %v1685, %v1515
        %v1718 = vsel %vm1654, %v1686, %v1522
        %v1719 = vsel %vm1655, %v1687, %v1529
        %v1720 = vsel %vm1656, %v1688, %v1536
        %v1721 = vsel %vm1657, %v1689, %v1543
        %v1722 = vsel %vm1658, %v1690, %v1550
        %v1723 = vsel %vm1659, %v1691, %v1557
        %v1724 = vsel %vm1660, %v1692, %v1564
        %vm1725 = vcmp.ge.s32.totalorder %v1693, 1
        %vm1726 = vcmp.ge.s32.totalorder %v1694, 1
        %vm1727 = vcmp.ge.s32.totalorder %v1695, 1
        %vm1728 = vcmp.ge.s32.totalorder %v1696, 1
        %vm1729 = vcmp.ge.s32.totalorder %v1697, 1
        %vm1730 = vcmp.ge.s32.totalorder %v1698, 1
        %vm1731 = vcmp.ge.s32.totalorder %v1699, 1
        %vm1732 = vcmp.ge.s32.totalorder %v1700, 1
        %vm1733 = vcmp.ge.s32.totalorder %v1701, 1
        %vm1734 = vcmp.ge.s32.totalorder %v1702, 1
        %vm1735 = vcmp.ge.s32.totalorder %v1703, 1
        %vm1736 = vcmp.ge.s32.totalorder %v1704, 1
        %vm1737 = vcmp.ge.s32.totalorder %v1705, 1
        %vm1738 = vcmp.ge.s32.totalorder %v1706, 1
        %vm1739 = vcmp.ge.s32.totalorder %v1707, 1
        %vm1740 = vcmp.ge.s32.totalorder %v1708, 1
        %vm1741 = vcmp.ge.s32.totalorder %v1709, 1
        %vm1742 = vcmp.ge.s32.totalorder %v1710, 1
        %vm1743 = vcmp.ge.s32.totalorder %v1711, 1
        %vm1744 = vcmp.ge.s32.totalorder %v1712, 1
        %vm1745 = vcmp.ge.s32.totalorder %v1713, 1
        %vm1746 = vcmp.ge.s32.totalorder %v1714, 1
        %vm1747 = vcmp.ge.s32.totalorder %v1715, 1
        %vm1748 = vcmp.ge.s32.totalorder %v1716, 1
        %vm1749 = vcmp.ge.s32.totalorder %v1717, 1
        %vm1750 = vcmp.ge.s32.totalorder %v1718, 1
        %vm1751 = vcmp.ge.s32.totalorder %v1719, 1
        %vm1752 = vcmp.ge.s32.totalorder %v1720, 1
        %vm1753 = vcmp.ge.s32.totalorder %v1721, 1
        %vm1754 = vcmp.ge.s32.totalorder %v1722, 1
        %vm1755 = vcmp.ge.s32.totalorder %v1723, 1
        %vm1756 = vcmp.ge.s32.totalorder %v1724, 1
        %v1757 = vsel %vm1725, 1, 0
        %v1758 = vsel %vm1726, 1, 0
        %v1759 = vsel %vm1727, 1, 0
        %v1760 = vsel %vm1728, 1, 0
        %v1761 = vsel %vm1729, 1, 0
        %v1762 = vsel %vm1730, 1, 0
        %v1763 = vsel %vm1731, 1, 0
        %v1764 = vsel %vm1732, 1, 0
        %v1765 = vsel %vm1733, 1, 0
        %v1766 = vsel %vm1734, 1, 0
        %v1767 = vsel %vm1735, 1, 0
        %v1768 = vsel %vm1736, 1, 0
        %v1769 = vsel %vm1737, 1, 0
        %v1770 = vsel %vm1738, 1, 0
        %v1771 = vsel %vm1739, 1, 0
        %v1772 = vsel %vm1740, 1, 0
        %v1773 = vsel %vm1741, 1, 0
        %v1774 = vsel %vm1742, 1, 0
        %v1775 = vsel %vm1743, 1, 0
        %v1776 = vsel %vm1744, 1, 0
        %v1777 = vsel %vm1745, 1, 0
        %v1778 = vsel %vm1746, 1, 0
        %v1779 = vsel %vm1747, 1, 0
        %v1780 = vsel %vm1748, 1, 0
        %v1781 = vsel %vm1749, 1, 0
        %v1782 = vsel %vm1750, 1, 0
        %v1783 = vsel %vm1751, 1, 0
        %v1784 = vsel %vm1752, 1, 0
        %v1785 = vsel %vm1753, 1, 0
        %v1786 = vsel %vm1754, 1, 0
        %v1787 = vsel %vm1755, 1, 0
        %v1788 = vsel %vm1756, 1, 0
        %vm1789 = vcmp.eq.s32.totalorder %v1757, 1
        %vm1790 = vcmp.eq.s32.totalorder %v1758, 1
        %vm1791 = vcmp.eq.s32.totalorder %v1759, 1
        %vm1792 = vcmp.eq.s32.totalorder %v1760, 1
        %vm1793 = vcmp.eq.s32.totalorder %v1761, 1
        %vm1794 = vcmp.eq.s32.totalorder %v1762, 1
        %vm1795 = vcmp.eq.s32.totalorder %v1763, 1
        %vm1796 = vcmp.eq.s32.totalorder %v1764, 1
        %vm1797 = vcmp.eq.s32.totalorder %v1765, 1
        %vm1798 = vcmp.eq.s32.totalorder %v1766, 1
        %vm1799 = vcmp.eq.s32.totalorder %v1767, 1
        %vm1800 = vcmp.eq.s32.totalorder %v1768, 1
        %vm1801 = vcmp.eq.s32.totalorder %v1769, 1
        %vm1802 = vcmp.eq.s32.totalorder %v1770, 1
        %vm1803 = vcmp.eq.s32.totalorder %v1771, 1
        %vm1804 = vcmp.eq.s32.totalorder %v1772, 1
        %vm1805 = vcmp.eq.s32.totalorder %v1773, 1
        %vm1806 = vcmp.eq.s32.totalorder %v1774, 1
        %vm1807 = vcmp.eq.s32.totalorder %v1775, 1
        %vm1808 = vcmp.eq.s32.totalorder %v1776, 1
        %vm1809 = vcmp.eq.s32.totalorder %v1777, 1
        %vm1810 = vcmp.eq.s32.totalorder %v1778, 1
        %vm1811 = vcmp.eq.s32.totalorder %v1779, 1
        %vm1812 = vcmp.eq.s32.totalorder %v1780, 1
        %vm1813 = vcmp.eq.s32.totalorder %v1781, 1
        %vm1814 = vcmp.eq.s32.totalorder %v1782, 1
        %vm1815 = vcmp.eq.s32.totalorder %v1783, 1
        %vm1816 = vcmp.eq.s32.totalorder %v1784, 1
        %vm1817 = vcmp.eq.s32.totalorder %v1785, 1
        %vm1818 = vcmp.eq.s32.totalorder %v1786, 1
        %vm1819 = vcmp.eq.s32.totalorder %v1787, 1
        %vm1820 = vcmp.eq.s32.totalorder %v1788, 1
        %vm1852 = vcmask 1040384
        %v1853 = vrot.slane 0.0, 7
        %v1854 = vsel %vm1852, %v1853, %v1853
        %v1855 = vrot.slane %v1276, 7
        %v1856 = vsel %vm1852, %v1853, %v1855
        %v1857 = vrot.slane %v1277, 7
        %v1858 = vsel %vm1852, %v1855, %v1857
        %v1859 = vrot.slane %v1278, 7
        %v1860 = vsel %vm1852, %v1857, %v1859
        %v1861 = vrot.slane %v1279, 7
        %v1862 = vsel %vm1852, %v1859, %v1861
        %v1863 = vrot.slane %v1280, 7
        %v1864 = vsel %vm1852, %v1861, %v1863
        %v1865 = vrot.slane %v1281, 7
        %v1866 = vsel %vm1852, %v1863, %v1865
        %v1867 = vrot.slane %v1282, 7
        %v1868 = vsel %vm1852, %v1865, %v1867
        %v1869 = vrot.slane %v1283, 7
        %v1870 = vsel %vm1852, %v1867, %v1869
        %v1871 = vrot.slane %v1284, 7
        %v1872 = vsel %vm1852, %v1869, %v1871
        %v1873 = vrot.slane %v1285, 7
        %v1874 = vsel %vm1852, %v1871, %v1873
        %v1875 = vrot.slane %v1286, 7
        %v1876 = vsel %vm1852, %v1873, %v1875
        %v1877 = vrot.slane %v1287, 7
        %v1878 = vsel %vm1852, %v1875, %v1877
        %v1879 = vrot.slane %v1288, 7
        %v1880 = vsel %vm1852, %v1877, %v1879
        %v1881 = vrot.slane %v1289, 7
        %v1882 = vsel %vm1852, %v1879, %v1881
        %v1883 = vrot.slane %v1290, 7
        %v1884 = vsel %vm1852, %v1881, %v1883
        %v1885 = vrot.slane %v1291, 7
        %v1886 = vsel %vm1852, %v1883, %v1885
        %v1887 = vrot.slane %v1292, 7
        %v1888 = vsel %vm1852, %v1885, %v1887
        %v1889 = vrot.slane %v1293, 7
        %v1890 = vsel %vm1852, %v1887, %v1889
        %v1891 = vrot.slane %v1294, 7
        %v1892 = vsel %vm1852, %v1889, %v1891
        %v1893 = vrot.slane %v1295, 7
        %v1894 = vsel %vm1852, %v1891, %v1893
        %v1895 = vrot.slane %v1296, 7
        %v1896 = vsel %vm1852, %v1893, %v1895
        %v1897 = vrot.slane %v1297, 7
        %v1898 = vsel %vm1852, %v1895, %v1897
        %v1899 = vrot.slane %v1298, 7
        %v1900 = vsel %vm1852, %v1897, %v1899
        %v1901 = vrot.slane %v1299, 7
        %v1902 = vsel %vm1852, %v1899, %v1901
        %v1903 = vrot.slane %v1300, 7
        %v1904 = vsel %vm1852, %v1901, %v1903
        %v1905 = vrot.slane %v1301, 7
        %v1906 = vsel %vm1852, %v1903, %v1905
        %v1907 = vrot.slane %v1302, 7
        %v1908 = vsel %vm1852, %v1905, %v1907
        %v1909 = vrot.slane %v1303, 7
        %v1910 = vsel %vm1852, %v1907, %v1909
        %v1911 = vrot.slane %v1304, 7
        %v1912 = vsel %vm1852, %v1909, %v1911
        %v1913 = vrot.slane %v1305, 7
        %v1914 = vsel %vm1852, %v1911, %v1913
        %v1946 = vsel %vm1789, %v1854, 0.0
        %v1947 = vsel %vm1790, %v1854, 0.0
        %v1948 = vsel %vm1791, %v1856, 0.0
        %v1949 = vsel %vm1792, %v1858, 0.0
        %v1950 = vsel %vm1793, %v1860, 0.0
        %v1951 = vsel %vm1794, %v1862, 0.0
        %v1952 = vsel %vm1795, %v1864, 0.0
        %v1953 = vsel %vm1796, %v1866, 0.0
        %v1954 = vsel %vm1797, %v1868, 0.0
        %v1955 = vsel %vm1798, %v1870, 0.0
        %v1956 = vsel %vm1799, %v1872, 0.0
        %v1957 = vsel %vm1800, %v1874, 0.0
        %v1958 = vsel %vm1801, %v1876, 0.0
        %v1959 = vsel %vm1802, %v1878, 0.0
        %v1960 = vsel %vm1803, %v1880, 0.0
        %v1961 = vsel %vm1804, %v1882, 0.0
        %v1962 = vsel %vm1805, %v1884, 0.0
        %v1963 = vsel %vm1806, %v1886, 0.0
        %v1964 = vsel %vm1807, %v1888, 0.0
        %v1965 = vsel %vm1808, %v1890, 0.0
        %v1966 = vsel %vm1809, %v1892, 0.0
        %v1967 = vsel %vm1810, %v1894, 0.0
        %v1968 = vsel %vm1811, %v1896, 0.0
        %v1969 = vsel %vm1812, %v1898, 0.0
        %v1970 = vsel %vm1813, %v1900, 0.0
        %v1971 = vsel %vm1814, %v1902, 0.0
        %v1972 = vsel %vm1815, %v1904, 0.0
        %v1973 = vsel %vm1816, %v1906, 0.0
        %v1974 = vsel %vm1817, %v1908, 0.0
        %v1975 = vsel %vm1818, %v1910, 0.0
        %v1976 = vsel %vm1819, %v1912, 0.0
        %v1977 = vsel %vm1820, %v1914, 0.0
        %vm1978 = vcmp.le.s32.totalorder %v1693, 14
        %vm1979 = vcmp.le.s32.totalorder %v1694, 14
        %vm1980 = vcmp.le.s32.totalorder %v1695, 14
        %vm1981 = vcmp.le.s32.totalorder %v1696, 14
        %vm1982 = vcmp.le.s32.totalorder %v1697, 14
        %vm1983 = vcmp.le.s32.totalorder %v1698, 14
        %vm1984 = vcmp.le.s32.totalorder %v1699, 14
        %vm1985 = vcmp.le.s32.totalorder %v1700, 14
        %vm1986 = vcmp.le.s32.totalorder %v1701, 14
        %vm1987 = vcmp.le.s32.totalorder %v1702, 14
        %vm1988 = vcmp.le.s32.totalorder %v1703, 14
        %vm1989 = vcmp.le.s32.totalorder %v1704, 14
        %vm1990 = vcmp.le.s32.totalorder %v1705, 14
        %vm1991 = vcmp.le.s32.totalorder %v1706, 14
        %vm1992 = vcmp.le.s32.totalorder %v1707, 14
        %vm1993 = vcmp.le.s32.totalorder %v1708, 14
        %vm1994 = vcmp.le.s32.totalorder %v1709, 14
        %vm1995 = vcmp.le.s32.totalorder %v1710, 14
        %vm1996 = vcmp.le.s32.totalorder %v1711, 14
        %vm1997 = vcmp.le.s32.totalorder %v1712, 14
        %vm1998 = vcmp.le.s32.totalorder %v1713, 14
        %vm1999 = vcmp.le.s32.totalorder %v1714, 14
        %vm2000 = vcmp.le.s32.totalorder %v1715, 14
        %vm2001 = vcmp.le.s32.totalorder %v1716, 14
        %vm2002 = vcmp.le.s32.totalorder %v1717, 14
        %vm2003 = vcmp.le.s32.totalorder %v1718, 14
        %vm2004 = vcmp.le.s32.totalorder %v1719, 14
        %vm2005 = vcmp.le.s32.totalorder %v1720, 14
        %vm2006 = vcmp.le.s32.totalorder %v1721, 14
        %vm2007 = vcmp.le.s32.totalorder %v1722, 14
        %vm2008 = vcmp.le.s32.totalorder %v1723, 14
        %vm2009 = vcmp.le.s32.totalorder %v1724, 14
        %v2010 = vsel %vm1978, 1, 0
        %v2011 = vsel %vm1979, 1, 0
        %v2012 = vsel %vm1980, 1, 0
        %v2013 = vsel %vm1981, 1, 0
        %v2014 = vsel %vm1982, 1, 0
        %v2015 = vsel %vm1983, 1, 0
        %v2016 = vsel %vm1984, 1, 0
        %v2017 = vsel %vm1985, 1, 0
        %v2018 = vsel %vm1986, 1, 0
        %v2019 = vsel %vm1987, 1, 0
        %v2020 = vsel %vm1988, 1, 0
        %v2021 = vsel %vm1989, 1, 0
        %v2022 = vsel %vm1990, 1, 0
        %v2023 = vsel %vm1991, 1, 0
        %v2024 = vsel %vm1992, 1, 0
        %v2025 = vsel %vm1993, 1, 0
        %v2026 = vsel %vm1994, 1, 0
        %v2027 = vsel %vm1995, 1, 0
        %v2028 = vsel %vm1996, 1, 0
        %v2029 = vsel %vm1997, 1, 0
        %v2030 = vsel %vm1998, 1, 0
        %v2031 = vsel %vm1999, 1, 0
        %v2032 = vsel %vm2000, 1, 0
        %v2033 = vsel %vm2001, 1, 0
        %v2034 = vsel %vm2002, 1, 0
        %v2035 = vsel %vm2003, 1, 0
        %v2036 = vsel %vm2004, 1, 0
        %v2037 = vsel %vm2005, 1, 0
        %v2038 = vsel %vm2006, 1, 0
        %v2039 = vsel %vm2007, 1, 0
        %v2040 = vsel %vm2008, 1, 0
        %v2041 = vsel %vm2009, 1, 0
        %vm2042 = vcmp.eq.s32.totalorder %v2010, 1
        %vm2043 = vcmp.eq.s32.totalorder %v2011, 1
        %vm2044 = vcmp.eq.s32.totalorder %v2012, 1
        %vm2045 = vcmp.eq.s32.totalorder %v2013, 1
        %vm2046 = vcmp.eq.s32.totalorder %v2014, 1
        %vm2047 = vcmp.eq.s32.totalorder %v2015, 1
        %vm2048 = vcmp.eq.s32.totalorder %v2016, 1
        %vm2049 = vcmp.eq.s32.totalorder %v2017, 1
        %vm2050 = vcmp.eq.s32.totalorder %v2018, 1
        %vm2051 = vcmp.eq.s32.totalorder %v2019, 1
        %vm2052 = vcmp.eq.s32.totalorder %v2020, 1
        %vm2053 = vcmp.eq.s32.totalorder %v2021, 1
        %vm2054 = vcmp.eq.s32.totalorder %v2022, 1
        %vm2055 = vcmp.eq.s32.totalorder %v2023, 1
        %vm2056 = vcmp.eq.s32.totalorder %v2024, 1
        %vm2057 = vcmp.eq.s32.totalorder %v2025, 1
        %vm2058 = vcmp.eq.s32.totalorder %v2026, 1
        %vm2059 = vcmp.eq.s32.totalorder %v2027, 1
        %vm2060 = vcmp.eq.s32.totalorder %v2028, 1
        %vm2061 = vcmp.eq.s32.totalorder %v2029, 1
        %vm2062 = vcmp.eq.s32.totalorder %v2030, 1
        %vm2063 = vcmp.eq.s32.totalorder %v2031, 1
        %vm2064 = vcmp.eq.s32.totalorder %v2032, 1
        %vm2065 = vcmp.eq.s32.totalorder %v2033, 1
        %vm2066 = vcmp.eq.s32.totalorder %v2034, 1
        %vm2067 = vcmp.eq.s32.totalorder %v2035, 1
        %vm2068 = vcmp.eq.s32.totalorder %v2036, 1
        %vm2069 = vcmp.eq.s32.totalorder %v2037, 1
        %vm2070 = vcmp.eq.s32.totalorder %v2038, 1
        %vm2071 = vcmp.eq.s32.totalorder %v2039, 1
        %vm2072 = vcmp.eq.s32.totalorder %v2040, 1
        %vm2073 = vcmp.eq.s32.totalorder %v2041, 1
        %vm2075 = vcmask 1046528
        %v2076 = vrot.slane 0.0, 1
        %v2077 = vsel %vm2075, %v2076, %v2076
        %v2078 = vrot.slane %v1276, 1
        %v2079 = vsel %vm2075, %v2076, %v2078
        %v2080 = vrot.slane %v1277, 1
        %v2081 = vsel %vm2075, %v2078, %v2080
        %v2082 = vrot.slane %v1278, 1
        %v2083 = vsel %vm2075, %v2080, %v2082
        %v2084 = vrot.slane %v1279, 1
        %v2085 = vsel %vm2075, %v2082, %v2084
        %v2086 = vrot.slane %v1280, 1
        %v2087 = vsel %vm2075, %v2084, %v2086
        %v2088 = vrot.slane %v1281, 1
        %v2089 = vsel %vm2075, %v2086, %v2088
        %v2090 = vrot.slane %v1282, 1
        %v2091 = vsel %vm2075, %v2088, %v2090
        %v2092 = vrot.slane %v1283, 1
        %v2093 = vsel %vm2075, %v2090, %v2092
        %v2094 = vrot.slane %v1284, 1
        %v2095 = vsel %vm2075, %v2092, %v2094
        %v2096 = vrot.slane %v1285, 1
        %v2097 = vsel %vm2075, %v2094, %v2096
        %v2098 = vrot.slane %v1286, 1
        %v2099 = vsel %vm2075, %v2096, %v2098
        %v2100 = vrot.slane %v1287, 1
        %v2101 = vsel %vm2075, %v2098, %v2100
        %v2102 = vrot.slane %v1288, 1
        %v2103 = vsel %vm2075, %v2100, %v2102
        %v2104 = vrot.slane %v1289, 1
        %v2105 = vsel %vm2075, %v2102, %v2104
        %v2106 = vrot.slane %v1290, 1
        %v2107 = vsel %vm2075, %v2104, %v2106
        %v2108 = vrot.slane %v1291, 1
        %v2109 = vsel %vm2075, %v2106, %v2108
        %v2110 = vrot.slane %v1292, 1
        %v2111 = vsel %vm2075, %v2108, %v2110
        %v2112 = vrot.slane %v1293, 1
        %v2113 = vsel %vm2075, %v2110, %v2112
        %v2114 = vrot.slane %v1294, 1
        %v2115 = vsel %vm2075, %v2112, %v2114
        %v2116 = vrot.slane %v1295, 1
        %v2117 = vsel %vm2075, %v2114, %v2116
        %v2118 = vrot.slane %v1296, 1
        %v2119 = vsel %vm2075, %v2116, %v2118
        %v2120 = vrot.slane %v1297, 1
        %v2121 = vsel %vm2075, %v2118, %v2120
        %v2122 = vrot.slane %v1298, 1
        %v2123 = vsel %vm2075, %v2120, %v2122
        %v2124 = vrot.slane %v1299, 1
        %v2125 = vsel %vm2075, %v2122, %v2124
        %v2126 = vrot.slane %v1300, 1
        %v2127 = vsel %vm2075, %v2124, %v2126
        %v2128 = vrot.slane %v1301, 1
        %v2129 = vsel %vm2075, %v2126, %v2128
        %v2130 = vrot.slane %v1302, 1
        %v2131 = vsel %vm2075, %v2128, %v2130
        %v2132 = vrot.slane %v1303, 1
        %v2133 = vsel %vm2075, %v2130, %v2132
        %v2134 = vrot.slane %v1304, 1
        %v2135 = vsel %vm2075, %v2132, %v2134
        %v2136 = vrot.slane %v1305, 1
        %v2137 = vsel %vm2075, %v2134, %v2136
        %v2138 = vrot.slane %v1306, 1
        %v2139 = vsel %vm2075, %v2136, %v2138
        %v2172 = vsel %vm2042, %v2077, 0.0
        %v2173 = vsel %vm2043, %v2079, 0.0
        %v2174 = vsel %vm2044, %v2081, 0.0
        %v2175 = vsel %vm2045, %v2083, 0.0
        %v2176 = vsel %vm2046, %v2085, 0.0
        %v2177 = vsel %vm2047, %v2087, 0.0
        %v2178 = vsel %vm2048, %v2089, 0.0
        %v2179 = vsel %vm2049, %v2091, 0.0
        %v2180 = vsel %vm2050, %v2093, 0.0
        %v2181 = vsel %vm2051, %v2095, 0.0
        %v2182 = vsel %vm2052, %v2097, 0.0
        %v2183 = vsel %vm2053, %v2099, 0.0
        %v2184 = vsel %vm2054, %v2101, 0.0
        %v2185 = vsel %vm2055, %v2103, 0.0
        %v2186 = vsel %vm2056, %v2105, 0.0
        %v2187 = vsel %vm2057, %v2107, 0.0
        %v2188 = vsel %vm2058, %v2109, 0.0
        %v2189 = vsel %vm2059, %v2111, 0.0
        %v2190 = vsel %vm2060, %v2113, 0.0
        %v2191 = vsel %vm2061, %v2115, 0.0
        %v2192 = vsel %vm2062, %v2117, 0.0
        %v2193 = vsel %vm2063, %v2119, 0.0
        %v2194 = vsel %vm2064, %v2121, 0.0
        %v2195 = vsel %vm2065, %v2123, 0.0
        %v2196 = vsel %vm2066, %v2125, 0.0
        %v2197 = vsel %vm2067, %v2127, 0.0
        %v2198 = vsel %vm2068, %v2129, 0.0
        %v2199 = vsel %vm2069, %v2131, 0.0
        %v2200 = vsel %vm2070, %v2133, 0.0
        %v2201 = vsel %vm2071, %v2135, 0.0
        %v2202 = vsel %vm2072, %v2137, 0.0
        %v2203 = vsel %vm2073, %v2139, 0.0
        %v2205 = vrot.slane %v1306, 7
        %v2206 = vsel %vm1852, %v1913, %v2205
        %v2207 = vrot.slane %v1307, 7
        %v2208 = vsel %vm1852, %v2205, %v2207
        %v2211 = vsel %vm1789, %v1856, 0.0
        %v2212 = vsel %vm1790, %v1858, 0.0
        %v2213 = vsel %vm1791, %v1860, 0.0
        %v2214 = vsel %vm1792, %v1862, 0.0
        %v2215 = vsel %vm1793, %v1864, 0.0
        %v2216 = vsel %vm1794, %v1866, 0.0
        %v2217 = vsel %vm1795, %v1868, 0.0
        %v2218 = vsel %vm1796, %v1870, 0.0
        %v2219 = vsel %vm1797, %v1872, 0.0
        %v2220 = vsel %vm1798, %v1874, 0.0
        %v2221 = vsel %vm1799, %v1876, 0.0
        %v2222 = vsel %vm1800, %v1878, 0.0
        %v2223 = vsel %vm1801, %v1880, 0.0
        %v2224 = vsel %vm1802, %v1882, 0.0
        %v2225 = vsel %vm1803, %v1884, 0.0
        %v2226 = vsel %vm1804, %v1886, 0.0
        %v2227 = vsel %vm1805, %v1888, 0.0
        %v2228 = vsel %vm1806, %v1890, 0.0
        %v2229 = vsel %vm1807, %v1892, 0.0
        %v2230 = vsel %vm1808, %v1894, 0.0
        %v2231 = vsel %vm1809, %v1896, 0.0
        %v2232 = vsel %vm1810, %v1898, 0.0
        %v2233 = vsel %vm1811, %v1900, 0.0
        %v2234 = vsel %vm1812, %v1902, 0.0
        %v2235 = vsel %vm1813, %v1904, 0.0
        %v2236 = vsel %vm1814, %v1906, 0.0
        %v2237 = vsel %vm1815, %v1908, 0.0
        %v2238 = vsel %vm1816, %v1910, 0.0
        %v2239 = vsel %vm1817, %v1912, 0.0
        %v2240 = vsel %vm1818, %v1914, 0.0
        %v2241 = vsel %vm1819, %v2206, 0.0
        %v2242 = vsel %vm1820, %v2208, 0.0
        %v2243 = vrot.slane %v1307, 1
        %v2244 = vsel %vm2075, %v2138, %v2243
        %v2245 = vsel %vm2075, %v2243, %v2076
        %v2248 = vsel %vm2042, %v2081, 0.0
        %v2249 = vsel %vm2043, %v2083, 0.0
        %v2250 = vsel %vm2044, %v2085, 0.0
        %v2251 = vsel %vm2045, %v2087, 0.0
        %v2252 = vsel %vm2046, %v2089, 0.0
        %v2253 = vsel %vm2047, %v2091, 0.0
        %v2254 = vsel %vm2048, %v2093, 0.0
        %v2255 = vsel %vm2049, %v2095, 0.0
        %v2256 = vsel %vm2050, %v2097, 0.0
        %v2257 = vsel %vm2051, %v2099, 0.0
        %v2258 = vsel %vm2052, %v2101, 0.0
        %v2259 = vsel %vm2053, %v2103, 0.0
        %v2260 = vsel %vm2054, %v2105, 0.0
        %v2261 = vsel %vm2055, %v2107, 0.0
        %v2262 = vsel %vm2056, %v2109, 0.0
        %v2263 = vsel %vm2057, %v2111, 0.0
        %v2264 = vsel %vm2058, %v2113, 0.0
        %v2265 = vsel %vm2059, %v2115, 0.0
        %v2266 = vsel %vm2060, %v2117, 0.0
        %v2267 = vsel %vm2061, %v2119, 0.0
        %v2268 = vsel %vm2062, %v2121, 0.0
        %v2269 = vsel %vm2063, %v2123, 0.0
        %v2270 = vsel %vm2064, %v2125, 0.0
        %v2271 = vsel %vm2065, %v2127, 0.0
        %v2272 = vsel %vm2066, %v2129, 0.0
        %v2273 = vsel %vm2067, %v2131, 0.0
        %v2274 = vsel %vm2068, %v2133, 0.0
        %v2275 = vsel %vm2069, %v2135, 0.0
        %v2276 = vsel %vm2070, %v2137, 0.0
        %v2277 = vsel %vm2071, %v2139, 0.0
        %v2278 = vsel %vm2072, %v2244, 0.0
        %v2279 = vsel %vm2073, %v2245, 0.0
        %v2280 = vsel %vm1852, %v2207, %v1853
        %v2282 = vsel %vm1789, %v1860, 0.0
        %v2283 = vsel %vm1790, %v1862, 0.0
        %v2284 = vsel %vm1791, %v1864, 0.0
        %v2285 = vsel %vm1792, %v1866, 0.0
        %v2286 = vsel %vm1793, %v1868, 0.0
        %v2287 = vsel %vm1794, %v1870, 0.0
        %v2288 = vsel %vm1795, %v1872, 0.0
        %v2289 = vsel %vm1796, %v1874, 0.0
        %v2290 = vsel %vm1797, %v1876, 0.0
        %v2291 = vsel %vm1798, %v1878, 0.0
        %v2292 = vsel %vm1799, %v1880, 0.0
        %v2293 = vsel %vm1800, %v1882, 0.0
        %v2294 = vsel %vm1801, %v1884, 0.0
        %v2295 = vsel %vm1802, %v1886, 0.0
        %v2296 = vsel %vm1803, %v1888, 0.0
        %v2297 = vsel %vm1804, %v1890, 0.0
        %v2298 = vsel %vm1805, %v1892, 0.0
        %v2299 = vsel %vm1806, %v1894, 0.0
        %v2300 = vsel %vm1807, %v1896, 0.0
        %v2301 = vsel %vm1808, %v1898, 0.0
        %v2302 = vsel %vm1809, %v1900, 0.0
        %v2303 = vsel %vm1810, %v1902, 0.0
        %v2304 = vsel %vm1811, %v1904, 0.0
        %v2305 = vsel %vm1812, %v1906, 0.0
        %v2306 = vsel %vm1813, %v1908, 0.0
        %v2307 = vsel %vm1814, %v1910, 0.0
        %v2308 = vsel %vm1815, %v1912, 0.0
        %v2309 = vsel %vm1816, %v1914, 0.0
        %v2310 = vsel %vm1817, %v2206, 0.0
        %v2311 = vsel %vm1818, %v2208, 0.0
        %v2312 = vsel %vm1819, %v2280, 0.0
        %v2313 = vsel %vm1820, %v1854, 0.0
        %v2314 = vsel %vm2042, %v2085, 0.0
        %v2315 = vsel %vm2043, %v2087, 0.0
        %v2316 = vsel %vm2044, %v2089, 0.0
        %v2317 = vsel %vm2045, %v2091, 0.0
        %v2318 = vsel %vm2046, %v2093, 0.0
        %v2319 = vsel %vm2047, %v2095, 0.0
        %v2320 = vsel %vm2048, %v2097, 0.0
        %v2321 = vsel %vm2049, %v2099, 0.0
        %v2322 = vsel %vm2050, %v2101, 0.0
        %v2323 = vsel %vm2051, %v2103, 0.0
        %v2324 = vsel %vm2052, %v2105, 0.0
        %v2325 = vsel %vm2053, %v2107, 0.0
        %v2326 = vsel %vm2054, %v2109, 0.0
        %v2327 = vsel %vm2055, %v2111, 0.0
        %v2328 = vsel %vm2056, %v2113, 0.0
        %v2329 = vsel %vm2057, %v2115, 0.0
        %v2330 = vsel %vm2058, %v2117, 0.0
        %v2331 = vsel %vm2059, %v2119, 0.0
        %v2332 = vsel %vm2060, %v2121, 0.0
        %v2333 = vsel %vm2061, %v2123, 0.0
        %v2334 = vsel %vm2062, %v2125, 0.0
        %v2335 = vsel %vm2063, %v2127, 0.0
        %v2336 = vsel %vm2064, %v2129, 0.0
        %v2337 = vsel %vm2065, %v2131, 0.0
        %v2338 = vsel %vm2066, %v2133, 0.0
        %v2339 = vsel %vm2067, %v2135, 0.0
        %v2340 = vsel %vm2068, %v2137, 0.0
        %v2341 = vsel %vm2069, %v2139, 0.0
        %v2342 = vsel %vm2070, %v2244, 0.0
        %v2343 = vsel %vm2071, %v2245, 0.0
        %v2344 = vsel %vm2072, %v2077, 0.0
        %v2345 = vsel %vm2073, %v2077, 0.0
        %2346 = vrot.lane.b32.xlu0 0.0, 32
        %v2347 = vpop.permute.xlu0 %2346
        %2348 = vrot.lane.b32.xlu0 %v1276, 32
        %v2349 = vpop.permute.xlu0 %2348
        %2350 = vrot.lane.b32.xlu0 %v1277, 32
        %v2351 = vpop.permute.xlu0 %2350
        %2352 = vrot.lane.b32.xlu0 %v1278, 32
        %v2353 = vpop.permute.xlu0 %2352
        %2354 = vrot.lane.b32.xlu0 %v1279, 32
        %v2355 = vpop.permute.xlu0 %2354
        %2356 = vrot.lane.b32.xlu0 %v1280, 32
        %v2357 = vpop.permute.xlu0 %2356
        %2358 = vrot.lane.b32.xlu0 %v1281, 32
        %v2359 = vpop.permute.xlu0 %2358
        %2360 = vrot.lane.b32.xlu0 %v1282, 32
        %v2361 = vpop.permute.xlu0 %2360
        %2362 = vrot.lane.b32.xlu0 %v1283, 32
        %v2363 = vpop.permute.xlu0 %2362
        %2364 = vrot.lane.b32.xlu0 %v1284, 32
        %v2365 = vpop.permute.xlu0 %2364
        %2366 = vrot.lane.b32.xlu0 %v1285, 32
        %v2367 = vpop.permute.xlu0 %2366
        %2368 = vrot.lane.b32.xlu0 %v1286, 32
        %v2369 = vpop.permute.xlu0 %2368
        %2370 = vrot.lane.b32.xlu0 %v1287, 32
        %v2371 = vpop.permute.xlu0 %2370
        %2372 = vrot.lane.b32.xlu0 %v1288, 32
        %v2373 = vpop.permute.xlu0 %2372
        %2374 = vrot.lane.b32.xlu0 %v1289, 32
        %v2375 = vpop.permute.xlu0 %2374
        %2376 = vrot.lane.b32.xlu0 %v1290, 32
        %v2377 = vpop.permute.xlu0 %2376
        %2378 = vrot.lane.b32.xlu0 %v1291, 32
        %v2379 = vpop.permute.xlu0 %2378
        %2380 = vrot.lane.b32.xlu0 %v1292, 32
        %v2381 = vpop.permute.xlu0 %2380
        %2382 = vrot.lane.b32.xlu0 %v1293, 32
        %v2383 = vpop.permute.xlu0 %2382
        %2384 = vrot.lane.b32.xlu0 %v1294, 32
        %v2385 = vpop.permute.xlu0 %2384
        %2386 = vrot.lane.b32.xlu0 %v1295, 32
        %v2387 = vpop.permute.xlu0 %2386
        %2388 = vrot.lane.b32.xlu0 %v1296, 32
        %v2389 = vpop.permute.xlu0 %2388
        %2390 = vrot.lane.b32.xlu0 %v1297, 32
        %v2391 = vpop.permute.xlu0 %2390
        %2392 = vrot.lane.b32.xlu0 %v1298, 32
        %v2393 = vpop.permute.xlu0 %2392
        %2394 = vrot.lane.b32.xlu0 %v1299, 32
        %v2395 = vpop.permute.xlu0 %2394
        %2396 = vrot.lane.b32.xlu0 %v1300, 32
        %v2397 = vpop.permute.xlu0 %2396
        %2398 = vrot.lane.b32.xlu0 %v1301, 32
        %v2399 = vpop.permute.xlu0 %2398
        %2400 = vrot.lane.b32.xlu0 %v1302, 32
        %v2401 = vpop.permute.xlu0 %2400
        %2402 = vrot.lane.b32.xlu0 %v1303, 32
        %v2403 = vpop.permute.xlu0 %2402
        %2404 = vrot.lane.b32.xlu0 %v1304, 32
        %v2405 = vpop.permute.xlu0 %2404
        %2406 = vrot.lane.b32.xlu0 %v1305, 32
        %v2407 = vpop.permute.xlu0 %2406
        %2471 = vrot.lane.b32.xlu0 %v2172, 64
        %v2472 = vpop.permute.xlu0 %2471
        %2473 = vrot.lane.b32.xlu0 %v2173, 64
        %v2474 = vpop.permute.xlu0 %2473
        %2475 = vrot.lane.b32.xlu0 %v2174, 64
        %v2476 = vpop.permute.xlu0 %2475
        %2477 = vrot.lane.b32.xlu0 %v2175, 64
        %v2478 = vpop.permute.xlu0 %2477
        %2479 = vrot.lane.b32.xlu0 %v2176, 64
        %v2480 = vpop.permute.xlu0 %2479
        %2481 = vrot.lane.b32.xlu0 %v2177, 64
        %v2482 = vpop.permute.xlu0 %2481
        %2483 = vrot.lane.b32.xlu0 %v2178, 64
        %v2484 = vpop.permute.xlu0 %2483
        %2485 = vrot.lane.b32.xlu0 %v2179, 64
        %v2486 = vpop.permute.xlu0 %2485
        %2487 = vrot.lane.b32.xlu0 %v2180, 64
        %v2488 = vpop.permute.xlu0 %2487
        %2489 = vrot.lane.b32.xlu0 %v2181, 64
        %v2490 = vpop.permute.xlu0 %2489
        %2491 = vrot.lane.b32.xlu0 %v2182, 64
        %v2492 = vpop.permute.xlu0 %2491
        %2493 = vrot.lane.b32.xlu0 %v2183, 64
        %v2494 = vpop.permute.xlu0 %2493
        %2495 = vrot.lane.b32.xlu0 %v2184, 64
        %v2496 = vpop.permute.xlu0 %2495
        %2497 = vrot.lane.b32.xlu0 %v2185, 64
        %v2498 = vpop.permute.xlu0 %2497
        %2499 = vrot.lane.b32.xlu0 %v2186, 64
        %v2500 = vpop.permute.xlu0 %2499
        %2501 = vrot.lane.b32.xlu0 %v2187, 64
        %v2502 = vpop.permute.xlu0 %2501
        %2503 = vrot.lane.b32.xlu0 %v2188, 64
        %v2504 = vpop.permute.xlu0 %2503
        %2505 = vrot.lane.b32.xlu0 %v2189, 64
        %v2506 = vpop.permute.xlu0 %2505
        %2507 = vrot.lane.b32.xlu0 %v2190, 64
        %v2508 = vpop.permute.xlu0 %2507
        %2509 = vrot.lane.b32.xlu0 %v2191, 64
        %v2510 = vpop.permute.xlu0 %2509
        %2511 = vrot.lane.b32.xlu0 %v2192, 64
        %v2512 = vpop.permute.xlu0 %2511
        %2513 = vrot.lane.b32.xlu0 %v2193, 64
        %v2514 = vpop.permute.xlu0 %2513
        %2515 = vrot.lane.b32.xlu0 %v2194, 64
        %v2516 = vpop.permute.xlu0 %2515
        %2517 = vrot.lane.b32.xlu0 %v2195, 64
        %v2518 = vpop.permute.xlu0 %2517
        %2519 = vrot.lane.b32.xlu0 %v2196, 64
        %v2520 = vpop.permute.xlu0 %2519
        %2521 = vrot.lane.b32.xlu0 %v2197, 64
        %v2522 = vpop.permute.xlu0 %2521
        %2523 = vrot.lane.b32.xlu0 %v2198, 64
        %v2524 = vpop.permute.xlu0 %2523
        %2525 = vrot.lane.b32.xlu0 %v2199, 64
        %v2526 = vpop.permute.xlu0 %2525
        %2527 = vrot.lane.b32.xlu0 %v2200, 64
        %v2528 = vpop.permute.xlu0 %2527
        %2529 = vrot.lane.b32.xlu0 %v2201, 64
        %v2530 = vpop.permute.xlu0 %2529
        %2531 = vrot.lane.b32.xlu0 %v2202, 64
        %v2532 = vpop.permute.xlu0 %2531
        %2533 = vrot.lane.b32.xlu0 %v2203, 64
        %v2534 = vpop.permute.xlu0 %2533
        %2599 = vrot.lane.b32.xlu0 %v2211, 96
        %v2600 = vpop.permute.xlu0 %2599
        %2601 = vrot.lane.b32.xlu0 %v2212, 96
        %v2602 = vpop.permute.xlu0 %2601
        %2603 = vrot.lane.b32.xlu0 %v2213, 96
        %v2604 = vpop.permute.xlu0 %2603
        %2605 = vrot.lane.b32.xlu0 %v2214, 96
        %v2606 = vpop.permute.xlu0 %2605
        %2607 = vrot.lane.b32.xlu0 %v2215, 96
        %v2608 = vpop.permute.xlu0 %2607
        %2609 = vrot.lane.b32.xlu0 %v2216, 96
        %v2610 = vpop.permute.xlu0 %2609
        %2611 = vrot.lane.b32.xlu0 %v2217, 96
        %v2612 = vpop.permute.xlu0 %2611
        %2613 = vrot.lane.b32.xlu0 %v2218, 96
        %v2614 = vpop.permute.xlu0 %2613
        %2615 = vrot.lane.b32.xlu0 %v2219, 96
        %v2616 = vpop.permute.xlu0 %2615
        %2617 = vrot.lane.b32.xlu0 %v2220, 96
        %v2618 = vpop.permute.xlu0 %2617
        %2619 = vrot.lane.b32.xlu0 %v2221, 96
        %v2620 = vpop.permute.xlu0 %2619
        %2621 = vrot.lane.b32.xlu0 %v2222, 96
        %v2622 = vpop.permute.xlu0 %2621
        %2623 = vrot.lane.b32.xlu0 %v2223, 96
        %v2624 = vpop.permute.xlu0 %2623
        %2625 = vrot.lane.b32.xlu0 %v2224, 96
        %v2626 = vpop.permute.xlu0 %2625
        %2627 = vrot.lane.b32.xlu0 %v2225, 96
        %v2628 = vpop.permute.xlu0 %2627
        %2629 = vrot.lane.b32.xlu0 %v2226, 96
        %v2630 = vpop.permute.xlu0 %2629
        %2631 = vrot.lane.b32.xlu0 %v2227, 96
        %v2632 = vpop.permute.xlu0 %2631
        %2633 = vrot.lane.b32.xlu0 %v2228, 96
        %v2634 = vpop.permute.xlu0 %2633
        %2635 = vrot.lane.b32.xlu0 %v2229, 96
        %v2636 = vpop.permute.xlu0 %2635
        %2637 = vrot.lane.b32.xlu0 %v2230, 96
        %v2638 = vpop.permute.xlu0 %2637
        %2639 = vrot.lane.b32.xlu0 %v2231, 96
        %v2640 = vpop.permute.xlu0 %2639
        %2641 = vrot.lane.b32.xlu0 %v2232, 96
        %v2642 = vpop.permute.xlu0 %2641
        %2643 = vrot.lane.b32.xlu0 %v2233, 96
        %v2644 = vpop.permute.xlu0 %2643
        %2645 = vrot.lane.b32.xlu0 %v2234, 96
        %v2646 = vpop.permute.xlu0 %2645
        %2647 = vrot.lane.b32.xlu0 %v2235, 96
        %v2648 = vpop.permute.xlu0 %2647
        %2649 = vrot.lane.b32.xlu0 %v2236, 96
        %v2650 = vpop.permute.xlu0 %2649
        %2651 = vrot.lane.b32.xlu0 %v2237, 96
        %v2652 = vpop.permute.xlu0 %2651
        %2653 = vrot.lane.b32.xlu0 %v2238, 96
        %v2654 = vpop.permute.xlu0 %2653
        %2655 = vrot.lane.b32.xlu0 %v2239, 96
        %v2656 = vpop.permute.xlu0 %2655
        %2657 = vrot.lane.b32.xlu0 %v2240, 96
        %v2658 = vpop.permute.xlu0 %2657
        %2659 = vrot.lane.b32.xlu0 %v2241, 96
        %v2660 = vpop.permute.xlu0 %2659
        %2661 = vrot.lane.b32.xlu0 %v2242, 96
        %v2662 = vpop.permute.xlu0 %2661
        %2727 = vrot.lane.b32.xlu0 %v2248, 32
        %v2728 = vpop.permute.xlu0 %2727
        %2729 = vrot.lane.b32.xlu0 %v2249, 32
        %v2730 = vpop.permute.xlu0 %2729
        %2731 = vrot.lane.b32.xlu0 %v2250, 32
        %v2732 = vpop.permute.xlu0 %2731
        %2733 = vrot.lane.b32.xlu0 %v2251, 32
        %v2734 = vpop.permute.xlu0 %2733
        %2735 = vrot.lane.b32.xlu0 %v2252, 32
        %v2736 = vpop.permute.xlu0 %2735
        %2737 = vrot.lane.b32.xlu0 %v2253, 32
        %v2738 = vpop.permute.xlu0 %2737
        %2739 = vrot.lane.b32.xlu0 %v2254, 32
        %v2740 = vpop.permute.xlu0 %2739
        %2741 = vrot.lane.b32.xlu0 %v2255, 32
        %v2742 = vpop.permute.xlu0 %2741
        %2743 = vrot.lane.b32.xlu0 %v2256, 32
        %v2744 = vpop.permute.xlu0 %2743
        %2745 = vrot.lane.b32.xlu0 %v2257, 32
        %v2746 = vpop.permute.xlu0 %2745
        %2747 = vrot.lane.b32.xlu0 %v2258, 32
        %v2748 = vpop.permute.xlu0 %2747
        %2749 = vrot.lane.b32.xlu0 %v2259, 32
        %v2750 = vpop.permute.xlu0 %2749
        %2751 = vrot.lane.b32.xlu0 %v2260, 32
        %v2752 = vpop.permute.xlu0 %2751
        %2753 = vrot.lane.b32.xlu0 %v2261, 32
        %v2754 = vpop.permute.xlu0 %2753
        %2755 = vrot.lane.b32.xlu0 %v2262, 32
        %v2756 = vpop.permute.xlu0 %2755
        %2757 = vrot.lane.b32.xlu0 %v2263, 32
        %v2758 = vpop.permute.xlu0 %2757
        %2759 = vrot.lane.b32.xlu0 %v2264, 32
        %v2760 = vpop.permute.xlu0 %2759
        %2761 = vrot.lane.b32.xlu0 %v2265, 32
        %v2762 = vpop.permute.xlu0 %2761
        %2763 = vrot.lane.b32.xlu0 %v2266, 32
        %v2764 = vpop.permute.xlu0 %2763
        %2765 = vrot.lane.b32.xlu0 %v2267, 32
        %v2766 = vpop.permute.xlu0 %2765
        %2767 = vrot.lane.b32.xlu0 %v2268, 32
        %v2768 = vpop.permute.xlu0 %2767
        %2769 = vrot.lane.b32.xlu0 %v2269, 32
        %v2770 = vpop.permute.xlu0 %2769
        %2771 = vrot.lane.b32.xlu0 %v2270, 32
        %v2772 = vpop.permute.xlu0 %2771
        %2773 = vrot.lane.b32.xlu0 %v2271, 32
        %v2774 = vpop.permute.xlu0 %2773
        %2775 = vrot.lane.b32.xlu0 %v2272, 32
        %v2776 = vpop.permute.xlu0 %2775
        %2777 = vrot.lane.b32.xlu0 %v2273, 32
        %v2778 = vpop.permute.xlu0 %2777
        %2779 = vrot.lane.b32.xlu0 %v2274, 32
        %v2780 = vpop.permute.xlu0 %2779
        %2781 = vrot.lane.b32.xlu0 %v2275, 32
        %v2782 = vpop.permute.xlu0 %2781
        %2783 = vrot.lane.b32.xlu0 %v2276, 32
        %v2784 = vpop.permute.xlu0 %2783
        %2785 = vrot.lane.b32.xlu0 %v2277, 32
        %v2786 = vpop.permute.xlu0 %2785
        %2787 = vrot.lane.b32.xlu0 %v2278, 32
        %v2788 = vpop.permute.xlu0 %2787
        %2789 = vrot.lane.b32.xlu0 %v2279, 32
        %v2790 = vpop.permute.xlu0 %2789
        %2855 = vrot.lane.b32.xlu0 %v2282, 64
        %v2856 = vpop.permute.xlu0 %2855
        %2857 = vrot.lane.b32.xlu0 %v2283, 64
        %v2858 = vpop.permute.xlu0 %2857
        %2859 = vrot.lane.b32.xlu0 %v2284, 64
        %v2860 = vpop.permute.xlu0 %2859
        %2861 = vrot.lane.b32.xlu0 %v2285, 64
        %v2862 = vpop.permute.xlu0 %2861
        %2863 = vrot.lane.b32.xlu0 %v2286, 64
        %v2864 = vpop.permute.xlu0 %2863
        %2865 = vrot.lane.b32.xlu0 %v2287, 64
        %v2866 = vpop.permute.xlu0 %2865
        %2867 = vrot.lane.b32.xlu0 %v2288, 64
        %v2868 = vpop.permute.xlu0 %2867
        %2869 = vrot.lane.b32.xlu0 %v2289, 64
        %v2870 = vpop.permute.xlu0 %2869
        %2871 = vrot.lane.b32.xlu0 %v2290, 64
        %v2872 = vpop.permute.xlu0 %2871
        %2873 = vrot.lane.b32.xlu0 %v2291, 64
        %v2874 = vpop.permute.xlu0 %2873
        %2875 = vrot.lane.b32.xlu0 %v2292, 64
        %v2876 = vpop.permute.xlu0 %2875
        %2877 = vrot.lane.b32.xlu0 %v2293, 64
        %v2878 = vpop.permute.xlu0 %2877
        %2879 = vrot.lane.b32.xlu0 %v2294, 64
        %v2880 = vpop.permute.xlu0 %2879
        %2881 = vrot.lane.b32.xlu0 %v2295, 64
        %v2882 = vpop.permute.xlu0 %2881
        %2883 = vrot.lane.b32.xlu0 %v2296, 64
        %v2884 = vpop.permute.xlu0 %2883
        %2885 = vrot.lane.b32.xlu0 %v2297, 64
        %v2886 = vpop.permute.xlu0 %2885
        %2887 = vrot.lane.b32.xlu0 %v2298, 64
        %v2888 = vpop.permute.xlu0 %2887
        %2889 = vrot.lane.b32.xlu0 %v2299, 64
        %v2890 = vpop.permute.xlu0 %2889
        %2891 = vrot.lane.b32.xlu0 %v2300, 64
        %v2892 = vpop.permute.xlu0 %2891
        %2893 = vrot.lane.b32.xlu0 %v2301, 64
        %v2894 = vpop.permute.xlu0 %2893
        %2895 = vrot.lane.b32.xlu0 %v2302, 64
        %v2896 = vpop.permute.xlu0 %2895
        %2897 = vrot.lane.b32.xlu0 %v2303, 64
        %v2898 = vpop.permute.xlu0 %2897
        %2899 = vrot.lane.b32.xlu0 %v2304, 64
        %v2900 = vpop.permute.xlu0 %2899
        %2901 = vrot.lane.b32.xlu0 %v2305, 64
        %v2902 = vpop.permute.xlu0 %2901
        %2903 = vrot.lane.b32.xlu0 %v2306, 64
        %v2904 = vpop.permute.xlu0 %2903
        %2905 = vrot.lane.b32.xlu0 %v2307, 64
        %v2906 = vpop.permute.xlu0 %2905
        %2907 = vrot.lane.b32.xlu0 %v2308, 64
        %v2908 = vpop.permute.xlu0 %2907
        %2909 = vrot.lane.b32.xlu0 %v2309, 64
        %v2910 = vpop.permute.xlu0 %2909
        %2911 = vrot.lane.b32.xlu0 %v2310, 64
        %v2912 = vpop.permute.xlu0 %2911
        %2913 = vrot.lane.b32.xlu0 %v2311, 64
        %v2914 = vpop.permute.xlu0 %2913
        %2915 = vrot.lane.b32.xlu0 %v2312, 64
        %v2916 = vpop.permute.xlu0 %2915
        %2917 = vrot.lane.b32.xlu0 %v2313, 64
        %v2918 = vpop.permute.xlu0 %2917
        %2951 = vrot.lane.b32.xlu0 %v1278, 96
        %v2952 = vpop.permute.xlu0 %2951
        %2953 = vrot.lane.b32.xlu0 %v1279, 96
        %v2954 = vpop.permute.xlu0 %2953
        %2955 = vrot.lane.b32.xlu0 %v1280, 96
        %v2956 = vpop.permute.xlu0 %2955
        %2957 = vrot.lane.b32.xlu0 %v1281, 96
        %v2958 = vpop.permute.xlu0 %2957
        %2959 = vrot.lane.b32.xlu0 %v1282, 96
        %v2960 = vpop.permute.xlu0 %2959
        %2961 = vrot.lane.b32.xlu0 %v1283, 96
        %v2962 = vpop.permute.xlu0 %2961
        %2963 = vrot.lane.b32.xlu0 %v1284, 96
        %v2964 = vpop.permute.xlu0 %2963
        %2965 = vrot.lane.b32.xlu0 %v1285, 96
        %v2966 = vpop.permute.xlu0 %2965
        %2967 = vrot.lane.b32.xlu0 %v1286, 96
        %v2968 = vpop.permute.xlu0 %2967
        %2969 = vrot.lane.b32.xlu0 %v1287, 96
        %v2970 = vpop.permute.xlu0 %2969
        %2971 = vrot.lane.b32.xlu0 %v1288, 96
        %v2972 = vpop.permute.xlu0 %2971
        %2973 = vrot.lane.b32.xlu0 %v1289, 96
        %v2974 = vpop.permute.xlu0 %2973
        %2975 = vrot.lane.b32.xlu0 %v1290, 96
        %v2976 = vpop.permute.xlu0 %2975
        %2977 = vrot.lane.b32.xlu0 %v1291, 96
        %v2978 = vpop.permute.xlu0 %2977
        %2979 = vrot.lane.b32.xlu0 %v1292, 96
        %v2980 = vpop.permute.xlu0 %2979
        %2981 = vrot.lane.b32.xlu0 %v1293, 96
        %v2982 = vpop.permute.xlu0 %2981
        %2983 = vrot.lane.b32.xlu0 %v1294, 96
        %v2984 = vpop.permute.xlu0 %2983
        %2985 = vrot.lane.b32.xlu0 %v1295, 96
        %v2986 = vpop.permute.xlu0 %2985
        %2987 = vrot.lane.b32.xlu0 %v1296, 96
        %v2988 = vpop.permute.xlu0 %2987
        %2989 = vrot.lane.b32.xlu0 %v1297, 96
        %v2990 = vpop.permute.xlu0 %2989
        %2991 = vrot.lane.b32.xlu0 %v1298, 96
        %v2992 = vpop.permute.xlu0 %2991
        %2993 = vrot.lane.b32.xlu0 %v1299, 96
        %v2994 = vpop.permute.xlu0 %2993
        %2995 = vrot.lane.b32.xlu0 %v1300, 96
        %v2996 = vpop.permute.xlu0 %2995
        %2997 = vrot.lane.b32.xlu0 %v1301, 96
        %v2998 = vpop.permute.xlu0 %2997
        %2999 = vrot.lane.b32.xlu0 %v1302, 96
        %v3000 = vpop.permute.xlu0 %2999
        %3001 = vrot.lane.b32.xlu0 %v1303, 96
        %v3002 = vpop.permute.xlu0 %3001
        %3003 = vrot.lane.b32.xlu0 %v1304, 96
        %v3004 = vpop.permute.xlu0 %3003
        %3005 = vrot.lane.b32.xlu0 %v1305, 96
        %v3006 = vpop.permute.xlu0 %3005
        %3007 = vrot.lane.b32.xlu0 %v1306, 96
        %v3008 = vpop.permute.xlu0 %3007
        %3009 = vrot.lane.b32.xlu0 %v1307, 96
        %v3010 = vpop.permute.xlu0 %3009
        %3011 = vrot.lane.b32.xlu0 0.0, 96
        %v3012 = vpop.permute.xlu0 %3011
        %v3044 = vsel %vm536, %v1946, %v2347
        %v3045 = vsel %vm536, %v1947, %v2347
        %v3046 = vsel %vm536, %v1948, %v2349
        %v3047 = vsel %vm536, %v1949, %v2351
        %v3048 = vsel %vm536, %v1950, %v2353
        %v3049 = vsel %vm536, %v1951, %v2355
        %v3050 = vsel %vm536, %v1952, %v2357
        %v3051 = vsel %vm536, %v1953, %v2359
        %v3052 = vsel %vm536, %v1954, %v2361
        %v3053 = vsel %vm536, %v1955, %v2363
        %v3054 = vsel %vm536, %v1956, %v2365
        %v3055 = vsel %vm536, %v1957, %v2367
        %v3056 = vsel %vm536, %v1958, %v2369
        %v3057 = vsel %vm536, %v1959, %v2371
        %v3058 = vsel %vm536, %v1960, %v2373
        %v3059 = vsel %vm536, %v1961, %v2375
        %v3060 = vsel %vm536, %v1962, %v2377
        %v3061 = vsel %vm536, %v1963, %v2379
        %v3062 = vsel %vm536, %v1964, %v2381
        %v3063 = vsel %vm536, %v1965, %v2383
        %v3064 = vsel %vm536, %v1966, %v2385
        %v3065 = vsel %vm536, %v1967, %v2387
        %v3066 = vsel %vm536, %v1968, %v2389
        %v3067 = vsel %vm536, %v1969, %v2391
        %v3068 = vsel %vm536, %v1970, %v2393
        %v3069 = vsel %vm536, %v1971, %v2395
        %v3070 = vsel %vm536, %v1972, %v2397
        %v3071 = vsel %vm536, %v1973, %v2399
        %v3072 = vsel %vm536, %v1974, %v2401
        %v3073 = vsel %vm536, %v1975, %v2403
        %v3074 = vsel %vm536, %v1976, %v2405
        %v3075 = vsel %vm536, %v1977, %v2407
        %vm3076 = vcmask 523264
        %v3077 = vsel %vm3076, %v3044, %v2472
        %v3078 = vsel %vm3076, %v3045, %v2474
        %v3079 = vsel %vm3076, %v3046, %v2476
        %v3080 = vsel %vm3076, %v3047, %v2478
        %v3081 = vsel %vm3076, %v3048, %v2480
        %v3082 = vsel %vm3076, %v3049, %v2482
        %v3083 = vsel %vm3076, %v3050, %v2484
        %v3084 = vsel %vm3076, %v3051, %v2486
        %v3085 = vsel %vm3076, %v3052, %v2488
        %v3086 = vsel %vm3076, %v3053, %v2490
        %v3087 = vsel %vm3076, %v3054, %v2492
        %v3088 = vsel %vm3076, %v3055, %v2494
        %v3089 = vsel %vm3076, %v3056, %v2496
        %v3090 = vsel %vm3076, %v3057, %v2498
        %v3091 = vsel %vm3076, %v3058, %v2500
        %v3092 = vsel %vm3076, %v3059, %v2502
        %v3093 = vsel %vm3076, %v3060, %v2504
        %v3094 = vsel %vm3076, %v3061, %v2506
        %v3095 = vsel %vm3076, %v3062, %v2508
        %v3096 = vsel %vm3076, %v3063, %v2510
        %v3097 = vsel %vm3076, %v3064, %v2512
        %v3098 = vsel %vm3076, %v3065, %v2514
        %v3099 = vsel %vm3076, %v3066, %v2516
        %v3100 = vsel %vm3076, %v3067, %v2518
        %v3101 = vsel %vm3076, %v3068, %v2520
        %v3102 = vsel %vm3076, %v3069, %v2522
        %v3103 = vsel %vm3076, %v3070, %v2524
        %v3104 = vsel %vm3076, %v3071, %v2526
        %v3105 = vsel %vm3076, %v3072, %v2528
        %v3106 = vsel %vm3076, %v3073, %v2530
        %v3107 = vsel %vm3076, %v3074, %v2532
        %v3108 = vsel %vm3076, %v3075, %v2534
        %vm3109 = vcmask 785408
        %v3110 = vsel %vm3109, %v3077, %v2600
        %v3111 = vsel %vm3109, %v3078, %v2602
        %v3112 = vsel %vm3109, %v3079, %v2604
        %v3113 = vsel %vm3109, %v3080, %v2606
        %v3114 = vsel %vm3109, %v3081, %v2608
        %v3115 = vsel %vm3109, %v3082, %v2610
        %v3116 = vsel %vm3109, %v3083, %v2612
        %v3117 = vsel %vm3109, %v3084, %v2614
        %v3118 = vsel %vm3109, %v3085, %v2616
        %v3119 = vsel %vm3109, %v3086, %v2618
        %v3120 = vsel %vm3109, %v3087, %v2620
        %v3121 = vsel %vm3109, %v3088, %v2622
        %v3122 = vsel %vm3109, %v3089, %v2624
        %v3123 = vsel %vm3109, %v3090, %v2626
        %v3124 = vsel %vm3109, %v3091, %v2628
        %v3125 = vsel %vm3109, %v3092, %v2630
        %v3126 = vsel %vm3109, %v3093, %v2632
        %v3127 = vsel %vm3109, %v3094, %v2634
        %v3128 = vsel %vm3109, %v3095, %v2636
        %v3129 = vsel %vm3109, %v3096, %v2638
        %v3130 = vsel %vm3109, %v3097, %v2640
        %v3131 = vsel %vm3109, %v3098, %v2642
        %v3132 = vsel %vm3109, %v3099, %v2644
        %v3133 = vsel %vm3109, %v3100, %v2646
        %v3134 = vsel %vm3109, %v3101, %v2648
        %v3135 = vsel %vm3109, %v3102, %v2650
        %v3136 = vsel %vm3109, %v3103, %v2652
        %v3137 = vsel %vm3109, %v3104, %v2654
        %v3138 = vsel %vm3109, %v3105, %v2656
        %v3139 = vsel %vm3109, %v3106, %v2658
        %v3140 = vsel %vm3109, %v3107, %v2660
        %v3141 = vsel %vm3109, %v3108, %v2662
        %v3142 = vsel %vm536, %v1276, %v2728
        %v3143 = vsel %vm536, %v1277, %v2730
        %v3144 = vsel %vm536, %v1278, %v2732
        %v3145 = vsel %vm536, %v1279, %v2734
        %v3146 = vsel %vm536, %v1280, %v2736
        %v3147 = vsel %vm536, %v1281, %v2738
        %v3148 = vsel %vm536, %v1282, %v2740
        %v3149 = vsel %vm536, %v1283, %v2742
        %v3150 = vsel %vm536, %v1284, %v2744
        %v3151 = vsel %vm536, %v1285, %v2746
        %v3152 = vsel %vm536, %v1286, %v2748
        %v3153 = vsel %vm536, %v1287, %v2750
        %v3154 = vsel %vm536, %v1288, %v2752
        %v3155 = vsel %vm536, %v1289, %v2754
        %v3156 = vsel %vm536, %v1290, %v2756
        %v3157 = vsel %vm536, %v1291, %v2758
        %v3158 = vsel %vm536, %v1292, %v2760
        %v3159 = vsel %vm536, %v1293, %v2762
        %v3160 = vsel %vm536, %v1294, %v2764
        %v3161 = vsel %vm536, %v1295, %v2766
        %v3162 = vsel %vm536, %v1296, %v2768
        %v3163 = vsel %vm536, %v1297, %v2770
        %v3164 = vsel %vm536, %v1298, %v2772
        %v3165 = vsel %vm536, %v1299, %v2774
        %v3166 = vsel %vm536, %v1300, %v2776
        %v3167 = vsel %vm536, %v1301, %v2778
        %v3168 = vsel %vm536, %v1302, %v2780
        %v3169 = vsel %vm536, %v1303, %v2782
        %v3170 = vsel %vm536, %v1304, %v2784
        %v3171 = vsel %vm536, %v1305, %v2786
        %v3172 = vsel %vm536, %v1306, %v2788
        %v3173 = vsel %vm536, %v1307, %v2790
        %v3174 = vsel %vm3076, %v3142, %v2856
        %v3175 = vsel %vm3076, %v3143, %v2858
        %v3176 = vsel %vm3076, %v3144, %v2860
        %v3177 = vsel %vm3076, %v3145, %v2862
        %v3178 = vsel %vm3076, %v3146, %v2864
        %v3179 = vsel %vm3076, %v3147, %v2866
        %v3180 = vsel %vm3076, %v3148, %v2868
        %v3181 = vsel %vm3076, %v3149, %v2870
        %v3182 = vsel %vm3076, %v3150, %v2872
        %v3183 = vsel %vm3076, %v3151, %v2874
        %v3184 = vsel %vm3076, %v3152, %v2876
        %v3185 = vsel %vm3076, %v3153, %v2878
        %v3186 = vsel %vm3076, %v3154, %v2880
        %v3187 = vsel %vm3076, %v3155, %v2882
        %v3188 = vsel %vm3076, %v3156, %v2884
        %v3189 = vsel %vm3076, %v3157, %v2886
        %v3190 = vsel %vm3076, %v3158, %v2888
        %v3191 = vsel %vm3076, %v3159, %v2890
        %v3192 = vsel %vm3076, %v3160, %v2892
        %v3193 = vsel %vm3076, %v3161, %v2894
        %v3194 = vsel %vm3076, %v3162, %v2896
        %v3195 = vsel %vm3076, %v3163, %v2898
        %v3196 = vsel %vm3076, %v3164, %v2900
        %v3197 = vsel %vm3076, %v3165, %v2902
        %v3198 = vsel %vm3076, %v3166, %v2904
        %v3199 = vsel %vm3076, %v3167, %v2906
        %v3200 = vsel %vm3076, %v3168, %v2908
        %v3201 = vsel %vm3076, %v3169, %v2910
        %v3202 = vsel %vm3076, %v3170, %v2912
        %v3203 = vsel %vm3076, %v3171, %v2914
        %v3204 = vsel %vm3076, %v3172, %v2916
        %v3205 = vsel %vm3076, %v3173, %v2918
        %v3206 = vsel %vm3109, %v3174, %v2952
        %v3207 = vsel %vm3109, %v3175, %v2954
        %v3208 = vsel %vm3109, %v3176, %v2956
        %v3209 = vsel %vm3109, %v3177, %v2958
        %v3210 = vsel %vm3109, %v3178, %v2960
        %v3211 = vsel %vm3109, %v3179, %v2962
        %v3212 = vsel %vm3109, %v3180, %v2964
        %v3213 = vsel %vm3109, %v3181, %v2966
        %v3214 = vsel %vm3109, %v3182, %v2968
        %v3215 = vsel %vm3109, %v3183, %v2970
        %v3216 = vsel %vm3109, %v3184, %v2972
        %v3217 = vsel %vm3109, %v3185, %v2974
        %v3218 = vsel %vm3109, %v3186, %v2976
        %v3219 = vsel %vm3109, %v3187, %v2978
        %v3220 = vsel %vm3109, %v3188, %v2980
        %v3221 = vsel %vm3109, %v3189, %v2982
        %v3222 = vsel %vm3109, %v3190, %v2984
        %v3223 = vsel %vm3109, %v3191, %v2986
        %v3224 = vsel %vm3109, %v3192, %v2988
        %v3225 = vsel %vm3109, %v3193, %v2990
        %v3226 = vsel %vm3109, %v3194, %v2992
        %v3227 = vsel %vm3109, %v3195, %v2994
        %v3228 = vsel %vm3109, %v3196, %v2996
        %v3229 = vsel %vm3109, %v3197, %v2998
        %v3230 = vsel %vm3109, %v3198, %v3000
        %v3231 = vsel %vm3109, %v3199, %v3002
        %v3232 = vsel %vm3109, %v3200, %v3004
        %v3233 = vsel %vm3109, %v3201, %v3006
        %v3234 = vsel %vm3109, %v3202, %v3008
        %v3235 = vsel %vm3109, %v3203, %v3010
        %v3236 = vsel %vm3109, %v3204, %v3012
        %v3237 = vsel %vm3109, %v3205, %v3012
        %v3238 = vpack.c.bf16 %v3111, %v3110
        %v3239 = vpack.c.bf16 %v3207, %v3206
        %v3240 = vpack.c.bf16 %v2315, %v2314
        %v3241 = vpack.c.bf16 %v3113, %v3112
        %v3242 = vpack.c.bf16 %v3209, %v3208
        %v3243 = vpack.c.bf16 %v2317, %v2316
        %v3244 = vpack.c.bf16 %v3115, %v3114
        %v3245 = vpack.c.bf16 %v3211, %v3210
        %v3246 = vpack.c.bf16 %v2319, %v2318
        %v3247 = vpack.c.bf16 %v3117, %v3116
        %v3248 = vpack.c.bf16 %v3213, %v3212
        %v3249 = vpack.c.bf16 %v2321, %v2320
        %v3250 = vpack.c.bf16 %v3119, %v3118
        %v3251 = vpack.c.bf16 %v3215, %v3214
        %v3252 = vpack.c.bf16 %v2323, %v2322
        %v3253 = vpack.c.bf16 %v3121, %v3120
        %v3254 = vpack.c.bf16 %v3217, %v3216
        %v3255 = vpack.c.bf16 %v2325, %v2324
        %v3256 = vpack.c.bf16 %v3123, %v3122
        %v3257 = vpack.c.bf16 %v3219, %v3218
        %v3258 = vpack.c.bf16 %v2327, %v2326
        %v3259 = vpack.c.bf16 %v3125, %v3124
        %v3260 = vpack.c.bf16 %v3221, %v3220
        %v3261 = vpack.c.bf16 %v2329, %v2328
        %v3262 = vpack.c.bf16 %v3127, %v3126
        %v3263 = vpack.c.bf16 %v3223, %v3222
        %v3264 = vpack.c.bf16 %v2331, %v2330
        %v3265 = vpack.c.bf16 %v3129, %v3128
        %v3266 = vpack.c.bf16 %v3225, %v3224
        %v3267 = vpack.c.bf16 %v2333, %v2332
        %v3268 = vpack.c.bf16 %v3131, %v3130
        %v3269 = vpack.c.bf16 %v3227, %v3226
        %v3270 = vpack.c.bf16 %v2335, %v2334
        %v3271 = vpack.c.bf16 %v3133, %v3132
        %v3272 = vpack.c.bf16 %v3229, %v3228
        %v3273 = vpack.c.bf16 %v2337, %v2336
        %v3274 = vpack.c.bf16 %v3135, %v3134
        %v3275 = vpack.c.bf16 %v3231, %v3230
        %v3276 = vpack.c.bf16 %v2339, %v2338
        %v3277 = vpack.c.bf16 %v3137, %v3136
        %v3278 = vpack.c.bf16 %v3233, %v3232
        %v3279 = vpack.c.bf16 %v2341, %v2340
        %v3280 = vpack.c.bf16 %v3139, %v3138
        %v3281 = vpack.c.bf16 %v3235, %v3234
        %v3282 = vpack.c.bf16 %v2343, %v2342
        %v3283 = vpack.c.bf16 %v3141, %v3140
        %v3284 = vpack.c.bf16 %v3237, %v3236
        %v3285 = vpack.c.bf16 %v2345, %v2344
        %v3286 = vld [vmem:[%s5] sm:$0xf]
        %v3287 = vld [vmem:[%s5 + $0x4] sm:$0xf]
        %v3288 = vld [vmem:[%s5 + $0x8] sm:$0xf]
        %v3289 = vld [vmem:[%s5 + $0xc] sm:$0xf]
        %v3290 = vld [vmem:[%s5 + $0x10] sm:$0xf]
        %v3291 = vld [vmem:[%s5 + $0x14] sm:$0xf]
        %v3292 = vld [vmem:[%s5 + $0x18] sm:$0xf]
        %v3293 = vld [vmem:[%s5 + $0x1c] sm:$0xf]
        %v3294 = vld [vmem:[%s5 + $0x20] sm:$0xf]
        %v3295 = vld [vmem:[%s5 + $0x24] sm:$0xf]
        %v3296 = vld [vmem:[%s5 + $0x28] sm:$0xf]
        %v3297 = vld [vmem:[%s5 + $0x2c] sm:$0xf]
        %v3298 = vld [vmem:[%s5 + $0x30] sm:$0xf]
        %v3299 = vld [vmem:[%s5 + $0x34] sm:$0xf]
        %v3300 = vld [vmem:[%s5 + $0x38] sm:$0xf]
        %v3301 = vld [vmem:[%s5 + $0x3c] sm:$0xf]
        %v3302 = vld [vmem:[%s5 + $0x40] sm:$0xf]
        %v3303 = vld [vmem:[%s5 + $0x44] sm:$0xf]
        %v3304 = vld [vmem:[%s5 + $0x48] sm:$0xf]
        %v3305 = vld [vmem:[%s5 + $0x4c] sm:$0xf]
        %v3306 = vld [vmem:[%s5 + $0x50] sm:$0xf]
        %v3307 = vld [vmem:[%s5 + $0x54] sm:$0xf]
        %v3308 = vld [vmem:[%s5 + $0x58] sm:$0xf]
        %v3309 = vld [vmem:[%s5 + $0x5c] sm:$0xf]
        %v3310 = vld [vmem:[%s5 + $0x60] sm:$0xf]
        %v3311 = vld [vmem:[%s5 + $0x64] sm:$0xf]
        %v3312 = vld [vmem:[%s5 + $0x68] sm:$0xf]
        %v3313 = vld [vmem:[%s5 + $0x6c] sm:$0xf]
        %v3314 = vld [vmem:[%s5 + $0x70] sm:$0xf]
        %v3315 = vld [vmem:[%s5 + $0x74] sm:$0xf]
        %v3316 = vld [vmem:[%s5 + $0x78] sm:$0xf]
        %v3317 = vld [vmem:[%s5 + $0x7c] sm:$0xf]
        %v3318 = vld [vmem:[%s5 + $0x80] sm:$0xf]
        %v3319 = vld [vmem:[%s5 + $0x84] sm:$0xf]
        %v3320 = vld [vmem:[%s5 + $0x88] sm:$0xf]
        %v3321 = vld [vmem:[%s5 + $0x8c] sm:$0xf]
        %v3322 = vld [vmem:[%s6] sm:$0x1]
        %v3324 = vlaneseq
        %v3325 = vshrl.u32 %v3324, 7
        %v3326 = vsub.s32 0, %v3325
        %v3327 = vrot.slane %v3322, %v3326
        %v3365 = vunpack.c.l.b16 %v3286
        %v3366 = vunpack.c.l.b16 %v3287
        %v3367 = vunpack.c.l.b16 %v3288
        %v3368 = vunpack.c.l.b16 %v3289
        %v3369 = vunpack.c.l.b16 %v3290
        %v3370 = vunpack.c.l.b16 %v3291
        %v3371 = vunpack.c.l.b16 %v3292
        %v3372 = vunpack.c.l.b16 %v3293
        %v3373 = vunpack.c.l.b16 %v3294
        %v3374 = vunpack.c.l.b16 %v3295
        %v3375 = vunpack.c.l.b16 %v3296
        %v3376 = vunpack.c.l.b16 %v3297
        %v3377 = vunpack.c.l.b16 %v3298
        %v3378 = vunpack.c.l.b16 %v3299
        %v3379 = vunpack.c.l.b16 %v3300
        %v3380 = vunpack.c.l.b16 %v3301
        %v3381 = vunpack.c.l.b16 %v3302
        %v3382 = vunpack.c.l.b16 %v3303
        %v3383 = vunpack.c.l.b16 %v3304
        %v3384 = vunpack.c.l.b16 %v3305
        %v3385 = vunpack.c.l.b16 %v3306
        %v3386 = vunpack.c.l.b16 %v3307
        %v3387 = vunpack.c.l.b16 %v3308
        %v3388 = vunpack.c.l.b16 %v3309
        %v3389 = vunpack.c.l.b16 %v3310
        %v3390 = vunpack.c.l.b16 %v3311
        %v3391 = vunpack.c.l.b16 %v3312
        %v3392 = vunpack.c.l.b16 %v3313
        %v3393 = vunpack.c.l.b16 %v3314
        %v3394 = vunpack.c.l.b16 %v3315
        %v3395 = vunpack.c.l.b16 %v3316
        %v3396 = vunpack.c.l.b16 %v3317
        %v3397 = vunpack.c.l.b16 %v3318
        %v3398 = vunpack.c.l.b16 %v3319
        %v3399 = vunpack.c.l.b16 %v3320
        %v3400 = vunpack.c.l.b16 %v3321
        %v3401 = vpack.c.b16 %v3366, %v3365
        %v3402 = vpack.c.b16 %v3368, %v3367
        %v3403 = vpack.c.b16 %v3370, %v3369
        %v3404 = vpack.c.b16 %v3372, %v3371
        %v3405 = vpack.c.b16 %v3374, %v3373
        %v3406 = vpack.c.b16 %v3376, %v3375
        %v3407 = vpack.c.b16 %v3378, %v3377
        %v3408 = vpack.c.b16 %v3380, %v3379
        %v3409 = vpack.c.b16 %v3382, %v3381
        %v3410 = vpack.c.b16 %v3384, %v3383
        %v3411 = vpack.c.b16 %v3386, %v3385
        %v3412 = vpack.c.b16 %v3388, %v3387
        %v3413 = vpack.c.b16 %v3390, %v3389
        %v3414 = vpack.c.b16 %v3392, %v3391
        %v3415 = vpack.c.b16 %v3394, %v3393
        %v3416 = vpack.c.b16 %v3396, %v3395
        %v3417 = vpack.c.b16 %v3398, %v3397
        %v3418 = vpack.c.b16 %v3400, %v3399
        %v3438 = vsel %vm536, %v3240, 0
        %v3441 = vsel %vm536, %v3243, 0
        %v3444 = vsel %vm536, %v3246, 0
        %v3447 = vsel %vm536, %v3249, 0
        %v3450 = vsel %vm536, %v3252, 0
        %v3453 = vsel %vm536, %v3255, 0
        %v3456 = vsel %vm536, %v3258, 0
        %v3459 = vsel %vm536, %v3261, 0
        %v3462 = vsel %vm536, %v3264, 0
        %v3465 = vsel %vm536, %v3267, 0
        %v3468 = vsel %vm536, %v3270, 0
        %v3471 = vsel %vm536, %v3273, 0
        %v3474 = vsel %vm536, %v3276, 0
        %v3477 = vsel %vm536, %v3279, 0
        %v3480 = vsel %vm536, %v3282, 0
        %v3483 = vsel %vm536, %v3285, 0
        %3485 = vmatprep.subr.bf16.mxu0 0
        %3486 = vmatpush1.bf16.msra.mxu0 %v3408
        %3487 = vmatprep.subr.bf16.mxu0 0
        %3488 = vmatpush1.bf16.msra.mxu0 %v3407
        %3489 = vmatprep.subr.bf16.mxu0 0
        %3490 = vmatpush1.bf16.msra.mxu0 %v3406
        %3491 = vmatprep.subr.bf16.mxu0 0
        %3492 = vmatpush1.bf16.msra.mxu0 %v3405
        %3493 = vmatprep.subr.bf16.mxu0 0
        %3494 = vmatpush1.bf16.msra.mxu0 %v3404
        %3495 = vmatprep.subr.bf16.mxu0 0
        %3496 = vmatpush1.bf16.msra.mxu0 %v3403
        %3497 = vmatprep.subr.bf16.mxu0 0
        %3498 = vmatpush1.bf16.msra.mxu0 %v3402
        %3499 = vmatprep.subr.bf16.mxu0 0
        %3500 = vmatpush1.bf16.msra.mxu0 %v3401
        %3501 = vmatprep.subr.bf16.mxu0 0
        %3502 = vmatpush2.bf16.msra.mxu0 %v3416
        %3503 = vmatprep.subr.bf16.mxu0 0
        %3504 = vmatpush2.bf16.msra.mxu0 %v3415
        %3505 = vmatprep.subr.bf16.mxu0 0
        %3506 = vmatpush2.bf16.msra.mxu0 %v3414
        %3507 = vmatprep.subr.bf16.mxu0 0
        %3508 = vmatpush2.bf16.msra.mxu0 %v3413
        %3509 = vmatprep.subr.bf16.mxu0 0
        %3510 = vmatpush2.bf16.msra.mxu0 %v3412
        %3511 = vmatprep.subr.bf16.mxu0 0
        %3512 = vmatpush2.bf16.msra.mxu0 %v3411
        %3513 = vmatprep.subr.bf16.mxu0 0
        %3514 = vmatpush2.bf16.msra.mxu0 %v3410
        %3515 = vmatprep.subr.bf16.mxu0 0
        %3516 = vmatpush2.bf16.msra.mxu0 %v3409
        %3517 = vmatprep.mubr.bf16.mxu0 %v3239
        %3518 = vmatmul.mubr.bf16.gmra.mxu0 %v3238
        %v3519 = vpop.f32.mrf.mxu0
        %v3520 = vadd.f32 %v3327, %v3519
        %v3521 = vpop.f32.mrf.mxu0
        %v3522 = vpop.f32.mrf.mxu0
        %v3523 = vadd.f32 %v3327, %v3522
        %v3524 = vpop.f32.mrf.mxu0
        %3525 = vmatprep.mubr.bf16.mxu0 %v3242
        %3526 = vmatmul.mubr.bf16.gmra.mxu0 %v3241
        %v3527 = vpop.f32.mrf.mxu0
        %v3528 = vadd.f32 %v3327, %v3527
        %v3529 = vpop.f32.mrf.mxu0
        %v3530 = vpop.f32.mrf.mxu0
        %v3531 = vadd.f32 %v3327, %v3530
        %v3532 = vpop.f32.mrf.mxu0
        %3533 = vmatprep.mubr.bf16.mxu0 %v3245
        %3534 = vmatmul.mubr.bf16.gmra.mxu0 %v3244
        %v3535 = vpop.f32.mrf.mxu0
        %v3536 = vadd.f32 %v3327, %v3535
        %v3537 = vpop.f32.mrf.mxu0
        %v3538 = vpop.f32.mrf.mxu0
        %v3539 = vadd.f32 %v3327, %v3538
        %v3540 = vpop.f32.mrf.mxu0
        %3541 = vmatprep.mubr.bf16.mxu0 %v3248
        %3542 = vmatmul.mubr.bf16.gmra.mxu0 %v3247
        %v3543 = vpop.f32.mrf.mxu0
        %v3544 = vadd.f32 %v3327, %v3543
        %v3545 = vpop.f32.mrf.mxu0
        %v3546 = vpop.f32.mrf.mxu0
        %v3547 = vadd.f32 %v3327, %v3546
        %v3548 = vpop.f32.mrf.mxu0
        %3549 = vmatprep.mubr.bf16.mxu0 %v3251
        %3550 = vmatmul.mubr.bf16.gmra.mxu0 %v3250
        %v3551 = vpop.f32.mrf.mxu0
        %v3552 = vadd.f32 %v3327, %v3551
        %v3553 = vpop.f32.mrf.mxu0
        %v3554 = vpop.f32.mrf.mxu0
        %v3555 = vadd.f32 %v3327, %v3554
        %v3556 = vpop.f32.mrf.mxu0
        %3557 = vmatprep.mubr.bf16.mxu0 %v3254
        %3558 = vmatmul.mubr.bf16.gmra.mxu0 %v3253
        %v3559 = vpop.f32.mrf.mxu0
        %v3560 = vadd.f32 %v3327, %v3559
        %v3561 = vpop.f32.mrf.mxu0
        %v3562 = vpop.f32.mrf.mxu0
        %v3563 = vadd.f32 %v3327, %v3562
        %v3564 = vpop.f32.mrf.mxu0
        %3565 = vmatprep.mubr.bf16.mxu0 %v3257
        %3566 = vmatmul.mubr.bf16.gmra.mxu0 %v3256
        %v3567 = vpop.f32.mrf.mxu0
        %v3568 = vadd.f32 %v3327, %v3567
        %v3569 = vpop.f32.mrf.mxu0
        %v3570 = vpop.f32.mrf.mxu0
        %v3571 = vadd.f32 %v3327, %v3570
        %v3572 = vpop.f32.mrf.mxu0
        %3573 = vmatprep.mubr.bf16.mxu0 %v3260
        %3574 = vmatmul.mubr.bf16.gmra.mxu0 %v3259
        %v3575 = vpop.f32.mrf.mxu0
        %v3576 = vadd.f32 %v3327, %v3575
        %v3577 = vpop.f32.mrf.mxu0
        %v3578 = vpop.f32.mrf.mxu0
        %v3579 = vadd.f32 %v3327, %v3578
        %v3580 = vpop.f32.mrf.mxu0
        %3581 = vmatprep.mubr.bf16.mxu0 %v3263
        %3582 = vmatmul.mubr.bf16.gmra.mxu0 %v3262
        %v3583 = vpop.f32.mrf.mxu0
        %v3584 = vadd.f32 %v3327, %v3583
        %v3585 = vpop.f32.mrf.mxu0
        %v3586 = vpop.f32.mrf.mxu0
        %v3587 = vadd.f32 %v3327, %v3586
        %v3588 = vpop.f32.mrf.mxu0
        %3589 = vmatprep.mubr.bf16.mxu0 %v3266
        %3590 = vmatmul.mubr.bf16.gmra.mxu0 %v3265
        %v3591 = vpop.f32.mrf.mxu0
        %v3592 = vadd.f32 %v3327, %v3591
        %v3593 = vpop.f32.mrf.mxu0
        %v3594 = vpop.f32.mrf.mxu0
        %v3595 = vadd.f32 %v3327, %v3594
        %v3596 = vpop.f32.mrf.mxu0
        %3597 = vmatprep.mubr.bf16.mxu0 %v3269
        %3598 = vmatmul.mubr.bf16.gmra.mxu0 %v3268
        %v3599 = vpop.f32.mrf.mxu0
        %v3600 = vadd.f32 %v3327, %v3599
        %v3601 = vpop.f32.mrf.mxu0
        %v3602 = vpop.f32.mrf.mxu0
        %v3603 = vadd.f32 %v3327, %v3602
        %v3604 = vpop.f32.mrf.mxu0
        %3605 = vmatprep.mubr.bf16.mxu0 %v3272
        %3606 = vmatmul.mubr.bf16.gmra.mxu0 %v3271
        %v3607 = vpop.f32.mrf.mxu0
        %v3608 = vadd.f32 %v3327, %v3607
        %v3609 = vpop.f32.mrf.mxu0
        %v3610 = vpop.f32.mrf.mxu0
        %v3611 = vadd.f32 %v3327, %v3610
        %v3612 = vpop.f32.mrf.mxu0
        %3613 = vmatprep.mubr.bf16.mxu0 %v3275
        %3614 = vmatmul.mubr.bf16.gmra.mxu0 %v3274
        %v3615 = vpop.f32.mrf.mxu0
        %v3616 = vadd.f32 %v3327, %v3615
        %v3617 = vpop.f32.mrf.mxu0
        %v3618 = vpop.f32.mrf.mxu0
        %v3619 = vadd.f32 %v3327, %v3618
        %v3620 = vpop.f32.mrf.mxu0
        %3621 = vmatprep.mubr.bf16.mxu0 %v3278
        %3622 = vmatmul.mubr.bf16.gmra.mxu0 %v3277
        %v3623 = vpop.f32.mrf.mxu0
        %v3624 = vadd.f32 %v3327, %v3623
        %v3625 = vpop.f32.mrf.mxu0
        %v3626 = vpop.f32.mrf.mxu0
        %v3627 = vadd.f32 %v3327, %v3626
        %v3628 = vpop.f32.mrf.mxu0
        %3629 = vmatprep.mubr.bf16.mxu0 %v3281
        %3630 = vmatmul.mubr.bf16.gmra.mxu0 %v3280
        %v3631 = vpop.f32.mrf.mxu0
        %v3632 = vadd.f32 %v3327, %v3631
        %v3633 = vpop.f32.mrf.mxu0
        %v3634 = vpop.f32.mrf.mxu0
        %v3635 = vadd.f32 %v3327, %v3634
        %v3636 = vpop.f32.mrf.mxu0
        %3637 = vmatprep.mubr.bf16.mxu0 %v3284
        %3638 = vmatmul.mubr.bf16.gmra.mxu0 %v3283
        %v3639 = vpop.f32.mrf.mxu0
        %v3640 = vadd.f32 %v3327, %v3639
        %v3641 = vpop.f32.mrf.mxu0
        %v3642 = vpop.f32.mrf.mxu0
        %v3643 = vadd.f32 %v3327, %v3642
        %v3644 = vpop.f32.mrf.mxu0
        %3645 = vdwg.mxu0
        %3646 = vmatprep.subr.bf16.mxu0 0
        %3647 = vmatpush1.bf16.msra.mxu0 0
        %3648 = vmatprep.subr.bf16.mxu0 0
        %3649 = vmatpush1.bf16.msra.mxu0 0
        %3650 = vmatprep.subr.bf16.mxu0 0
        %3651 = vmatpush1.bf16.msra.mxu0 0
        %3652 = vmatprep.subr.bf16.mxu0 0
        %3653 = vmatpush1.bf16.msra.mxu0 0
        %3654 = vmatprep.subr.bf16.mxu0 0
        %3655 = vmatpush1.bf16.msra.mxu0 0
        %3656 = vmatprep.subr.bf16.mxu0 0
        %3657 = vmatpush1.bf16.msra.mxu0 0
        %3658 = vmatprep.subr.bf16.mxu0 0
        %3659 = vmatpush1.bf16.msra.mxu0 %v3418
        %3660 = vmatprep.subr.bf16.mxu0 0
        %3661 = vmatpush1.bf16.msra.mxu0 %v3417
        %3662 = vmatprep.subr.bf16.mxu0 0
        %3663 = vmatpush2.bf16.msra.mxu0 0
        %3664 = vmatprep.subr.bf16.mxu0 0
        %3665 = vmatpush2.bf16.msra.mxu0 0
        %3666 = vmatprep.subr.bf16.mxu0 0
        %3667 = vmatpush2.bf16.msra.mxu0 0
        %3668 = vmatprep.subr.bf16.mxu0 0
        %3669 = vmatpush2.bf16.msra.mxu0 0
        %3670 = vmatprep.subr.bf16.mxu0 0
        %3671 = vmatpush2.bf16.msra.mxu0 0
        %3672 = vmatprep.subr.bf16.mxu0 0
        %3673 = vmatpush2.bf16.msra.mxu0 0
        %3674 = vmatprep.subr.bf16.mxu0 0
        %3675 = vmatpush2.bf16.msra.mxu0 0
        %3676 = vmatprep.subr.bf16.mxu0 0
        %3677 = vmatpush2.bf16.msra.mxu0 0
        %3678 = vmatprep.mubr.bf16.mxu0 0
        %3679 = vmatmul.mubr.bf16.gmra.mxu0 %v3438
        %v3680 = vpop.f32.mrf.mxu0
        %v3681 = vadd.f32 %v3520, %v3680
        %v3682 = vpop.f32.mrf.mxu0
        %v3683 = vpop.f32.mrf.mxu0
        %v3684 = vadd.f32 %v3523, %v3683
        %v3685 = vpop.f32.mrf.mxu0
        %3686 = vmatprep.mubr.bf16.mxu0 0
        %3687 = vmatmul.mubr.bf16.gmra.mxu0 %v3441
        %v3688 = vpop.f32.mrf.mxu0
        %v3689 = vadd.f32 %v3528, %v3688
        %v3690 = vpop.f32.mrf.mxu0
        %v3691 = vpop.f32.mrf.mxu0
        %v3692 = vadd.f32 %v3531, %v3691
        %v3693 = vpop.f32.mrf.mxu0
        %3694 = vmatprep.mubr.bf16.mxu0 0
        %3695 = vmatmul.mubr.bf16.gmra.mxu0 %v3444
        %v3696 = vpop.f32.mrf.mxu0
        %v3697 = vadd.f32 %v3536, %v3696
        %v3698 = vpop.f32.mrf.mxu0
        %v3699 = vpop.f32.mrf.mxu0
        %v3700 = vadd.f32 %v3539, %v3699
        %v3701 = vpop.f32.mrf.mxu0
        %3702 = vmatprep.mubr.bf16.mxu0 0
        %3703 = vmatmul.mubr.bf16.gmra.mxu0 %v3447
        %v3704 = vpop.f32.mrf.mxu0
        %v3705 = vadd.f32 %v3544, %v3704
        %v3706 = vpop.f32.mrf.mxu0
        %v3707 = vpop.f32.mrf.mxu0
        %v3708 = vadd.f32 %v3547, %v3707
        %v3709 = vpop.f32.mrf.mxu0
        %3710 = vmatprep.mubr.bf16.mxu0 0
        %3711 = vmatmul.mubr.bf16.gmra.mxu0 %v3450
        %v3712 = vpop.f32.mrf.mxu0
        %v3713 = vadd.f32 %v3552, %v3712
        %v3714 = vpop.f32.mrf.mxu0
        %v3715 = vpop.f32.mrf.mxu0
        %v3716 = vadd.f32 %v3555, %v3715
        %v3717 = vpop.f32.mrf.mxu0
        %3718 = vmatprep.mubr.bf16.mxu0 0
        %3719 = vmatmul.mubr.bf16.gmra.mxu0 %v3453
        %v3720 = vpop.f32.mrf.mxu0
        %v3721 = vadd.f32 %v3560, %v3720
        %v3722 = vpop.f32.mrf.mxu0
        %v3723 = vpop.f32.mrf.mxu0
        %v3724 = vadd.f32 %v3563, %v3723
        %v3725 = vpop.f32.mrf.mxu0
        %3726 = vmatprep.mubr.bf16.mxu0 0
        %3727 = vmatmul.mubr.bf16.gmra.mxu0 %v3456
        %v3728 = vpop.f32.mrf.mxu0
        %v3729 = vadd.f32 %v3568, %v3728
        %v3730 = vpop.f32.mrf.mxu0
        %v3731 = vpop.f32.mrf.mxu0
        %v3732 = vadd.f32 %v3571, %v3731
        %v3733 = vpop.f32.mrf.mxu0
        %3734 = vmatprep.mubr.bf16.mxu0 0
        %3735 = vmatmul.mubr.bf16.gmra.mxu0 %v3459
        %v3736 = vpop.f32.mrf.mxu0
        %v3737 = vadd.f32 %v3576, %v3736
        %v3738 = vpop.f32.mrf.mxu0
        %v3739 = vpop.f32.mrf.mxu0
        %v3740 = vadd.f32 %v3579, %v3739
        %v3741 = vpop.f32.mrf.mxu0
        %3742 = vmatprep.mubr.bf16.mxu0 0
        %3743 = vmatmul.mubr.bf16.gmra.mxu0 %v3462
        %v3744 = vpop.f32.mrf.mxu0
        %v3745 = vadd.f32 %v3584, %v3744
        %v3746 = vpop.f32.mrf.mxu0
        %v3747 = vpop.f32.mrf.mxu0
        %v3748 = vadd.f32 %v3587, %v3747
        %v3749 = vpop.f32.mrf.mxu0
        %3750 = vmatprep.mubr.bf16.mxu0 0
        %3751 = vmatmul.mubr.bf16.gmra.mxu0 %v3465
        %v3752 = vpop.f32.mrf.mxu0
        %v3753 = vadd.f32 %v3592, %v3752
        %v3754 = vpop.f32.mrf.mxu0
        %v3755 = vpop.f32.mrf.mxu0
        %v3756 = vadd.f32 %v3595, %v3755
        %v3757 = vpop.f32.mrf.mxu0
        %3758 = vmatprep.mubr.bf16.mxu0 0
        %3759 = vmatmul.mubr.bf16.gmra.mxu0 %v3468
        %v3760 = vpop.f32.mrf.mxu0
        %v3761 = vadd.f32 %v3600, %v3760
        %v3762 = vpop.f32.mrf.mxu0
        %v3763 = vpop.f32.mrf.mxu0
        %v3764 = vadd.f32 %v3603, %v3763
        %v3765 = vpop.f32.mrf.mxu0
        %3766 = vmatprep.mubr.bf16.mxu0 0
        %3767 = vmatmul.mubr.bf16.gmra.mxu0 %v3471
        %v3768 = vpop.f32.mrf.mxu0
        %v3769 = vadd.f32 %v3608, %v3768
        %v3770 = vpop.f32.mrf.mxu0
        %v3771 = vpop.f32.mrf.mxu0
        %v3772 = vadd.f32 %v3611, %v3771
        %v3773 = vpop.f32.mrf.mxu0
        %3774 = vmatprep.mubr.bf16.mxu0 0
        %3775 = vmatmul.mubr.bf16.gmra.mxu0 %v3474
        %v3776 = vpop.f32.mrf.mxu0
        %v3777 = vadd.f32 %v3616, %v3776
        %v3778 = vpop.f32.mrf.mxu0
        %v3779 = vpop.f32.mrf.mxu0
        %v3780 = vadd.f32 %v3619, %v3779
        %v3781 = vpop.f32.mrf.mxu0
        %3782 = vmatprep.mubr.bf16.mxu0 0
        %3783 = vmatmul.mubr.bf16.gmra.mxu0 %v3477
        %v3784 = vpop.f32.mrf.mxu0
        %v3785 = vadd.f32 %v3624, %v3784
        %v3786 = vpop.f32.mrf.mxu0
        %v3787 = vpop.f32.mrf.mxu0
        %v3788 = vadd.f32 %v3627, %v3787
        %v3789 = vpop.f32.mrf.mxu0
        %3790 = vmatprep.mubr.bf16.mxu0 0
        %3791 = vmatmul.mubr.bf16.gmra.mxu0 %v3480
        %v3792 = vpop.f32.mrf.mxu0
        %v3793 = vadd.f32 %v3632, %v3792
        %v3794 = vpop.f32.mrf.mxu0
        %v3795 = vpop.f32.mrf.mxu0
        %v3796 = vadd.f32 %v3635, %v3795
        %v3797 = vpop.f32.mrf.mxu0
        %3798 = vmatprep.mubr.bf16.mxu0 0
        %3799 = vmatmul.mubr.bf16.gmra.mxu0 %v3483
        %v3800 = vpop.f32.mrf.mxu0
        %v3801 = vadd.f32 %v3640, %v3800
        %v3802 = vpop.f32.mrf.mxu0
        %v3803 = vpop.f32.mrf.mxu0
        %v3804 = vadd.f32 %v3643, %v3803
        %v3805 = vpop.f32.mrf.mxu0
        %3806 = vdwg.mxu0
        %v3807 = vld [vmem:[%s7] sm:$0x1]
        %v3808 = vld [vmem:[%s8] sm:$0x1]
        %v3809 = vld [vmem:[%s9] sm:$0xff]
        %v3810 = vld [vmem:[%s9 + $0x8] sm:$0xff]
        %v3811 = vld [vmem:[%s9 + $0x10] sm:$0xff]
        %v3812 = vld [vmem:[%s9 + $0x18] sm:$0xff]
        %v3813 = vld [vmem:[%s9 + $0x20] sm:$0xff]
        %v3814 = vld [vmem:[%s9 + $0x28] sm:$0xff]
        %v3815 = vld [vmem:[%s9 + $0x30] sm:$0xff]
        %v3816 = vld [vmem:[%s9 + $0x38] sm:$0xff]
        %v3817 = vld [vmem:[%s10] sm:$0xff]
        %v3818 = vld [vmem:[%s10 + $0x8] sm:$0xff]
        %v3819 = vld [vmem:[%s10 + $0x10] sm:$0xff]
        %v3820 = vld [vmem:[%s10 + $0x18] sm:$0xff]
        %v3821 = vsel %vm3076, %v3681, 0.0
        %v3822 = vsel %vm3076, %v3684, 0.0
        %v3823 = vadd.f32 %v3821, %v3822
        %v3824 = vsel %vm3076, %v3689, 0.0
        %v3825 = vadd.f32 %v3823, %v3824
        %v3826 = vsel %vm3076, %v3692, 0.0
        %v3827 = vadd.f32 %v3825, %v3826
        %v3828 = vsel %vm3076, %v3697, 0.0
        %v3829 = vadd.f32 %v3827, %v3828
        %v3830 = vsel %vm3076, %v3700, 0.0
        %v3831 = vadd.f32 %v3829, %v3830
        %v3832 = vsel %vm3076, %v3705, 0.0
        %v3833 = vadd.f32 %v3831, %v3832
        %v3834 = vsel %vm3076, %v3708, 0.0
        %v3835 = vadd.f32 %v3833, %v3834
        %v3836 = vsel %vm3076, %v3713, 0.0
        %v3837 = vadd.f32 %v3835, %v3836
        %v3838 = vsel %vm3076, %v3716, 0.0
        %v3839 = vadd.f32 %v3837, %v3838
        %v3840 = vsel %vm3076, %v3721, 0.0
        %v3841 = vadd.f32 %v3839, %v3840
        %v3842 = vsel %vm3076, %v3724, 0.0
        %v3843 = vadd.f32 %v3841, %v3842
        %v3844 = vsel %vm3076, %v3729, 0.0
        %v3845 = vadd.f32 %v3843, %v3844
        %v3846 = vsel %vm3076, %v3732, 0.0
        %v3847 = vadd.f32 %v3845, %v3846
        %v3848 = vsel %vm3076, %v3737, 0.0
        %v3849 = vadd.f32 %v3847, %v3848
        %v3850 = vsel %vm3076, %v3740, 0.0
        %v3851 = vadd.f32 %v3849, %v3850
        %v3852 = vsel %vm3076, %v3745, 0.0
        %v3853 = vadd.f32 %v3851, %v3852
        %v3854 = vsel %vm3076, %v3748, 0.0
        %v3855 = vadd.f32 %v3853, %v3854
        %v3856 = vsel %vm3076, %v3753, 0.0
        %v3857 = vadd.f32 %v3855, %v3856
        %v3858 = vsel %vm3076, %v3756, 0.0
        %v3859 = vadd.f32 %v3857, %v3858
        %v3860 = vsel %vm3076, %v3761, 0.0
        %v3861 = vadd.f32 %v3859, %v3860
        %v3862 = vsel %vm3076, %v3764, 0.0
        %v3863 = vadd.f32 %v3861, %v3862
        %v3864 = vsel %vm3076, %v3769, 0.0
        %v3865 = vadd.f32 %v3863, %v3864
        %v3866 = vsel %vm3076, %v3772, 0.0
        %v3867 = vadd.f32 %v3865, %v3866
        %v3868 = vsel %vm3076, %v3777, 0.0
        %v3869 = vadd.f32 %v3867, %v3868
        %v3870 = vsel %vm3076, %v3780, 0.0
        %v3871 = vadd.f32 %v3869, %v3870
        %v3872 = vsel %vm3076, %v3785, 0.0
        %v3873 = vadd.f32 %v3871, %v3872
        %v3874 = vsel %vm3076, %v3788, 0.0
        %v3875 = vadd.f32 %v3873, %v3874
        %v3876 = vsel %vm3076, %v3793, 0.0
        %v3877 = vadd.f32 %v3875, %v3876
        %v3878 = vsel %vm3076, %v3796, 0.0
        %v3879 = vadd.f32 %v3877, %v3878
        %v3880 = vsel %vm3076, %v3801, 0.0
        %v3881 = vadd.f32 %v3879, %v3880
        %v3882 = vsel %vm3076, %v3804, 0.0
        %v3883 = vadd.f32 %v3881, %v3882
        %v3884 = vrot.slane %v3883, 4
        %v3885 = vadd.f32 %v3883, %v3884
        %v3886 = vrot.slane %v3885, 2
        %v3887 = vadd.f32 %v3885, %v3886
        %v3888 = vrot.slane %v3887, 1
        %v3889 = vadd.f32 %v3887, %v3888
        %v3890 = vmul.f32 %v3681, %v3681
        %v3891 = vmul.f32 %v3684, %v3684
        %v3892 = vmul.f32 %v3689, %v3689
        %v3893 = vmul.f32 %v3692, %v3692
        %v3894 = vmul.f32 %v3697, %v3697
        %v3895 = vmul.f32 %v3700, %v3700
        %v3896 = vmul.f32 %v3705, %v3705
        %v3897 = vmul.f32 %v3708, %v3708
        %v3898 = vmul.f32 %v3713, %v3713
        %v3899 = vmul.f32 %v3716, %v3716
        %v3900 = vmul.f32 %v3721, %v3721
        %v3901 = vmul.f32 %v3724, %v3724
        %v3902 = vmul.f32 %v3729, %v3729
        %v3903 = vmul.f32 %v3732, %v3732
        %v3904 = vmul.f32 %v3737, %v3737
        %v3905 = vmul.f32 %v3740, %v3740
        %v3906 = vmul.f32 %v3745, %v3745
        %v3907 = vmul.f32 %v3748, %v3748
        %v3908 = vmul.f32 %v3753, %v3753
        %v3909 = vmul.f32 %v3756, %v3756
        %v3910 = vmul.f32 %v3761, %v3761
        %v3911 = vmul.f32 %v3764, %v3764
        %v3912 = vmul.f32 %v3769, %v3769
        %v3913 = vmul.f32 %v3772, %v3772
        %v3914 = vmul.f32 %v3777, %v3777
        %v3915 = vmul.f32 %v3780, %v3780
        %v3916 = vmul.f32 %v3785, %v3785
        %v3917 = vmul.f32 %v3788, %v3788
        %v3918 = vmul.f32 %v3793, %v3793
        %v3919 = vmul.f32 %v3796, %v3796
        %v3920 = vmul.f32 %v3801, %v3801
        %v3921 = vmul.f32 %v3804, %v3804
        %v3922 = vsel %vm3076, %v3890, 0.0
        %v3923 = vsel %vm3076, %v3891, 0.0
        %v3924 = vadd.f32 %v3922, %v3923
        %v3925 = vsel %vm3076, %v3892, 0.0
        %v3926 = vadd.f32 %v3924, %v3925
        %v3927 = vsel %vm3076, %v3893, 0.0
        %v3928 = vadd.f32 %v3926, %v3927
        %v3929 = vsel %vm3076, %v3894, 0.0
        %v3930 = vadd.f32 %v3928, %v3929
        %v3931 = vsel %vm3076, %v3895, 0.0
        %v3932 = vadd.f32 %v3930, %v3931
        %v3933 = vsel %vm3076, %v3896, 0.0
        %v3934 = vadd.f32 %v3932, %v3933
        %v3935 = vsel %vm3076, %v3897, 0.0
        %v3936 = vadd.f32 %v3934, %v3935
        %v3937 = vsel %vm3076, %v3898, 0.0
        %v3938 = vadd.f32 %v3936, %v3937
        %v3939 = vsel %vm3076, %v3899, 0.0
        %v3940 = vadd.f32 %v3938, %v3939
        %v3941 = vsel %vm3076, %v3900, 0.0
        %v3942 = vadd.f32 %v3940, %v3941
        %v3943 = vsel %vm3076, %v3901, 0.0
        %v3944 = vadd.f32 %v3942, %v3943
        %v3945 = vsel %vm3076, %v3902, 0.0
        %v3946 = vadd.f32 %v3944, %v3945
        %v3947 = vsel %vm3076, %v3903, 0.0
        %v3948 = vadd.f32 %v3946, %v3947
        %v3949 = vsel %vm3076, %v3904, 0.0
        %v3950 = vadd.f32 %v3948, %v3949
        %v3951 = vsel %vm3076, %v3905, 0.0
        %v3952 = vadd.f32 %v3950, %v3951
        %v3953 = vsel %vm3076, %v3906, 0.0
        %v3954 = vadd.f32 %v3952, %v3953
        %v3955 = vsel %vm3076, %v3907, 0.0
        %v3956 = vadd.f32 %v3954, %v3955
        %v3957 = vsel %vm3076, %v3908, 0.0
        %v3958 = vadd.f32 %v3956, %v3957
        %v3959 = vsel %vm3076, %v3909, 0.0
        %v3960 = vadd.f32 %v3958, %v3959
        %v3961 = vsel %vm3076, %v3910, 0.0
        %v3962 = vadd.f32 %v3960, %v3961
        %v3963 = vsel %vm3076, %v3911, 0.0
        %v3964 = vadd.f32 %v3962, %v3963
        %v3965 = vsel %vm3076, %v3912, 0.0
        %v3966 = vadd.f32 %v3964, %v3965
        %v3967 = vsel %vm3076, %v3913, 0.0
        %v3968 = vadd.f32 %v3966, %v3967
        %v3969 = vsel %vm3076, %v3914, 0.0
        %v3970 = vadd.f32 %v3968, %v3969
        %v3971 = vsel %vm3076, %v3915, 0.0
        %v3972 = vadd.f32 %v3970, %v3971
        %v3973 = vsel %vm3076, %v3916, 0.0
        %v3974 = vadd.f32 %v3972, %v3973
        %v3975 = vsel %vm3076, %v3917, 0.0
        %v3976 = vadd.f32 %v3974, %v3975
        %v3977 = vsel %vm3076, %v3918, 0.0
        %v3978 = vadd.f32 %v3976, %v3977
        %v3979 = vsel %vm3076, %v3919, 0.0
        %v3980 = vadd.f32 %v3978, %v3979
        %v3981 = vsel %vm3076, %v3920, 0.0
        %v3982 = vadd.f32 %v3980, %v3981
        %v3983 = vsel %vm3076, %v3921, 0.0
        %v3984 = vadd.f32 %v3982, %v3983
        %v3985 = vrot.slane %v3984, 4
        %v3986 = vadd.f32 %v3984, %v3985
        %v3987 = vrot.slane %v3986, 2
        %v3988 = vadd.f32 %v3986, %v3987
        %v3989 = vrot.slane %v3988, 1
        %v3990 = vadd.f32 %v3988, %v3989
        %v3992 = vsel %vm3076, %v3889, 0
        %3994 = vmatprep.subr.mxu0 0.0
        %3995 = vmatpush1.msra.mxu0 0.0
        %3996 = vmatprep.subr.mxu0 0.0
        %3997 = vmatpush1.msra.mxu0 0.0
        %3998 = vmatprep.subr.mxu0 0.0
        %3999 = vmatpush1.msra.mxu0 0.0
        %4000 = vmatprep.subr.mxu0 0.0
        %4001 = vmatpush1.msra.mxu0 0.0
        %4002 = vmatprep.subr.mxu0 0.0
        %4003 = vmatpush1.msra.mxu0 0.0
        %4004 = vmatprep.subr.mxu0 0.0
        %4005 = vmatpush1.msra.mxu0 0.0
        %4006 = vmatprep.subr.mxu0 0.0
        %4007 = vmatpush1.msra.mxu0 0.0
        %4008 = vmatprep.subr.mxu0 0.0
        %4009 = vmatpush1.msra.mxu0 0.0
        %4010 = vmatprep.subr.mxu0 0.0
        %4011 = vmatpush1.msra.mxu0 %v3816
        %4012 = vmatprep.subr.mxu0 0.0
        %4013 = vmatpush1.msra.mxu0 %v3815
        %4014 = vmatprep.subr.mxu0 0.0
        %4015 = vmatpush1.msra.mxu0 %v3814
        %4016 = vmatprep.subr.mxu0 0.0
        %4017 = vmatpush1.msra.mxu0 %v3813
        %4018 = vmatprep.subr.mxu0 0.0
        %4019 = vmatpush1.msra.mxu0 %v3812
        %4020 = vmatprep.subr.mxu0 0.0
        %4021 = vmatpush1.msra.mxu0 %v3811
        %4022 = vmatprep.subr.mxu0 0.0
        %4023 = vmatpush1.msra.mxu0 %v3810
        %4024 = vmatprep.subr.mxu0 0.0
        %4025 = vmatpush1.msra.mxu0 %v3809
        %4026 = vmatprep.subr.mxu0 0.0
        %4027 = vmatpush2.msra.mxu0 0.0
        %4028 = vmatprep.subr.mxu0 0.0
        %4029 = vmatpush2.msra.mxu0 0.0
        %4030 = vmatprep.subr.mxu0 0.0
        %4031 = vmatpush2.msra.mxu0 0.0
        %4032 = vmatprep.subr.mxu0 0.0
        %4033 = vmatpush2.msra.mxu0 0.0
        %4034 = vmatprep.subr.mxu0 0.0
        %4035 = vmatpush2.msra.mxu0 0.0
        %4036 = vmatprep.subr.mxu0 0.0
        %4037 = vmatpush2.msra.mxu0 0.0
        %4038 = vmatprep.subr.mxu0 0.0
        %4039 = vmatpush2.msra.mxu0 0.0
        %4040 = vmatprep.subr.mxu0 0.0
        %4041 = vmatpush2.msra.mxu0 0.0
        %4042 = vmatprep.subr.mxu0 0.0
        %4043 = vmatpush2.msra.mxu0 0.0
        %4044 = vmatprep.subr.mxu0 0.0
        %4045 = vmatpush2.msra.mxu0 0.0
        %4046 = vmatprep.subr.mxu0 0.0
        %4047 = vmatpush2.msra.mxu0 0.0
        %4048 = vmatprep.subr.mxu0 0.0
        %4049 = vmatpush2.msra.mxu0 0.0
        %4050 = vmatprep.subr.mxu0 0.0
        %4051 = vmatpush2.msra.mxu0 0.0
        %4052 = vmatprep.subr.mxu0 0.0
        %4053 = vmatpush2.msra.mxu0 0.0
        %4054 = vmatprep.subr.mxu0 0.0
        %4055 = vmatpush2.msra.mxu0 0.0
        %4056 = vmatprep.subr.mxu0 0.0
        %4057 = vmatpush2.msra.mxu0 0.0
        %4058 = vmatprep.mubr.f32.mxu0 0.0
        %4059 = vmatmul.mubr.f32.gmra.mxu0 %v3992
        %v4060 = vpop.f32.mrf.mxu0
        %v4061 = vadd.f32 0.0, %v4060
        %v4062 = vpop.f32.mrf.mxu0
        %4063 = vdwg.mxu0
        %v4065 = vsel %vm3076, %v3990, 0
        %4067 = vmatprep.subr.mxu0 0.0
        %4068 = vmatpush1.msra.mxu0 0.0
        %4069 = vmatprep.subr.mxu0 0.0
        %4070 = vmatpush1.msra.mxu0 0.0
        %4071 = vmatprep.subr.mxu0 0.0
        %4072 = vmatpush1.msra.mxu0 0.0
        %4073 = vmatprep.subr.mxu0 0.0
        %4074 = vmatpush1.msra.mxu0 0.0
        %4075 = vmatprep.subr.mxu0 0.0
        %4076 = vmatpush1.msra.mxu0 0.0
        %4077 = vmatprep.subr.mxu0 0.0
        %4078 = vmatpush1.msra.mxu0 0.0
        %4079 = vmatprep.subr.mxu0 0.0
        %4080 = vmatpush1.msra.mxu0 0.0
        %4081 = vmatprep.subr.mxu0 0.0
        %4082 = vmatpush1.msra.mxu0 0.0
        %4083 = vmatprep.subr.mxu0 0.0
        %4084 = vmatpush1.msra.mxu0 %v3816
        %4085 = vmatprep.subr.mxu0 0.0
        %4086 = vmatpush1.msra.mxu0 %v3815
        %4087 = vmatprep.subr.mxu0 0.0
        %4088 = vmatpush1.msra.mxu0 %v3814
        %4089 = vmatprep.subr.mxu0 0.0
        %4090 = vmatpush1.msra.mxu0 %v3813
        %4091 = vmatprep.subr.mxu0 0.0
        %4092 = vmatpush1.msra.mxu0 %v3812
        %4093 = vmatprep.subr.mxu0 0.0
        %4094 = vmatpush1.msra.mxu0 %v3811
        %4095 = vmatprep.subr.mxu0 0.0
        %4096 = vmatpush1.msra.mxu0 %v3810
        %4097 = vmatprep.subr.mxu0 0.0
        %4098 = vmatpush1.msra.mxu0 %v3809
        %4099 = vmatprep.subr.mxu0 0.0
        %4100 = vmatpush2.msra.mxu0 0.0
        %4101 = vmatprep.subr.mxu0 0.0
        %4102 = vmatpush2.msra.mxu0 0.0
        %4103 = vmatprep.subr.mxu0 0.0
        %4104 = vmatpush2.msra.mxu0 0.0
        %4105 = vmatprep.subr.mxu0 0.0
        %4106 = vmatpush2.msra.mxu0 0.0
        %4107 = vmatprep.subr.mxu0 0.0
        %4108 = vmatpush2.msra.mxu0 0.0
        %4109 = vmatprep.subr.mxu0 0.0
        %4110 = vmatpush2.msra.mxu0 0.0
        %4111 = vmatprep.subr.mxu0 0.0
        %4112 = vmatpush2.msra.mxu0 0.0
        %4113 = vmatprep.subr.mxu0 0.0
        %4114 = vmatpush2.msra.mxu0 0.0
        %4115 = vmatprep.subr.mxu0 0.0
        %4116 = vmatpush2.msra.mxu0 0.0
        %4117 = vmatprep.subr.mxu0 0.0
        %4118 = vmatpush2.msra.mxu0 0.0
        %4119 = vmatprep.subr.mxu0 0.0
        %4120 = vmatpush2.msra.mxu0 0.0
        %4121 = vmatprep.subr.mxu0 0.0
        %4122 = vmatpush2.msra.mxu0 0.0
        %4123 = vmatprep.subr.mxu0 0.0
        %4124 = vmatpush2.msra.mxu0 0.0
        %4125 = vmatprep.subr.mxu0 0.0
        %4126 = vmatpush2.msra.mxu0 0.0
        %4127 = vmatprep.subr.mxu0 0.0
        %4128 = vmatpush2.msra.mxu0 0.0
        %4129 = vmatprep.subr.mxu0 0.0
        %4130 = vmatpush2.msra.mxu0 0.0
        %4131 = vmatprep.mubr.f32.mxu0 0.0
        %4132 = vmatmul.mubr.f32.gmra.mxu0 %v4065
        %v4133 = vpop.f32.mrf.mxu0
        %v4134 = vadd.f32 0.0, %v4133
        %v4135 = vpop.f32.mrf.mxu0
        %4136 = vdwg.mxu0
        %v4137 = vrcp.pop 512.0
        %v4138 = vmul.f32 %v4061, %v4137
        %v4139 = vmul.f32 %v4134, %v4137
        %v4140 = vmul.f32 %v4138, %v4138
        %v4141 = vsub.f32 %v4139, %v4140
        %v4142 = vmax.f32 %v4141, 0.0
        %v4143 = vadd.f32 %v4142, 1e-06
        %v4144 = vrsqrt.pop %v4143
        %v4146 = vsel %vm536, %v4138, 0
        %4148 = vmatprep.subr.mxu0 0.0
        %4149 = vmatpush1.msra.mxu0 0.0
        %4150 = vmatprep.subr.mxu0 0.0
        %4151 = vmatpush1.msra.mxu0 0.0
        %4152 = vmatprep.subr.mxu0 0.0
        %4153 = vmatpush1.msra.mxu0 0.0
        %4154 = vmatprep.subr.mxu0 0.0
        %4155 = vmatpush1.msra.mxu0 0.0
        %4156 = vmatprep.subr.mxu0 0.0
        %4157 = vmatpush1.msra.mxu0 0.0
        %4158 = vmatprep.subr.mxu0 0.0
        %4159 = vmatpush1.msra.mxu0 0.0
        %4160 = vmatprep.subr.mxu0 0.0
        %4161 = vmatpush1.msra.mxu0 0.0
        %4162 = vmatprep.subr.mxu0 0.0
        %4163 = vmatpush1.msra.mxu0 0.0
        %4164 = vmatprep.subr.mxu0 0.0
        %4165 = vmatpush1.msra.mxu0 0.0
        %4166 = vmatprep.subr.mxu0 0.0
        %4167 = vmatpush1.msra.mxu0 0.0
        %4168 = vmatprep.subr.mxu0 0.0
        %4169 = vmatpush1.msra.mxu0 0.0
        %4170 = vmatprep.subr.mxu0 0.0
        %4171 = vmatpush1.msra.mxu0 0.0
        %4172 = vmatprep.subr.mxu0 0.0
        %4173 = vmatpush1.msra.mxu0 %v3820
        %4174 = vmatprep.subr.mxu0 0.0
        %4175 = vmatpush1.msra.mxu0 %v3819
        %4176 = vmatprep.subr.mxu0 0.0
        %4177 = vmatpush1.msra.mxu0 %v3818
        %4178 = vmatprep.subr.mxu0 0.0
        %4179 = vmatpush1.msra.mxu0 %v3817
        %4180 = vmatprep.subr.mxu0 0.0
        %4181 = vmatpush2.msra.mxu0 0.0
        %4182 = vmatprep.subr.mxu0 0.0
        %4183 = vmatpush2.msra.mxu0 0.0
        %4184 = vmatprep.subr.mxu0 0.0
        %4185 = vmatpush2.msra.mxu0 0.0
        %4186 = vmatprep.subr.mxu0 0.0
        %4187 = vmatpush2.msra.mxu0 0.0
        %4188 = vmatprep.subr.mxu0 0.0
        %4189 = vmatpush2.msra.mxu0 0.0
        %4190 = vmatprep.subr.mxu0 0.0
        %4191 = vmatpush2.msra.mxu0 0.0
        %4192 = vmatprep.subr.mxu0 0.0
        %4193 = vmatpush2.msra.mxu0 0.0
        %4194 = vmatprep.subr.mxu0 0.0
        %4195 = vmatpush2.msra.mxu0 0.0
        %4196 = vmatprep.subr.mxu0 0.0
        %4197 = vmatpush2.msra.mxu0 0.0
        %4198 = vmatprep.subr.mxu0 0.0
        %4199 = vmatpush2.msra.mxu0 0.0
        %4200 = vmatprep.subr.mxu0 0.0
        %4201 = vmatpush2.msra.mxu0 0.0
        %4202 = vmatprep.subr.mxu0 0.0
        %4203 = vmatpush2.msra.mxu0 0.0
        %4204 = vmatprep.subr.mxu0 0.0
        %4205 = vmatpush2.msra.mxu0 0.0
        %4206 = vmatprep.subr.mxu0 0.0
        %4207 = vmatpush2.msra.mxu0 0.0
        %4208 = vmatprep.subr.mxu0 0.0
        %4209 = vmatpush2.msra.mxu0 0.0
        %4210 = vmatprep.subr.mxu0 0.0
        %4211 = vmatpush2.msra.mxu0 0.0
        %4212 = vmatprep.mubr.f32.mxu0 0.0
        %4213 = vmatmul.mubr.f32.gmra.mxu0 %v4146
        %v4214 = vpop.f32.mrf.mxu0
        %v4215 = vadd.f32 0.0, %v4214
        %v4216 = vpop.f32.mrf.mxu0
        %4217 = vdwg.mxu0
        %v4219 = vsel %vm536, %v4144, 0
        %4221 = vmatprep.subr.mxu0 0.0
        %4222 = vmatpush1.msra.mxu0 0.0
        %4223 = vmatprep.subr.mxu0 0.0
        %4224 = vmatpush1.msra.mxu0 0.0
        %4225 = vmatprep.subr.mxu0 0.0
        %4226 = vmatpush1.msra.mxu0 0.0
        %4227 = vmatprep.subr.mxu0 0.0
        %4228 = vmatpush1.msra.mxu0 0.0
        %4229 = vmatprep.subr.mxu0 0.0
        %4230 = vmatpush1.msra.mxu0 0.0
        %4231 = vmatprep.subr.mxu0 0.0
        %4232 = vmatpush1.msra.mxu0 0.0
        %4233 = vmatprep.subr.mxu0 0.0
        %4234 = vmatpush1.msra.mxu0 0.0
        %4235 = vmatprep.subr.mxu0 0.0
        %4236 = vmatpush1.msra.mxu0 0.0
        %4237 = vmatprep.subr.mxu0 0.0
        %4238 = vmatpush1.msra.mxu0 0.0
        %4239 = vmatprep.subr.mxu0 0.0
        %4240 = vmatpush1.msra.mxu0 0.0
        %4241 = vmatprep.subr.mxu0 0.0
        %4242 = vmatpush1.msra.mxu0 0.0
        %4243 = vmatprep.subr.mxu0 0.0
        %4244 = vmatpush1.msra.mxu0 0.0
        %4245 = vmatprep.subr.mxu0 0.0
        %4246 = vmatpush1.msra.mxu0 %v3820
        %4247 = vmatprep.subr.mxu0 0.0
        %4248 = vmatpush1.msra.mxu0 %v3819
        %4249 = vmatprep.subr.mxu0 0.0
        %4250 = vmatpush1.msra.mxu0 %v3818
        %4251 = vmatprep.subr.mxu0 0.0
        %4252 = vmatpush1.msra.mxu0 %v3817
        %4253 = vmatprep.subr.mxu0 0.0
        %4254 = vmatpush2.msra.mxu0 0.0
        %4255 = vmatprep.subr.mxu0 0.0
        %4256 = vmatpush2.msra.mxu0 0.0
        %4257 = vmatprep.subr.mxu0 0.0
        %4258 = vmatpush2.msra.mxu0 0.0
        %4259 = vmatprep.subr.mxu0 0.0
        %4260 = vmatpush2.msra.mxu0 0.0
        %4261 = vmatprep.subr.mxu0 0.0
        %4262 = vmatpush2.msra.mxu0 0.0
        %4263 = vmatprep.subr.mxu0 0.0
        %4264 = vmatpush2.msra.mxu0 0.0
        %4265 = vmatprep.subr.mxu0 0.0
        %4266 = vmatpush2.msra.mxu0 0.0
        %4267 = vmatprep.subr.mxu0 0.0
        %4268 = vmatpush2.msra.mxu0 0.0
        %4269 = vmatprep.subr.mxu0 0.0
        %4270 = vmatpush2.msra.mxu0 0.0
        %4271 = vmatprep.subr.mxu0 0.0
        %4272 = vmatpush2.msra.mxu0 0.0
        %4273 = vmatprep.subr.mxu0 0.0
        %4274 = vmatpush2.msra.mxu0 0.0
        %4275 = vmatprep.subr.mxu0 0.0
        %4276 = vmatpush2.msra.mxu0 0.0
        %4277 = vmatprep.subr.mxu0 0.0
        %4278 = vmatpush2.msra.mxu0 0.0
        %4279 = vmatprep.subr.mxu0 0.0
        %4280 = vmatpush2.msra.mxu0 0.0
        %4281 = vmatprep.subr.mxu0 0.0
        %4282 = vmatpush2.msra.mxu0 0.0
        %4283 = vmatprep.subr.mxu0 0.0
        %4284 = vmatpush2.msra.mxu0 0.0
        %4285 = vmatprep.mubr.f32.mxu0 0.0
        %4286 = vmatmul.mubr.f32.gmra.mxu0 %v4219
        %v4287 = vpop.f32.mrf.mxu0
        %v4288 = vadd.f32 0.0, %v4287
        %v4289 = vpop.f32.mrf.mxu0
        %4290 = vdwg.mxu0
        %v4291 = vmul.f32 %v4288, %v3807
        %v4292 = vmul.f32 %v4215, %v4291
        %v4293 = vsub.f32 %v3808, %v4292
        %v4294 = vlaneseq
        %v4295 = vshrl.u32 %v4294, 7
        %v4296 = vsub.s32 0, %v4295
        %v4297 = vrot.slane %v4291, %v4296
        %v4298 = vmul.f32 %v3681, %v4297
        %v4299 = vmul.f32 %v3684, %v4297
        %v4300 = vmul.f32 %v3689, %v4297
        %v4301 = vmul.f32 %v3692, %v4297
        %v4302 = vmul.f32 %v3697, %v4297
        %v4303 = vmul.f32 %v3700, %v4297
        %v4304 = vmul.f32 %v3705, %v4297
        %v4305 = vmul.f32 %v3708, %v4297
        %v4306 = vmul.f32 %v3713, %v4297
        %v4307 = vmul.f32 %v3716, %v4297
        %v4308 = vmul.f32 %v3721, %v4297
        %v4309 = vmul.f32 %v3724, %v4297
        %v4310 = vmul.f32 %v3729, %v4297
        %v4311 = vmul.f32 %v3732, %v4297
        %v4312 = vmul.f32 %v3737, %v4297
        %v4313 = vmul.f32 %v3740, %v4297
        %v4314 = vmul.f32 %v3745, %v4297
        %v4315 = vmul.f32 %v3748, %v4297
        %v4316 = vmul.f32 %v3753, %v4297
        %v4317 = vmul.f32 %v3756, %v4297
        %v4318 = vmul.f32 %v3761, %v4297
        %v4319 = vmul.f32 %v3764, %v4297
        %v4320 = vmul.f32 %v3769, %v4297
        %v4321 = vmul.f32 %v3772, %v4297
        %v4322 = vmul.f32 %v3777, %v4297
        %v4323 = vmul.f32 %v3780, %v4297
        %v4324 = vmul.f32 %v3785, %v4297
        %v4325 = vmul.f32 %v3788, %v4297
        %v4326 = vmul.f32 %v3793, %v4297
        %v4327 = vmul.f32 %v3796, %v4297
        %v4328 = vmul.f32 %v3801, %v4297
        %v4329 = vmul.f32 %v3804, %v4297
        %v4331 = vlaneseq
        %v4332 = vshrl.u32 %v4331, 7
        %v4333 = vsub.s32 0, %v4332
        %v4334 = vrot.slane %v4293, %v4333
        %v4336 = vadd.f32 %v4298, %v4334
        %v4337 = vadd.f32 %v4299, %v4334
        %v4338 = vadd.f32 %v4300, %v4334
        %v4339 = vadd.f32 %v4301, %v4334
        %v4340 = vadd.f32 %v4302, %v4334
        %v4341 = vadd.f32 %v4303, %v4334
        %v4342 = vadd.f32 %v4304, %v4334
        %v4343 = vadd.f32 %v4305, %v4334
        %v4344 = vadd.f32 %v4306, %v4334
        %v4345 = vadd.f32 %v4307, %v4334
        %v4346 = vadd.f32 %v4308, %v4334
        %v4347 = vadd.f32 %v4309, %v4334
        %v4348 = vadd.f32 %v4310, %v4334
        %v4349 = vadd.f32 %v4311, %v4334
        %v4350 = vadd.f32 %v4312, %v4334
        %v4351 = vadd.f32 %v4313, %v4334
        %v4352 = vadd.f32 %v4314, %v4334
        %v4353 = vadd.f32 %v4315, %v4334
        %v4354 = vadd.f32 %v4316, %v4334
        %v4355 = vadd.f32 %v4317, %v4334
        %v4356 = vadd.f32 %v4318, %v4334
        %v4357 = vadd.f32 %v4319, %v4334
        %v4358 = vadd.f32 %v4320, %v4334
        %v4359 = vadd.f32 %v4321, %v4334
        %v4360 = vadd.f32 %v4322, %v4334
        %v4361 = vadd.f32 %v4323, %v4334
        %v4362 = vadd.f32 %v4324, %v4334
        %v4363 = vadd.f32 %v4325, %v4334
        %v4364 = vadd.f32 %v4326, %v4334
        %v4365 = vadd.f32 %v4327, %v4334
        %v4366 = vadd.f32 %v4328, %v4334
        %v4367 = vadd.f32 %v4329, %v4334
        %v4368 = vxor.u32 %v4336, 2147483648
        %v4369 = vxor.u32 %v4337, 2147483648
        %v4370 = vxor.u32 %v4338, 2147483648
        %v4371 = vxor.u32 %v4339, 2147483648
        %v4372 = vxor.u32 %v4340, 2147483648
        %v4373 = vxor.u32 %v4341, 2147483648
        %v4374 = vxor.u32 %v4342, 2147483648
        %v4375 = vxor.u32 %v4343, 2147483648
        %v4376 = vxor.u32 %v4344, 2147483648
        %v4377 = vxor.u32 %v4345, 2147483648
        %v4378 = vxor.u32 %v4346, 2147483648
        %v4379 = vxor.u32 %v4347, 2147483648
        %v4380 = vxor.u32 %v4348, 2147483648
        %v4381 = vxor.u32 %v4349, 2147483648
        %v4382 = vxor.u32 %v4350, 2147483648
        %v4383 = vxor.u32 %v4351, 2147483648
        %v4384 = vxor.u32 %v4352, 2147483648
        %v4385 = vxor.u32 %v4353, 2147483648
        %v4386 = vxor.u32 %v4354, 2147483648
        %v4387 = vxor.u32 %v4355, 2147483648
        %v4388 = vxor.u32 %v4356, 2147483648
        %v4389 = vxor.u32 %v4357, 2147483648
        %v4390 = vxor.u32 %v4358, 2147483648
        %v4391 = vxor.u32 %v4359, 2147483648
        %v4392 = vxor.u32 %v4360, 2147483648
        %v4393 = vxor.u32 %v4361, 2147483648
        %v4394 = vxor.u32 %v4362, 2147483648
        %v4395 = vxor.u32 %v4363, 2147483648
        %v4396 = vxor.u32 %v4364, 2147483648
        %v4397 = vxor.u32 %v4365, 2147483648
        %v4398 = vxor.u32 %v4366, 2147483648
        %v4399 = vxor.u32 %v4367, 2147483648
        %v4400 = vmul.f32 %v4368, 1.442695
        %v4401 = vpow.pop %v4400
        %v4402 = vmul.f32 %v4369, 1.442695
        %v4403 = vpow.pop %v4402
        %v4404 = vmul.f32 %v4370, 1.442695
        %v4405 = vpow.pop %v4404
        %v4406 = vmul.f32 %v4371, 1.442695
        %v4407 = vpow.pop %v4406
        %v4408 = vmul.f32 %v4372, 1.442695
        %v4409 = vpow.pop %v4408
        %v4410 = vmul.f32 %v4373, 1.442695
        %v4411 = vpow.pop %v4410
        %v4412 = vmul.f32 %v4374, 1.442695
        %v4413 = vpow.pop %v4412
        %v4414 = vmul.f32 %v4375, 1.442695
        %v4415 = vpow.pop %v4414
        %v4416 = vmul.f32 %v4376, 1.442695
        %v4417 = vpow.pop %v4416
        %v4418 = vmul.f32 %v4377, 1.442695
        %v4419 = vpow.pop %v4418
        %v4420 = vmul.f32 %v4378, 1.442695
        %v4421 = vpow.pop %v4420
        %v4422 = vmul.f32 %v4379, 1.442695
        %v4423 = vpow.pop %v4422
        %v4424 = vmul.f32 %v4380, 1.442695
        %v4425 = vpow.pop %v4424
        %v4426 = vmul.f32 %v4381, 1.442695
        %v4427 = vpow.pop %v4426
        %v4428 = vmul.f32 %v4382, 1.442695
        %v4429 = vpow.pop %v4428
        %v4430 = vmul.f32 %v4383, 1.442695
        %v4431 = vpow.pop %v4430
        %v4432 = vmul.f32 %v4384, 1.442695
        %v4433 = vpow.pop %v4432
        %v4434 = vmul.f32 %v4385, 1.442695
        %v4435 = vpow.pop %v4434
        %v4436 = vmul.f32 %v4386, 1.442695
        %v4437 = vpow.pop %v4436
        %v4438 = vmul.f32 %v4387, 1.442695
        %v4439 = vpow.pop %v4438
        %v4440 = vmul.f32 %v4388, 1.442695
        %v4441 = vpow.pop %v4440
        %v4442 = vmul.f32 %v4389, 1.442695
        %v4443 = vpow.pop %v4442
        %v4444 = vmul.f32 %v4390, 1.442695
        %v4445 = vpow.pop %v4444
        %v4446 = vmul.f32 %v4391, 1.442695
        %v4447 = vpow.pop %v4446
        %v4448 = vmul.f32 %v4392, 1.442695
        %v4449 = vpow.pop %v4448
        %v4450 = vmul.f32 %v4393, 1.442695
        %v4451 = vpow.pop %v4450
        %v4452 = vmul.f32 %v4394, 1.442695
        %v4453 = vpow.pop %v4452
        %v4454 = vmul.f32 %v4395, 1.442695
        %v4455 = vpow.pop %v4454
        %v4456 = vmul.f32 %v4396, 1.442695
        %v4457 = vpow.pop %v4456
        %v4458 = vmul.f32 %v4397, 1.442695
        %v4459 = vpow.pop %v4458
        %v4460 = vmul.f32 %v4398, 1.442695
        %v4461 = vpow.pop %v4460
        %v4462 = vmul.f32 %v4399, 1.442695
        %v4463 = vpow.pop %v4462
        %v4464 = vadd.f32 %v4401, 1.0
        %v4465 = vadd.f32 %v4403, 1.0
        %v4466 = vadd.f32 %v4405, 1.0
        %v4467 = vadd.f32 %v4407, 1.0
        %v4468 = vadd.f32 %v4409, 1.0
        %v4469 = vadd.f32 %v4411, 1.0
        %v4470 = vadd.f32 %v4413, 1.0
        %v4471 = vadd.f32 %v4415, 1.0
        %v4472 = vadd.f32 %v4417, 1.0
        %v4473 = vadd.f32 %v4419, 1.0
        %v4474 = vadd.f32 %v4421, 1.0
        %v4475 = vadd.f32 %v4423, 1.0
        %v4476 = vadd.f32 %v4425, 1.0
        %v4477 = vadd.f32 %v4427, 1.0
        %v4478 = vadd.f32 %v4429, 1.0
        %v4479 = vadd.f32 %v4431, 1.0
        %v4480 = vadd.f32 %v4433, 1.0
        %v4481 = vadd.f32 %v4435, 1.0
        %v4482 = vadd.f32 %v4437, 1.0
        %v4483 = vadd.f32 %v4439, 1.0
        %v4484 = vadd.f32 %v4441, 1.0
        %v4485 = vadd.f32 %v4443, 1.0
        %v4486 = vadd.f32 %v4445, 1.0
        %v4487 = vadd.f32 %v4447, 1.0
        %v4488 = vadd.f32 %v4449, 1.0
        %v4489 = vadd.f32 %v4451, 1.0
        %v4490 = vadd.f32 %v4453, 1.0
        %v4491 = vadd.f32 %v4455, 1.0
        %v4492 = vadd.f32 %v4457, 1.0
        %v4493 = vadd.f32 %v4459, 1.0
        %v4494 = vadd.f32 %v4461, 1.0
        %v4495 = vadd.f32 %v4463, 1.0
        %v4496 = vrcp.pop %v4464
        %v4497 = vmul.f32 1.0, %v4496
        %v4498 = vrcp.pop %v4465
        %v4499 = vmul.f32 1.0, %v4498
        %v4500 = vrcp.pop %v4466
        %v4501 = vmul.f32 1.0, %v4500
        %v4502 = vrcp.pop %v4467
        %v4503 = vmul.f32 1.0, %v4502
        %v4504 = vrcp.pop %v4468
        %v4505 = vmul.f32 1.0, %v4504
        %v4506 = vrcp.pop %v4469
        %v4507 = vmul.f32 1.0, %v4506
        %v4508 = vrcp.pop %v4470
        %v4509 = vmul.f32 1.0, %v4508
        %v4510 = vrcp.pop %v4471
        %v4511 = vmul.f32 1.0, %v4510
        %v4512 = vrcp.pop %v4472
        %v4513 = vmul.f32 1.0, %v4512
        %v4514 = vrcp.pop %v4473
        %v4515 = vmul.f32 1.0, %v4514
        %v4516 = vrcp.pop %v4474
        %v4517 = vmul.f32 1.0, %v4516
        %v4518 = vrcp.pop %v4475
        %v4519 = vmul.f32 1.0, %v4518
        %v4520 = vrcp.pop %v4476
        %v4521 = vmul.f32 1.0, %v4520
        %v4522 = vrcp.pop %v4477
        %v4523 = vmul.f32 1.0, %v4522
        %v4524 = vrcp.pop %v4478
        %v4525 = vmul.f32 1.0, %v4524
        %v4526 = vrcp.pop %v4479
        %v4527 = vmul.f32 1.0, %v4526
        %v4528 = vrcp.pop %v4480
        %v4529 = vmul.f32 1.0, %v4528
        %v4530 = vrcp.pop %v4481
        %v4531 = vmul.f32 1.0, %v4530
        %v4532 = vrcp.pop %v4482
        %v4533 = vmul.f32 1.0, %v4532
        %v4534 = vrcp.pop %v4483
        %v4535 = vmul.f32 1.0, %v4534
        %v4536 = vrcp.pop %v4484
        %v4537 = vmul.f32 1.0, %v4536
        %v4538 = vrcp.pop %v4485
        %v4539 = vmul.f32 1.0, %v4538
        %v4540 = vrcp.pop %v4486
        %v4541 = vmul.f32 1.0, %v4540
        %v4542 = vrcp.pop %v4487
        %v4543 = vmul.f32 1.0, %v4542
        %v4544 = vrcp.pop %v4488
        %v4545 = vmul.f32 1.0, %v4544
        %v4546 = vrcp.pop %v4489
        %v4547 = vmul.f32 1.0, %v4546
        %v4548 = vrcp.pop %v4490
        %v4549 = vmul.f32 1.0, %v4548
        %v4550 = vrcp.pop %v4491
        %v4551 = vmul.f32 1.0, %v4550
        %v4552 = vrcp.pop %v4492
        %v4553 = vmul.f32 1.0, %v4552
        %v4554 = vrcp.pop %v4493
        %v4555 = vmul.f32 1.0, %v4554
        %v4556 = vrcp.pop %v4494
        %v4557 = vmul.f32 1.0, %v4556
        %v4558 = vrcp.pop %v4495
        %v4559 = vmul.f32 1.0, %v4558
        %v4560 = vmul.f32 %v4336, %v4497
        %v4561 = vmul.f32 %v4337, %v4499
        %v4562 = vmul.f32 %v4338, %v4501
        %v4563 = vmul.f32 %v4339, %v4503
        %v4564 = vmul.f32 %v4340, %v4505
        %v4565 = vmul.f32 %v4341, %v4507
        %v4566 = vmul.f32 %v4342, %v4509
        %v4567 = vmul.f32 %v4343, %v4511
        %v4568 = vmul.f32 %v4344, %v4513
        %v4569 = vmul.f32 %v4345, %v4515
        %v4570 = vmul.f32 %v4346, %v4517
        %v4571 = vmul.f32 %v4347, %v4519
        %v4572 = vmul.f32 %v4348, %v4521
        %v4573 = vmul.f32 %v4349, %v4523
        %v4574 = vmul.f32 %v4350, %v4525
        %v4575 = vmul.f32 %v4351, %v4527
        %v4576 = vmul.f32 %v4352, %v4529
        %v4577 = vmul.f32 %v4353, %v4531
        %v4578 = vmul.f32 %v4354, %v4533
        %v4579 = vmul.f32 %v4355, %v4535
        %v4580 = vmul.f32 %v4356, %v4537
        %v4581 = vmul.f32 %v4357, %v4539
        %v4582 = vmul.f32 %v4358, %v4541
        %v4583 = vmul.f32 %v4359, %v4543
        %v4584 = vmul.f32 %v4360, %v4545
        %v4585 = vmul.f32 %v4361, %v4547
        %v4586 = vmul.f32 %v4362, %v4549
        %v4587 = vmul.f32 %v4363, %v4551
        %v4588 = vmul.f32 %v4364, %v4553
        %v4589 = vmul.f32 %v4365, %v4555
        %v4590 = vmul.f32 %v4366, %v4557
        %v4591 = vmul.f32 %v4367, %v4559
        %v4622 = vrot.slane %v4560, 7
        %v4623 = vsel %vm1852, %v1853, %v4622
        %v4624 = vrot.slane %v4561, 7
        %v4625 = vsel %vm1852, %v4622, %v4624
        %v4626 = vrot.slane %v4562, 7
        %v4627 = vsel %vm1852, %v4624, %v4626
        %v4628 = vrot.slane %v4563, 7
        %v4629 = vsel %vm1852, %v4626, %v4628
        %v4630 = vrot.slane %v4564, 7
        %v4631 = vsel %vm1852, %v4628, %v4630
        %v4632 = vrot.slane %v4565, 7
        %v4633 = vsel %vm1852, %v4630, %v4632
        %v4634 = vrot.slane %v4566, 7
        %v4635 = vsel %vm1852, %v4632, %v4634
        %v4636 = vrot.slane %v4567, 7
        %v4637 = vsel %vm1852, %v4634, %v4636
        %v4638 = vrot.slane %v4568, 7
        %v4639 = vsel %vm1852, %v4636, %v4638
        %v4640 = vrot.slane %v4569, 7
        %v4641 = vsel %vm1852, %v4638, %v4640
        %v4642 = vrot.slane %v4570, 7
        %v4643 = vsel %vm1852, %v4640, %v4642
        %v4644 = vrot.slane %v4571, 7
        %v4645 = vsel %vm1852, %v4642, %v4644
        %v4646 = vrot.slane %v4572, 7
        %v4647 = vsel %vm1852, %v4644, %v4646
        %v4648 = vrot.slane %v4573, 7
        %v4649 = vsel %vm1852, %v4646, %v4648
        %v4650 = vrot.slane %v4574, 7
        %v4651 = vsel %vm1852, %v4648, %v4650
        %v4652 = vrot.slane %v4575, 7
        %v4653 = vsel %vm1852, %v4650, %v4652
        %v4654 = vrot.slane %v4576, 7
        %v4655 = vsel %vm1852, %v4652, %v4654
        %v4656 = vrot.slane %v4577, 7
        %v4657 = vsel %vm1852, %v4654, %v4656
        %v4658 = vrot.slane %v4578, 7
        %v4659 = vsel %vm1852, %v4656, %v4658
        %v4660 = vrot.slane %v4579, 7
        %v4661 = vsel %vm1852, %v4658, %v4660
        %v4662 = vrot.slane %v4580, 7
        %v4663 = vsel %vm1852, %v4660, %v4662
        %v4664 = vrot.slane %v4581, 7
        %v4665 = vsel %vm1852, %v4662, %v4664
        %v4666 = vrot.slane %v4582, 7
        %v4667 = vsel %vm1852, %v4664, %v4666
        %v4668 = vrot.slane %v4583, 7
        %v4669 = vsel %vm1852, %v4666, %v4668
        %v4670 = vrot.slane %v4584, 7
        %v4671 = vsel %vm1852, %v4668, %v4670
        %v4672 = vrot.slane %v4585, 7
        %v4673 = vsel %vm1852, %v4670, %v4672
        %v4674 = vrot.slane %v4586, 7
        %v4675 = vsel %vm1852, %v4672, %v4674
        %v4676 = vrot.slane %v4587, 7
        %v4677 = vsel %vm1852, %v4674, %v4676
        %v4678 = vrot.slane %v4588, 7
        %v4679 = vsel %vm1852, %v4676, %v4678
        %v4680 = vrot.slane %v4589, 7
        %v4681 = vsel %vm1852, %v4678, %v4680
        %v4712 = vsel %vm1791, %v4623, 0.0
        %v4713 = vsel %vm1792, %v4625, 0.0
        %v4714 = vsel %vm1793, %v4627, 0.0
        %v4715 = vsel %vm1794, %v4629, 0.0
        %v4716 = vsel %vm1795, %v4631, 0.0
        %v4717 = vsel %vm1796, %v4633, 0.0
        %v4718 = vsel %vm1797, %v4635, 0.0
        %v4719 = vsel %vm1798, %v4637, 0.0
        %v4720 = vsel %vm1799, %v4639, 0.0
        %v4721 = vsel %vm1800, %v4641, 0.0
        %v4722 = vsel %vm1801, %v4643, 0.0
        %v4723 = vsel %vm1802, %v4645, 0.0
        %v4724 = vsel %vm1803, %v4647, 0.0
        %v4725 = vsel %vm1804, %v4649, 0.0
        %v4726 = vsel %vm1805, %v4651, 0.0
        %v4727 = vsel %vm1806, %v4653, 0.0
        %v4728 = vsel %vm1807, %v4655, 0.0
        %v4729 = vsel %vm1808, %v4657, 0.0
        %v4730 = vsel %vm1809, %v4659, 0.0
        %v4731 = vsel %vm1810, %v4661, 0.0
        %v4732 = vsel %vm1811, %v4663, 0.0
        %v4733 = vsel %vm1812, %v4665, 0.0
        %v4734 = vsel %vm1813, %v4667, 0.0
        %v4735 = vsel %vm1814, %v4669, 0.0
        %v4736 = vsel %vm1815, %v4671, 0.0
        %v4737 = vsel %vm1816, %v4673, 0.0
        %v4738 = vsel %vm1817, %v4675, 0.0
        %v4739 = vsel %vm1818, %v4677, 0.0
        %v4740 = vsel %vm1819, %v4679, 0.0
        %v4741 = vsel %vm1820, %v4681, 0.0
        %v4743 = vrot.slane %v4560, 1
        %v4744 = vsel %vm2075, %v2076, %v4743
        %v4745 = vrot.slane %v4561, 1
        %v4746 = vsel %vm2075, %v4743, %v4745
        %v4747 = vrot.slane %v4562, 1
        %v4748 = vsel %vm2075, %v4745, %v4747
        %v4749 = vrot.slane %v4563, 1
        %v4750 = vsel %vm2075, %v4747, %v4749
        %v4751 = vrot.slane %v4564, 1
        %v4752 = vsel %vm2075, %v4749, %v4751
        %v4753 = vrot.slane %v4565, 1
        %v4754 = vsel %vm2075, %v4751, %v4753
        %v4755 = vrot.slane %v4566, 1
        %v4756 = vsel %vm2075, %v4753, %v4755
        %v4757 = vrot.slane %v4567, 1
        %v4758 = vsel %vm2075, %v4755, %v4757
        %v4759 = vrot.slane %v4568, 1
        %v4760 = vsel %vm2075, %v4757, %v4759
        %v4761 = vrot.slane %v4569, 1
        %v4762 = vsel %vm2075, %v4759, %v4761
        %v4763 = vrot.slane %v4570, 1
        %v4764 = vsel %vm2075, %v4761, %v4763
        %v4765 = vrot.slane %v4571, 1
        %v4766 = vsel %vm2075, %v4763, %v4765
        %v4767 = vrot.slane %v4572, 1
        %v4768 = vsel %vm2075, %v4765, %v4767
        %v4769 = vrot.slane %v4573, 1
        %v4770 = vsel %vm2075, %v4767, %v4769
        %v4771 = vrot.slane %v4574, 1
        %v4772 = vsel %vm2075, %v4769, %v4771
        %v4773 = vrot.slane %v4575, 1
        %v4774 = vsel %vm2075, %v4771, %v4773
        %v4775 = vrot.slane %v4576, 1
        %v4776 = vsel %vm2075, %v4773, %v4775
        %v4777 = vrot.slane %v4577, 1
        %v4778 = vsel %vm2075, %v4775, %v4777
        %v4779 = vrot.slane %v4578, 1
        %v4780 = vsel %vm2075, %v4777, %v4779
        %v4781 = vrot.slane %v4579, 1
        %v4782 = vsel %vm2075, %v4779, %v4781
        %v4783 = vrot.slane %v4580, 1
        %v4784 = vsel %vm2075, %v4781, %v4783
        %v4785 = vrot.slane %v4581, 1
        %v4786 = vsel %vm2075, %v4783, %v4785
        %v4787 = vrot.slane %v4582, 1
        %v4788 = vsel %vm2075, %v4785, %v4787
        %v4789 = vrot.slane %v4583, 1
        %v4790 = vsel %vm2075, %v4787, %v4789
        %v4791 = vrot.slane %v4584, 1
        %v4792 = vsel %vm2075, %v4789, %v4791
        %v4793 = vrot.slane %v4585, 1
        %v4794 = vsel %vm2075, %v4791, %v4793
        %v4795 = vrot.slane %v4586, 1
        %v4796 = vsel %vm2075, %v4793, %v4795
        %v4797 = vrot.slane %v4587, 1
        %v4798 = vsel %vm2075, %v4795, %v4797
        %v4799 = vrot.slane %v4588, 1
        %v4800 = vsel %vm2075, %v4797, %v4799
        %v4801 = vrot.slane %v4589, 1
        %v4802 = vsel %vm2075, %v4799, %v4801
        %v4803 = vrot.slane %v4590, 1
        %v4804 = vsel %vm2075, %v4801, %v4803
        %v4836 = vsel %vm2043, %v4744, 0.0
        %v4837 = vsel %vm2044, %v4746, 0.0
        %v4838 = vsel %vm2045, %v4748, 0.0
        %v4839 = vsel %vm2046, %v4750, 0.0
        %v4840 = vsel %vm2047, %v4752, 0.0
        %v4841 = vsel %vm2048, %v4754, 0.0
        %v4842 = vsel %vm2049, %v4756, 0.0
        %v4843 = vsel %vm2050, %v4758, 0.0
        %v4844 = vsel %vm2051, %v4760, 0.0
        %v4845 = vsel %vm2052, %v4762, 0.0
        %v4846 = vsel %vm2053, %v4764, 0.0
        %v4847 = vsel %vm2054, %v4766, 0.0
        %v4848 = vsel %vm2055, %v4768, 0.0
        %v4849 = vsel %vm2056, %v4770, 0.0
        %v4850 = vsel %vm2057, %v4772, 0.0
        %v4851 = vsel %vm2058, %v4774, 0.0
        %v4852 = vsel %vm2059, %v4776, 0.0
        %v4853 = vsel %vm2060, %v4778, 0.0
        %v4854 = vsel %vm2061, %v4780, 0.0
        %v4855 = vsel %vm2062, %v4782, 0.0
        %v4856 = vsel %vm2063, %v4784, 0.0
        %v4857 = vsel %vm2064, %v4786, 0.0
        %v4858 = vsel %vm2065, %v4788, 0.0
        %v4859 = vsel %vm2066, %v4790, 0.0
        %v4860 = vsel %vm2067, %v4792, 0.0
        %v4861 = vsel %vm2068, %v4794, 0.0
        %v4862 = vsel %vm2069, %v4796, 0.0
        %v4863 = vsel %vm2070, %v4798, 0.0
        %v4864 = vsel %vm2071, %v4800, 0.0
        %v4865 = vsel %vm2072, %v4802, 0.0
        %v4866 = vsel %vm2073, %v4804, 0.0
        %v4868 = vrot.slane %v4590, 7
        %v4869 = vsel %vm1852, %v4680, %v4868
        %v4870 = vrot.slane %v4591, 7
        %v4871 = vsel %vm1852, %v4868, %v4870
        %v4874 = vsel %vm1789, %v4623, 0.0
        %v4875 = vsel %vm1790, %v4625, 0.0
        %v4876 = vsel %vm1791, %v4627, 0.0
        %v4877 = vsel %vm1792, %v4629, 0.0
        %v4878 = vsel %vm1793, %v4631, 0.0
        %v4879 = vsel %vm1794, %v4633, 0.0
        %v4880 = vsel %vm1795, %v4635, 0.0
        %v4881 = vsel %vm1796, %v4637, 0.0
        %v4882 = vsel %vm1797, %v4639, 0.0
        %v4883 = vsel %vm1798, %v4641, 0.0
        %v4884 = vsel %vm1799, %v4643, 0.0
        %v4885 = vsel %vm1800, %v4645, 0.0
        %v4886 = vsel %vm1801, %v4647, 0.0
        %v4887 = vsel %vm1802, %v4649, 0.0
        %v4888 = vsel %vm1803, %v4651, 0.0
        %v4889 = vsel %vm1804, %v4653, 0.0
        %v4890 = vsel %vm1805, %v4655, 0.0
        %v4891 = vsel %vm1806, %v4657, 0.0
        %v4892 = vsel %vm1807, %v4659, 0.0
        %v4893 = vsel %vm1808, %v4661, 0.0
        %v4894 = vsel %vm1809, %v4663, 0.0
        %v4895 = vsel %vm1810, %v4665, 0.0
        %v4896 = vsel %vm1811, %v4667, 0.0
        %v4897 = vsel %vm1812, %v4669, 0.0
        %v4898 = vsel %vm1813, %v4671, 0.0
        %v4899 = vsel %vm1814, %v4673, 0.0
        %v4900 = vsel %vm1815, %v4675, 0.0
        %v4901 = vsel %vm1816, %v4677, 0.0
        %v4902 = vsel %vm1817, %v4679, 0.0
        %v4903 = vsel %vm1818, %v4681, 0.0
        %v4904 = vsel %vm1819, %v4869, 0.0
        %v4905 = vsel %vm1820, %v4871, 0.0
        %v4906 = vrot.slane %v4591, 1
        %v4907 = vsel %vm2075, %v4803, %v4906
        %v4908 = vsel %vm2075, %v4906, %v2076
        %v4911 = vsel %vm2042, %v4746, 0.0
        %v4912 = vsel %vm2043, %v4748, 0.0
        %v4913 = vsel %vm2044, %v4750, 0.0
        %v4914 = vsel %vm2045, %v4752, 0.0
        %v4915 = vsel %vm2046, %v4754, 0.0
        %v4916 = vsel %vm2047, %v4756, 0.0
        %v4917 = vsel %vm2048, %v4758, 0.0
        %v4918 = vsel %vm2049, %v4760, 0.0
        %v4919 = vsel %vm2050, %v4762, 0.0
        %v4920 = vsel %vm2051, %v4764, 0.0
        %v4921 = vsel %vm2052, %v4766, 0.0
        %v4922 = vsel %vm2053, %v4768, 0.0
        %v4923 = vsel %vm2054, %v4770, 0.0
        %v4924 = vsel %vm2055, %v4772, 0.0
        %v4925 = vsel %vm2056, %v4774, 0.0
        %v4926 = vsel %vm2057, %v4776, 0.0
        %v4927 = vsel %vm2058, %v4778, 0.0
        %v4928 = vsel %vm2059, %v4780, 0.0
        %v4929 = vsel %vm2060, %v4782, 0.0
        %v4930 = vsel %vm2061, %v4784, 0.0
        %v4931 = vsel %vm2062, %v4786, 0.0
        %v4932 = vsel %vm2063, %v4788, 0.0
        %v4933 = vsel %vm2064, %v4790, 0.0
        %v4934 = vsel %vm2065, %v4792, 0.0
        %v4935 = vsel %vm2066, %v4794, 0.0
        %v4936 = vsel %vm2067, %v4796, 0.0
        %v4937 = vsel %vm2068, %v4798, 0.0
        %v4938 = vsel %vm2069, %v4800, 0.0
        %v4939 = vsel %vm2070, %v4802, 0.0
        %v4940 = vsel %vm2071, %v4804, 0.0
        %v4941 = vsel %vm2072, %v4907, 0.0
        %v4942 = vsel %vm2073, %v4908, 0.0
        %v4943 = vsel %vm1852, %v4870, %v1853
        %v4945 = vsel %vm1789, %v4627, 0.0
        %v4946 = vsel %vm1790, %v4629, 0.0
        %v4947 = vsel %vm1791, %v4631, 0.0
        %v4948 = vsel %vm1792, %v4633, 0.0
        %v4949 = vsel %vm1793, %v4635, 0.0
        %v4950 = vsel %vm1794, %v4637, 0.0
        %v4951 = vsel %vm1795, %v4639, 0.0
        %v4952 = vsel %vm1796, %v4641, 0.0
        %v4953 = vsel %vm1797, %v4643, 0.0
        %v4954 = vsel %vm1798, %v4645, 0.0
        %v4955 = vsel %vm1799, %v4647, 0.0
        %v4956 = vsel %vm1800, %v4649, 0.0
        %v4957 = vsel %vm1801, %v4651, 0.0
        %v4958 = vsel %vm1802, %v4653, 0.0
        %v4959 = vsel %vm1803, %v4655, 0.0
        %v4960 = vsel %vm1804, %v4657, 0.0
        %v4961 = vsel %vm1805, %v4659, 0.0
        %v4962 = vsel %vm1806, %v4661, 0.0
        %v4963 = vsel %vm1807, %v4663, 0.0
        %v4964 = vsel %vm1808, %v4665, 0.0
        %v4965 = vsel %vm1809, %v4667, 0.0
        %v4966 = vsel %vm1810, %v4669, 0.0
        %v4967 = vsel %vm1811, %v4671, 0.0
        %v4968 = vsel %vm1812, %v4673, 0.0
        %v4969 = vsel %vm1813, %v4675, 0.0
        %v4970 = vsel %vm1814, %v4677, 0.0
        %v4971 = vsel %vm1815, %v4679, 0.0
        %v4972 = vsel %vm1816, %v4681, 0.0
        %v4973 = vsel %vm1817, %v4869, 0.0
        %v4974 = vsel %vm1818, %v4871, 0.0
        %v4975 = vsel %vm1819, %v4943, 0.0
        %v4976 = vsel %vm2042, %v4750, 0.0
        %v4977 = vsel %vm2043, %v4752, 0.0
        %v4978 = vsel %vm2044, %v4754, 0.0
        %v4979 = vsel %vm2045, %v4756, 0.0
        %v4980 = vsel %vm2046, %v4758, 0.0
        %v4981 = vsel %vm2047, %v4760, 0.0
        %v4982 = vsel %vm2048, %v4762, 0.0
        %v4983 = vsel %vm2049, %v4764, 0.0
        %v4984 = vsel %vm2050, %v4766, 0.0
        %v4985 = vsel %vm2051, %v4768, 0.0
        %v4986 = vsel %vm2052, %v4770, 0.0
        %v4987 = vsel %vm2053, %v4772, 0.0
        %v4988 = vsel %vm2054, %v4774, 0.0
        %v4989 = vsel %vm2055, %v4776, 0.0
        %v4990 = vsel %vm2056, %v4778, 0.0
        %v4991 = vsel %vm2057, %v4780, 0.0
        %v4992 = vsel %vm2058, %v4782, 0.0
        %v4993 = vsel %vm2059, %v4784, 0.0
        %v4994 = vsel %vm2060, %v4786, 0.0
        %v4995 = vsel %vm2061, %v4788, 0.0
        %v4996 = vsel %vm2062, %v4790, 0.0
        %v4997 = vsel %vm2063, %v4792, 0.0
        %v4998 = vsel %vm2064, %v4794, 0.0
        %v4999 = vsel %vm2065, %v4796, 0.0
        %v5000 = vsel %vm2066, %v4798, 0.0
        %v5001 = vsel %vm2067, %v4800, 0.0
        %v5002 = vsel %vm2068, %v4802, 0.0
        %v5003 = vsel %vm2069, %v4804, 0.0
        %v5004 = vsel %vm2070, %v4907, 0.0
        %v5005 = vsel %vm2071, %v4908, 0.0
        %5006 = vrot.lane.b32.xlu0 0.0, 64
        %v5007 = vpop.permute.xlu0 %5006
        %5008 = vrot.lane.b32.xlu0 %v4560, 64
        %v5009 = vpop.permute.xlu0 %5008
        %5010 = vrot.lane.b32.xlu0 %v4561, 64
        %v5011 = vpop.permute.xlu0 %5010
        %5012 = vrot.lane.b32.xlu0 %v4562, 64
        %v5013 = vpop.permute.xlu0 %5012
        %5014 = vrot.lane.b32.xlu0 %v4563, 64
        %v5015 = vpop.permute.xlu0 %5014
        %5016 = vrot.lane.b32.xlu0 %v4564, 64
        %v5017 = vpop.permute.xlu0 %5016
        %5018 = vrot.lane.b32.xlu0 %v4565, 64
        %v5019 = vpop.permute.xlu0 %5018
        %5020 = vrot.lane.b32.xlu0 %v4566, 64
        %v5021 = vpop.permute.xlu0 %5020
        %5022 = vrot.lane.b32.xlu0 %v4567, 64
        %v5023 = vpop.permute.xlu0 %5022
        %5024 = vrot.lane.b32.xlu0 %v4568, 64
        %v5025 = vpop.permute.xlu0 %5024
        %5026 = vrot.lane.b32.xlu0 %v4569, 64
        %v5027 = vpop.permute.xlu0 %5026
        %5028 = vrot.lane.b32.xlu0 %v4570, 64
        %v5029 = vpop.permute.xlu0 %5028
        %5030 = vrot.lane.b32.xlu0 %v4571, 64
        %v5031 = vpop.permute.xlu0 %5030
        %5032 = vrot.lane.b32.xlu0 %v4572, 64
        %v5033 = vpop.permute.xlu0 %5032
        %5034 = vrot.lane.b32.xlu0 %v4573, 64
        %v5035 = vpop.permute.xlu0 %5034
        %5036 = vrot.lane.b32.xlu0 %v4574, 64
        %v5037 = vpop.permute.xlu0 %5036
        %5038 = vrot.lane.b32.xlu0 %v4575, 64
        %v5039 = vpop.permute.xlu0 %5038
        %5040 = vrot.lane.b32.xlu0 %v4576, 64
        %v5041 = vpop.permute.xlu0 %5040
        %5042 = vrot.lane.b32.xlu0 %v4577, 64
        %v5043 = vpop.permute.xlu0 %5042
        %5044 = vrot.lane.b32.xlu0 %v4578, 64
        %v5045 = vpop.permute.xlu0 %5044
        %5046 = vrot.lane.b32.xlu0 %v4579, 64
        %v5047 = vpop.permute.xlu0 %5046
        %5048 = vrot.lane.b32.xlu0 %v4580, 64
        %v5049 = vpop.permute.xlu0 %5048
        %5050 = vrot.lane.b32.xlu0 %v4581, 64
        %v5051 = vpop.permute.xlu0 %5050
        %5052 = vrot.lane.b32.xlu0 %v4582, 64
        %v5053 = vpop.permute.xlu0 %5052
        %5054 = vrot.lane.b32.xlu0 %v4583, 64
        %v5055 = vpop.permute.xlu0 %5054
        %5056 = vrot.lane.b32.xlu0 %v4584, 64
        %v5057 = vpop.permute.xlu0 %5056
        %5058 = vrot.lane.b32.xlu0 %v4585, 64
        %v5059 = vpop.permute.xlu0 %5058
        %5060 = vrot.lane.b32.xlu0 %v4586, 64
        %v5061 = vpop.permute.xlu0 %5060
        %5062 = vrot.lane.b32.xlu0 %v4587, 64
        %v5063 = vpop.permute.xlu0 %5062
        %5064 = vrot.lane.b32.xlu0 %v4588, 64
        %v5065 = vpop.permute.xlu0 %5064
        %5066 = vrot.lane.b32.xlu0 %v4589, 64
        %v5067 = vpop.permute.xlu0 %5066
        %5131 = vrot.lane.b32.xlu0 %v4874, 64
        %v5132 = vpop.permute.xlu0 %5131
        %5133 = vrot.lane.b32.xlu0 %v4875, 64
        %v5134 = vpop.permute.xlu0 %5133
        %5135 = vrot.lane.b32.xlu0 %v4876, 64
        %v5136 = vpop.permute.xlu0 %5135
        %5137 = vrot.lane.b32.xlu0 %v4877, 64
        %v5138 = vpop.permute.xlu0 %5137
        %5139 = vrot.lane.b32.xlu0 %v4878, 64
        %v5140 = vpop.permute.xlu0 %5139
        %5141 = vrot.lane.b32.xlu0 %v4879, 64
        %v5142 = vpop.permute.xlu0 %5141
        %5143 = vrot.lane.b32.xlu0 %v4880, 64
        %v5144 = vpop.permute.xlu0 %5143
        %5145 = vrot.lane.b32.xlu0 %v4881, 64
        %v5146 = vpop.permute.xlu0 %5145
        %5147 = vrot.lane.b32.xlu0 %v4882, 64
        %v5148 = vpop.permute.xlu0 %5147
        %5149 = vrot.lane.b32.xlu0 %v4883, 64
        %v5150 = vpop.permute.xlu0 %5149
        %5151 = vrot.lane.b32.xlu0 %v4884, 64
        %v5152 = vpop.permute.xlu0 %5151
        %5153 = vrot.lane.b32.xlu0 %v4885, 64
        %v5154 = vpop.permute.xlu0 %5153
        %5155 = vrot.lane.b32.xlu0 %v4886, 64
        %v5156 = vpop.permute.xlu0 %5155
        %5157 = vrot.lane.b32.xlu0 %v4887, 64
        %v5158 = vpop.permute.xlu0 %5157
        %5159 = vrot.lane.b32.xlu0 %v4888, 64
        %v5160 = vpop.permute.xlu0 %5159
        %5161 = vrot.lane.b32.xlu0 %v4889, 64
        %v5162 = vpop.permute.xlu0 %5161
        %5163 = vrot.lane.b32.xlu0 %v4890, 64
        %v5164 = vpop.permute.xlu0 %5163
        %5165 = vrot.lane.b32.xlu0 %v4891, 64
        %v5166 = vpop.permute.xlu0 %5165
        %5167 = vrot.lane.b32.xlu0 %v4892, 64
        %v5168 = vpop.permute.xlu0 %5167
        %5169 = vrot.lane.b32.xlu0 %v4893, 64
        %v5170 = vpop.permute.xlu0 %5169
        %5171 = vrot.lane.b32.xlu0 %v4894, 64
        %v5172 = vpop.permute.xlu0 %5171
        %5173 = vrot.lane.b32.xlu0 %v4895, 64
        %v5174 = vpop.permute.xlu0 %5173
        %5175 = vrot.lane.b32.xlu0 %v4896, 64
        %v5176 = vpop.permute.xlu0 %5175
        %5177 = vrot.lane.b32.xlu0 %v4897, 64
        %v5178 = vpop.permute.xlu0 %5177
        %5179 = vrot.lane.b32.xlu0 %v4898, 64
        %v5180 = vpop.permute.xlu0 %5179
        %5181 = vrot.lane.b32.xlu0 %v4899, 64
        %v5182 = vpop.permute.xlu0 %5181
        %5183 = vrot.lane.b32.xlu0 %v4900, 64
        %v5184 = vpop.permute.xlu0 %5183
        %5185 = vrot.lane.b32.xlu0 %v4901, 64
        %v5186 = vpop.permute.xlu0 %5185
        %5187 = vrot.lane.b32.xlu0 %v4902, 64
        %v5188 = vpop.permute.xlu0 %5187
        %5189 = vrot.lane.b32.xlu0 %v4903, 64
        %v5190 = vpop.permute.xlu0 %5189
        %5191 = vrot.lane.b32.xlu0 %v4904, 64
        %v5192 = vpop.permute.xlu0 %5191
        %5193 = vrot.lane.b32.xlu0 %v4905, 64
        %v5194 = vpop.permute.xlu0 %5193
        %5259 = vrot.lane.b32.xlu0 %v4911, 64
        %v5260 = vpop.permute.xlu0 %5259
        %5261 = vrot.lane.b32.xlu0 %v4912, 64
        %v5262 = vpop.permute.xlu0 %5261
        %5263 = vrot.lane.b32.xlu0 %v4913, 64
        %v5264 = vpop.permute.xlu0 %5263
        %5265 = vrot.lane.b32.xlu0 %v4914, 64
        %v5266 = vpop.permute.xlu0 %5265
        %5267 = vrot.lane.b32.xlu0 %v4915, 64
        %v5268 = vpop.permute.xlu0 %5267
        %5269 = vrot.lane.b32.xlu0 %v4916, 64
        %v5270 = vpop.permute.xlu0 %5269
        %5271 = vrot.lane.b32.xlu0 %v4917, 64
        %v5272 = vpop.permute.xlu0 %5271
        %5273 = vrot.lane.b32.xlu0 %v4918, 64
        %v5274 = vpop.permute.xlu0 %5273
        %5275 = vrot.lane.b32.xlu0 %v4919, 64
        %v5276 = vpop.permute.xlu0 %5275
        %5277 = vrot.lane.b32.xlu0 %v4920, 64
        %v5278 = vpop.permute.xlu0 %5277
        %5279 = vrot.lane.b32.xlu0 %v4921, 64
        %v5280 = vpop.permute.xlu0 %5279
        %5281 = vrot.lane.b32.xlu0 %v4922, 64
        %v5282 = vpop.permute.xlu0 %5281
        %5283 = vrot.lane.b32.xlu0 %v4923, 64
        %v5284 = vpop.permute.xlu0 %5283
        %5285 = vrot.lane.b32.xlu0 %v4924, 64
        %v5286 = vpop.permute.xlu0 %5285
        %5287 = vrot.lane.b32.xlu0 %v4925, 64
        %v5288 = vpop.permute.xlu0 %5287
        %5289 = vrot.lane.b32.xlu0 %v4926, 64
        %v5290 = vpop.permute.xlu0 %5289
        %5291 = vrot.lane.b32.xlu0 %v4927, 64
        %v5292 = vpop.permute.xlu0 %5291
        %5293 = vrot.lane.b32.xlu0 %v4928, 64
        %v5294 = vpop.permute.xlu0 %5293
        %5295 = vrot.lane.b32.xlu0 %v4929, 64
        %v5296 = vpop.permute.xlu0 %5295
        %5297 = vrot.lane.b32.xlu0 %v4930, 64
        %v5298 = vpop.permute.xlu0 %5297
        %5299 = vrot.lane.b32.xlu0 %v4931, 64
        %v5300 = vpop.permute.xlu0 %5299
        %5301 = vrot.lane.b32.xlu0 %v4932, 64
        %v5302 = vpop.permute.xlu0 %5301
        %5303 = vrot.lane.b32.xlu0 %v4933, 64
        %v5304 = vpop.permute.xlu0 %5303
        %5305 = vrot.lane.b32.xlu0 %v4934, 64
        %v5306 = vpop.permute.xlu0 %5305
        %5307 = vrot.lane.b32.xlu0 %v4935, 64
        %v5308 = vpop.permute.xlu0 %5307
        %5309 = vrot.lane.b32.xlu0 %v4936, 64
        %v5310 = vpop.permute.xlu0 %5309
        %5311 = vrot.lane.b32.xlu0 %v4937, 64
        %v5312 = vpop.permute.xlu0 %5311
        %5313 = vrot.lane.b32.xlu0 %v4938, 64
        %v5314 = vpop.permute.xlu0 %5313
        %5315 = vrot.lane.b32.xlu0 %v4939, 64
        %v5316 = vpop.permute.xlu0 %5315
        %5317 = vrot.lane.b32.xlu0 %v4940, 64
        %v5318 = vpop.permute.xlu0 %5317
        %5319 = vrot.lane.b32.xlu0 %v4941, 64
        %v5320 = vpop.permute.xlu0 %5319
        %5321 = vrot.lane.b32.xlu0 %v4942, 64
        %v5322 = vpop.permute.xlu0 %5321
        %5355 = vrot.lane.b32.xlu0 %v4590, 64
        %v5356 = vpop.permute.xlu0 %5355
        %5357 = vrot.lane.b32.xlu0 %v4591, 64
        %v5358 = vpop.permute.xlu0 %5357
        %v5361 = vsel %vm3076, %v1946, %v5007
        %v5362 = vsel %vm3076, %v1947, %v5007
        %v5363 = vsel %vm3076, %v4712, %v5009
        %v5364 = vsel %vm3076, %v4713, %v5011
        %v5365 = vsel %vm3076, %v4714, %v5013
        %v5366 = vsel %vm3076, %v4715, %v5015
        %v5367 = vsel %vm3076, %v4716, %v5017
        %v5368 = vsel %vm3076, %v4717, %v5019
        %v5369 = vsel %vm3076, %v4718, %v5021
        %v5370 = vsel %vm3076, %v4719, %v5023
        %v5371 = vsel %vm3076, %v4720, %v5025
        %v5372 = vsel %vm3076, %v4721, %v5027
        %v5373 = vsel %vm3076, %v4722, %v5029
        %v5374 = vsel %vm3076, %v4723, %v5031
        %v5375 = vsel %vm3076, %v4724, %v5033
        %v5376 = vsel %vm3076, %v4725, %v5035
        %v5377 = vsel %vm3076, %v4726, %v5037
        %v5378 = vsel %vm3076, %v4727, %v5039
        %v5379 = vsel %vm3076, %v4728, %v5041
        %v5380 = vsel %vm3076, %v4729, %v5043
        %v5381 = vsel %vm3076, %v4730, %v5045
        %v5382 = vsel %vm3076, %v4731, %v5047
        %v5383 = vsel %vm3076, %v4732, %v5049
        %v5384 = vsel %vm3076, %v4733, %v5051
        %v5385 = vsel %vm3076, %v4734, %v5053
        %v5386 = vsel %vm3076, %v4735, %v5055
        %v5387 = vsel %vm3076, %v4736, %v5057
        %v5388 = vsel %vm3076, %v4737, %v5059
        %v5389 = vsel %vm3076, %v4738, %v5061
        %v5390 = vsel %vm3076, %v4739, %v5063
        %v5391 = vsel %vm3076, %v4740, %v5065
        %v5392 = vsel %vm3076, %v4741, %v5067
        %v5393 = vsel %vm3076, %v2172, %v5132
        %v5394 = vsel %vm3076, %v4836, %v5134
        %v5395 = vsel %vm3076, %v4837, %v5136
        %v5396 = vsel %vm3076, %v4838, %v5138
        %v5397 = vsel %vm3076, %v4839, %v5140
        %v5398 = vsel %vm3076, %v4840, %v5142
        %v5399 = vsel %vm3076, %v4841, %v5144
        %v5400 = vsel %vm3076, %v4842, %v5146
        %v5401 = vsel %vm3076, %v4843, %v5148
        %v5402 = vsel %vm3076, %v4844, %v5150
        %v5403 = vsel %vm3076, %v4845, %v5152
        %v5404 = vsel %vm3076, %v4846, %v5154
        %v5405 = vsel %vm3076, %v4847, %v5156
        %v5406 = vsel %vm3076, %v4848, %v5158
        %v5407 = vsel %vm3076, %v4849, %v5160
        %v5408 = vsel %vm3076, %v4850, %v5162
        %v5409 = vsel %vm3076, %v4851, %v5164
        %v5410 = vsel %vm3076, %v4852, %v5166
        %v5411 = vsel %vm3076, %v4853, %v5168
        %v5412 = vsel %vm3076, %v4854, %v5170
        %v5413 = vsel %vm3076, %v4855, %v5172
        %v5414 = vsel %vm3076, %v4856, %v5174
        %v5415 = vsel %vm3076, %v4857, %v5176
        %v5416 = vsel %vm3076, %v4858, %v5178
        %v5417 = vsel %vm3076, %v4859, %v5180
        %v5418 = vsel %vm3076, %v4860, %v5182
        %v5419 = vsel %vm3076, %v4861, %v5184
        %v5420 = vsel %vm3076, %v4862, %v5186
        %v5421 = vsel %vm3076, %v4863, %v5188
        %v5422 = vsel %vm3076, %v4864, %v5190
        %v5423 = vsel %vm3076, %v4865, %v5192
        %v5424 = vsel %vm3076, %v4866, %v5194
        %v5425 = vsel %vm3076, %v4560, %v5260
        %v5426 = vsel %vm3076, %v4561, %v5262
        %v5427 = vsel %vm3076, %v4562, %v5264
        %v5428 = vsel %vm3076, %v4563, %v5266
        %v5429 = vsel %vm3076, %v4564, %v5268
        %v5430 = vsel %vm3076, %v4565, %v5270
        %v5431 = vsel %vm3076, %v4566, %v5272
        %v5432 = vsel %vm3076, %v4567, %v5274
        %v5433 = vsel %vm3076, %v4568, %v5276
        %v5434 = vsel %vm3076, %v4569, %v5278
        %v5435 = vsel %vm3076, %v4570, %v5280
        %v5436 = vsel %vm3076, %v4571, %v5282
        %v5437 = vsel %vm3076, %v4572, %v5284
        %v5438 = vsel %vm3076, %v4573, %v5286
        %v5439 = vsel %vm3076, %v4574, %v5288
        %v5440 = vsel %vm3076, %v4575, %v5290
        %v5441 = vsel %vm3076, %v4576, %v5292
        %v5442 = vsel %vm3076, %v4577, %v5294
        %v5443 = vsel %vm3076, %v4578, %v5296
        %v5444 = vsel %vm3076, %v4579, %v5298
        %v5445 = vsel %vm3076, %v4580, %v5300
        %v5446 = vsel %vm3076, %v4581, %v5302
        %v5447 = vsel %vm3076, %v4582, %v5304
        %v5448 = vsel %vm3076, %v4583, %v5306
        %v5449 = vsel %vm3076, %v4584, %v5308
        %v5450 = vsel %vm3076, %v4585, %v5310
        %v5451 = vsel %vm3076, %v4586, %v5312
        %v5452 = vsel %vm3076, %v4587, %v5314
        %v5453 = vsel %vm3076, %v4588, %v5316
        %v5454 = vsel %vm3076, %v4589, %v5318
        %v5455 = vsel %vm3076, %v4590, %v5320
        %v5456 = vsel %vm3076, %v4591, %v5322
        %v5457 = vsel %vm3076, %v4945, %v5013
        %v5458 = vsel %vm3076, %v4946, %v5015
        %v5459 = vsel %vm3076, %v4947, %v5017
        %v5460 = vsel %vm3076, %v4948, %v5019
        %v5461 = vsel %vm3076, %v4949, %v5021
        %v5462 = vsel %vm3076, %v4950, %v5023
        %v5463 = vsel %vm3076, %v4951, %v5025
        %v5464 = vsel %vm3076, %v4952, %v5027
        %v5465 = vsel %vm3076, %v4953, %v5029
        %v5466 = vsel %vm3076, %v4954, %v5031
        %v5467 = vsel %vm3076, %v4955, %v5033
        %v5468 = vsel %vm3076, %v4956, %v5035
        %v5469 = vsel %vm3076, %v4957, %v5037
        %v5470 = vsel %vm3076, %v4958, %v5039
        %v5471 = vsel %vm3076, %v4959, %v5041
        %v5472 = vsel %vm3076, %v4960, %v5043
        %v5473 = vsel %vm3076, %v4961, %v5045
        %v5474 = vsel %vm3076, %v4962, %v5047
        %v5475 = vsel %vm3076, %v4963, %v5049
        %v5476 = vsel %vm3076, %v4964, %v5051
        %v5477 = vsel %vm3076, %v4965, %v5053
        %v5478 = vsel %vm3076, %v4966, %v5055
        %v5479 = vsel %vm3076, %v4967, %v5057
        %v5480 = vsel %vm3076, %v4968, %v5059
        %v5481 = vsel %vm3076, %v4969, %v5061
        %v5482 = vsel %vm3076, %v4970, %v5063
        %v5483 = vsel %vm3076, %v4971, %v5065
        %v5484 = vsel %vm3076, %v4972, %v5067
        %v5485 = vsel %vm3076, %v4973, %v5356
        %v5486 = vsel %vm3076, %v4974, %v5358
        %v5487 = vsel %vm3076, %v4975, %v5007
        %v5488 = vsel %vm3076, %v2313, %v5007
        %v5489 = vpack.c.bf16 %v5362, %v5361
        %v5490 = vpack.c.bf16 %v5394, %v5393
        %v5491 = vpack.c.bf16 %v5426, %v5425
        %v5492 = vpack.c.bf16 %v5458, %v5457
        %v5493 = vpack.c.bf16 %v4977, %v4976
        %v5494 = vpack.c.bf16 %v5364, %v5363
        %v5495 = vpack.c.bf16 %v5396, %v5395
        %v5496 = vpack.c.bf16 %v5428, %v5427
        %v5497 = vpack.c.bf16 %v5460, %v5459
        %v5498 = vpack.c.bf16 %v4979, %v4978
        %v5499 = vpack.c.bf16 %v5366, %v5365
        %v5500 = vpack.c.bf16 %v5398, %v5397
        %v5501 = vpack.c.bf16 %v5430, %v5429
        %v5502 = vpack.c.bf16 %v5462, %v5461
        %v5503 = vpack.c.bf16 %v4981, %v4980
        %v5504 = vpack.c.bf16 %v5368, %v5367
        %v5505 = vpack.c.bf16 %v5400, %v5399
        %v5506 = vpack.c.bf16 %v5432, %v5431
        %v5507 = vpack.c.bf16 %v5464, %v5463
        %v5508 = vpack.c.bf16 %v4983, %v4982
        %v5509 = vpack.c.bf16 %v5370, %v5369
        %v5510 = vpack.c.bf16 %v5402, %v5401
        %v5511 = vpack.c.bf16 %v5434, %v5433
        %v5512 = vpack.c.bf16 %v5466, %v5465
        %v5513 = vpack.c.bf16 %v4985, %v4984
        %v5514 = vpack.c.bf16 %v5372, %v5371
        %v5515 = vpack.c.bf16 %v5404, %v5403
        %v5516 = vpack.c.bf16 %v5436, %v5435
        %v5517 = vpack.c.bf16 %v5468, %v5467
        %v5518 = vpack.c.bf16 %v4987, %v4986
        %v5519 = vpack.c.bf16 %v5374, %v5373
        %v5520 = vpack.c.bf16 %v5406, %v5405
        %v5521 = vpack.c.bf16 %v5438, %v5437
        %v5522 = vpack.c.bf16 %v5470, %v5469
        %v5523 = vpack.c.bf16 %v4989, %v4988
        %v5524 = vpack.c.bf16 %v5376, %v5375
        %v5525 = vpack.c.bf16 %v5408, %v5407
        %v5526 = vpack.c.bf16 %v5440, %v5439
        %v5527 = vpack.c.bf16 %v5472, %v5471
        %v5528 = vpack.c.bf16 %v4991, %v4990
        %v5529 = vpack.c.bf16 %v5378, %v5377
        %v5530 = vpack.c.bf16 %v5410, %v5409
        %v5531 = vpack.c.bf16 %v5442, %v5441
        %v5532 = vpack.c.bf16 %v5474, %v5473
        %v5533 = vpack.c.bf16 %v4993, %v4992
        %v5534 = vpack.c.bf16 %v5380, %v5379
        %v5535 = vpack.c.bf16 %v5412, %v5411
        %v5536 = vpack.c.bf16 %v5444, %v5443
        %v5537 = vpack.c.bf16 %v5476, %v5475
        %v5538 = vpack.c.bf16 %v4995, %v4994
        %v5539 = vpack.c.bf16 %v5382, %v5381
        %v5540 = vpack.c.bf16 %v5414, %v5413
        %v5541 = vpack.c.bf16 %v5446, %v5445
        %v5542 = vpack.c.bf16 %v5478, %v5477
        %v5543 = vpack.c.bf16 %v4997, %v4996
        %v5544 = vpack.c.bf16 %v5384, %v5383
        %v5545 = vpack.c.bf16 %v5416, %v5415
        %v5546 = vpack.c.bf16 %v5448, %v5447
        %v5547 = vpack.c.bf16 %v5480, %v5479
        %v5548 = vpack.c.bf16 %v4999, %v4998
        %v5549 = vpack.c.bf16 %v5386, %v5385
        %v5550 = vpack.c.bf16 %v5418, %v5417
        %v5551 = vpack.c.bf16 %v5450, %v5449
        %v5552 = vpack.c.bf16 %v5482, %v5481
        %v5553 = vpack.c.bf16 %v5001, %v5000
        %v5554 = vpack.c.bf16 %v5388, %v5387
        %v5555 = vpack.c.bf16 %v5420, %v5419
        %v5556 = vpack.c.bf16 %v5452, %v5451
        %v5557 = vpack.c.bf16 %v5484, %v5483
        %v5558 = vpack.c.bf16 %v5003, %v5002
        %v5559 = vpack.c.bf16 %v5390, %v5389
        %v5560 = vpack.c.bf16 %v5422, %v5421
        %v5561 = vpack.c.bf16 %v5454, %v5453
        %v5562 = vpack.c.bf16 %v5486, %v5485
        %v5563 = vpack.c.bf16 %v5005, %v5004
        %v5564 = vpack.c.bf16 %v5392, %v5391
        %v5565 = vpack.c.bf16 %v5424, %v5423
        %v5566 = vpack.c.bf16 %v5456, %v5455
        %v5567 = vpack.c.bf16 %v5488, %v5487
        %v5568 = vld [vmem:[%s11] sm:$0xf]
        %v5569 = vld [vmem:[%s11 + $0x4] sm:$0xf]
        %v5570 = vld [vmem:[%s11 + $0x8] sm:$0xf]
        %v5571 = vld [vmem:[%s11 + $0xc] sm:$0xf]
        %v5572 = vld [vmem:[%s11 + $0x10] sm:$0xf]
        %v5573 = vld [vmem:[%s11 + $0x14] sm:$0xf]
        %v5574 = vld [vmem:[%s11 + $0x18] sm:$0xf]
        %v5575 = vld [vmem:[%s11 + $0x1c] sm:$0xf]
        %v5576 = vld [vmem:[%s11 + $0x20] sm:$0xf]
        %v5577 = vld [vmem:[%s11 + $0x24] sm:$0xf]
        %v5578 = vld [vmem:[%s11 + $0x28] sm:$0xf]
        %v5579 = vld [vmem:[%s11 + $0x2c] sm:$0xf]
        %v5580 = vld [vmem:[%s11 + $0x30] sm:$0xf]
        %v5581 = vld [vmem:[%s11 + $0x34] sm:$0xf]
        %v5582 = vld [vmem:[%s11 + $0x38] sm:$0xf]
        %v5583 = vld [vmem:[%s11 + $0x3c] sm:$0xf]
        %v5584 = vld [vmem:[%s11 + $0x40] sm:$0xf]
        %v5585 = vld [vmem:[%s11 + $0x44] sm:$0xf]
        %v5586 = vld [vmem:[%s11 + $0x48] sm:$0xf]
        %v5587 = vld [vmem:[%s11 + $0x4c] sm:$0xf]
        %v5588 = vld [vmem:[%s11 + $0x50] sm:$0xf]
        %v5589 = vld [vmem:[%s11 + $0x54] sm:$0xf]
        %v5590 = vld [vmem:[%s11 + $0x58] sm:$0xf]
        %v5591 = vld [vmem:[%s11 + $0x5c] sm:$0xf]
        %v5592 = vld [vmem:[%s11 + $0x60] sm:$0xf]
        %v5593 = vld [vmem:[%s11 + $0x64] sm:$0xf]
        %v5594 = vld [vmem:[%s11 + $0x68] sm:$0xf]
        %v5595 = vld [vmem:[%s11 + $0x6c] sm:$0xf]
        %v5596 = vld [vmem:[%s11 + $0x70] sm:$0xf]
        %v5597 = vld [vmem:[%s11 + $0x74] sm:$0xf]
        %v5598 = vld [vmem:[%s11 + $0x78] sm:$0xf]
        %v5599 = vld [vmem:[%s11 + $0x7c] sm:$0xf]
        %v5600 = vld [vmem:[%s11 + $0x80] sm:$0xf]
        %v5601 = vld [vmem:[%s11 + $0x84] sm:$0xf]
        %v5602 = vld [vmem:[%s11 + $0x88] sm:$0xf]
        %v5603 = vld [vmem:[%s11 + $0x8c] sm:$0xf]
        %v5604 = vld [vmem:[%s11 + $0x90] sm:$0xf]
        %v5605 = vld [vmem:[%s11 + $0x94] sm:$0xf]
        %v5606 = vld [vmem:[%s11 + $0x98] sm:$0xf]
        %v5607 = vld [vmem:[%s11 + $0x9c] sm:$0xf]
        %v5608 = vld [vmem:[%s11 + $0xa0] sm:$0xf]
        %v5609 = vld [vmem:[%s11 + $0xa4] sm:$0xf]
        %v5610 = vld [vmem:[%s11 + $0xa8] sm:$0xf]
        %v5611 = vld [vmem:[%s11 + $0xac] sm:$0xf]
        %v5612 = vld [vmem:[%s11 + $0xb0] sm:$0xf]
        %v5613 = vld [vmem:[%s11 + $0xb4] sm:$0xf]
        %v5614 = vld [vmem:[%s11 + $0xb8] sm:$0xf]
        %v5615 = vld [vmem:[%s11 + $0xbc] sm:$0xf]
        %v5616 = vld [vmem:[%s11 + $0xc0] sm:$0xf]
        %v5617 = vld [vmem:[%s11 + $0xc4] sm:$0xf]
        %v5618 = vld [vmem:[%s11 + $0xc8] sm:$0xf]
        %v5619 = vld [vmem:[%s11 + $0xcc] sm:$0xf]
        %v5620 = vld [vmem:[%s11 + $0xd0] sm:$0xf]
        %v5621 = vld [vmem:[%s11 + $0xd4] sm:$0xf]
        %v5622 = vld [vmem:[%s11 + $0xd8] sm:$0xf]
        %v5623 = vld [vmem:[%s11 + $0xdc] sm:$0xf]
        %v5624 = vld [vmem:[%s11 + $0xe0] sm:$0xf]
        %v5625 = vld [vmem:[%s11 + $0xe4] sm:$0xf]
        %v5626 = vld [vmem:[%s11 + $0xe8] sm:$0xf]
        %v5627 = vld [vmem:[%s11 + $0xec] sm:$0xf]
        %v5628 = vld [vmem:[%s11 + $0xf0] sm:$0xf]
        %v5629 = vld [vmem:[%s11 + $0xf4] sm:$0xf]
        %v5630 = vld [vmem:[%s11 + $0xf8] sm:$0xf]
        %v5631 = vld [vmem:[%s11 + $0xfc] sm:$0xf]
        %v5632 = vld [vmem:[%s11 + $0x100] sm:$0xf]
        %v5633 = vld [vmem:[%s11 + $0x104] sm:$0xf]
        %v5634 = vld [vmem:[%s11 + $0x108] sm:$0xf]
        %v5635 = vld [vmem:[%s11 + $0x10c] sm:$0xf]
        %v5636 = vld [vmem:[%s11 + $0x110] sm:$0xf]
        %v5637 = vld [vmem:[%s11 + $0x114] sm:$0xf]
        %v5638 = vld [vmem:[%s11 + $0x118] sm:$0xf]
        %v5639 = vld [vmem:[%s11 + $0x11c] sm:$0xf]
        %v5640 = vld [vmem:[%s12] sm:$0x1]
        %v5642 = vlaneseq
        %v5643 = vshrl.u32 %v5642, 7
        %v5644 = vsub.s32 0, %v5643
        %v5645 = vrot.slane %v5640, %v5644
        %v5719 = vunpack.c.l.b16 %v5568
        %v5720 = vunpack.c.l.b16 %v5569
        %v5721 = vunpack.c.l.b16 %v5570
        %v5722 = vunpack.c.l.b16 %v5571
        %v5723 = vunpack.c.l.b16 %v5572
        %v5724 = vunpack.c.l.b16 %v5573
        %v5725 = vunpack.c.l.b16 %v5574
        %v5726 = vunpack.c.l.b16 %v5575
        %v5727 = vunpack.c.l.b16 %v5576
        %v5728 = vunpack.c.l.b16 %v5577
        %v5729 = vunpack.c.l.b16 %v5578
        %v5730 = vunpack.c.l.b16 %v5579
        %v5731 = vunpack.c.l.b16 %v5580
        %v5732 = vunpack.c.l.b16 %v5581
        %v5733 = vunpack.c.l.b16 %v5582
        %v5734 = vunpack.c.l.b16 %v5583
        %v5735 = vunpack.c.l.b16 %v5584
        %v5736 = vunpack.c.l.b16 %v5585
        %v5737 = vunpack.c.l.b16 %v5586
        %v5738 = vunpack.c.l.b16 %v5587
        %v5739 = vunpack.c.l.b16 %v5588
        %v5740 = vunpack.c.l.b16 %v5589
        %v5741 = vunpack.c.l.b16 %v5590
        %v5742 = vunpack.c.l.b16 %v5591
        %v5743 = vunpack.c.l.b16 %v5592
        %v5744 = vunpack.c.l.b16 %v5593
        %v5745 = vunpack.c.l.b16 %v5594
        %v5746 = vunpack.c.l.b16 %v5595
        %v5747 = vunpack.c.l.b16 %v5596
        %v5748 = vunpack.c.l.b16 %v5597
        %v5749 = vunpack.c.l.b16 %v5598
        %v5750 = vunpack.c.l.b16 %v5599
        %v5751 = vunpack.c.l.b16 %v5600
        %v5752 = vunpack.c.l.b16 %v5601
        %v5753 = vunpack.c.l.b16 %v5602
        %v5754 = vunpack.c.l.b16 %v5603
        %v5755 = vunpack.c.l.b16 %v5604
        %v5756 = vunpack.c.l.b16 %v5605
        %v5757 = vunpack.c.l.b16 %v5606
        %v5758 = vunpack.c.l.b16 %v5607
        %v5759 = vunpack.c.l.b16 %v5608
        %v5760 = vunpack.c.l.b16 %v5609
        %v5761 = vunpack.c.l.b16 %v5610
        %v5762 = vunpack.c.l.b16 %v5611
        %v5763 = vunpack.c.l.b16 %v5612
        %v5764 = vunpack.c.l.b16 %v5613
        %v5765 = vunpack.c.l.b16 %v5614
        %v5766 = vunpack.c.l.b16 %v5615
        %v5767 = vunpack.c.l.b16 %v5616
        %v5768 = vunpack.c.l.b16 %v5617
        %v5769 = vunpack.c.l.b16 %v5618
        %v5770 = vunpack.c.l.b16 %v5619
        %v5771 = vunpack.c.l.b16 %v5620
        %v5772 = vunpack.c.l.b16 %v5621
        %v5773 = vunpack.c.l.b16 %v5622
        %v5774 = vunpack.c.l.b16 %v5623
        %v5775 = vunpack.c.l.b16 %v5624
        %v5776 = vunpack.c.l.b16 %v5625
        %v5777 = vunpack.c.l.b16 %v5626
        %v5778 = vunpack.c.l.b16 %v5627
        %v5779 = vunpack.c.l.b16 %v5628
        %v5780 = vunpack.c.l.b16 %v5629
        %v5781 = vunpack.c.l.b16 %v5630
        %v5782 = vunpack.c.l.b16 %v5631
        %v5783 = vunpack.c.l.b16 %v5632
        %v5784 = vunpack.c.l.b16 %v5633
        %v5785 = vunpack.c.l.b16 %v5634
        %v5786 = vunpack.c.l.b16 %v5635
        %v5787 = vunpack.c.l.b16 %v5636
        %v5788 = vunpack.c.l.b16 %v5637
        %v5789 = vunpack.c.l.b16 %v5638
        %v5790 = vunpack.c.l.b16 %v5639
        %v5791 = vpack.c.b16 %v5720, %v5719
        %v5792 = vpack.c.b16 %v5722, %v5721
        %v5793 = vpack.c.b16 %v5724, %v5723
        %v5794 = vpack.c.b16 %v5726, %v5725
        %v5795 = vpack.c.b16 %v5728, %v5727
        %v5796 = vpack.c.b16 %v5730, %v5729
        %v5797 = vpack.c.b16 %v5732, %v5731
        %v5798 = vpack.c.b16 %v5734, %v5733
        %v5799 = vpack.c.b16 %v5736, %v5735
        %v5800 = vpack.c.b16 %v5738, %v5737
        %v5801 = vpack.c.b16 %v5740, %v5739
        %v5802 = vpack.c.b16 %v5742, %v5741
        %v5803 = vpack.c.b16 %v5744, %v5743
        %v5804 = vpack.c.b16 %v5746, %v5745
        %v5805 = vpack.c.b16 %v5748, %v5747
        %v5806 = vpack.c.b16 %v5750, %v5749
        %v5807 = vpack.c.b16 %v5752, %v5751
        %v5808 = vpack.c.b16 %v5754, %v5753
        %v5809 = vpack.c.b16 %v5756, %v5755
        %v5810 = vpack.c.b16 %v5758, %v5757
        %v5811 = vpack.c.b16 %v5760, %v5759
        %v5812 = vpack.c.b16 %v5762, %v5761
        %v5813 = vpack.c.b16 %v5764, %v5763
        %v5814 = vpack.c.b16 %v5766, %v5765
        %v5815 = vpack.c.b16 %v5768, %v5767
        %v5816 = vpack.c.b16 %v5770, %v5769
        %v5817 = vpack.c.b16 %v5772, %v5771
        %v5818 = vpack.c.b16 %v5774, %v5773
        %v5819 = vpack.c.b16 %v5776, %v5775
        %v5820 = vpack.c.b16 %v5778, %v5777
        %v5821 = vpack.c.b16 %v5780, %v5779
        %v5822 = vpack.c.b16 %v5782, %v5781
        %v5823 = vpack.c.b16 %v5784, %v5783
        %v5824 = vpack.c.b16 %v5786, %v5785
        %v5825 = vpack.c.b16 %v5788, %v5787
        %v5826 = vpack.c.b16 %v5790, %v5789
        %v5864 = vsel %vm3076, %v5493, 0
        %v5867 = vsel %vm3076, %v5498, 0
        %v5870 = vsel %vm3076, %v5503, 0
        %v5873 = vsel %vm3076, %v5508, 0
        %v5876 = vsel %vm3076, %v5513, 0
        %v5879 = vsel %vm3076, %v5518, 0
        %v5882 = vsel %vm3076, %v5523, 0
        %v5885 = vsel %vm3076, %v5528, 0
        %v5888 = vsel %vm3076, %v5533, 0
        %v5891 = vsel %vm3076, %v5538, 0
        %v5894 = vsel %vm3076, %v5543, 0
        %v5897 = vsel %vm3076, %v5548, 0
        %v5900 = vsel %vm3076, %v5553, 0
        %v5903 = vsel %vm3076, %v5558, 0
        %v5906 = vsel %vm3076, %v5563, 0
        %v5908 = vsel %vm3076, %v3285, 0
        %5910 = vmatprep.subr.bf16.mxu0 0
        %5911 = vmatpush1.bf16.msra.mxu0 %v5798
        %5912 = vmatprep.subr.bf16.mxu0 0
        %5913 = vmatpush1.bf16.msra.mxu0 %v5797
        %5914 = vmatprep.subr.bf16.mxu0 0
        %5915 = vmatpush1.bf16.msra.mxu0 %v5796
        %5916 = vmatprep.subr.bf16.mxu0 0
        %5917 = vmatpush1.bf16.msra.mxu0 %v5795
        %5918 = vmatprep.subr.bf16.mxu0 0
        %5919 = vmatpush1.bf16.msra.mxu0 %v5794
        %5920 = vmatprep.subr.bf16.mxu0 0
        %5921 = vmatpush1.bf16.msra.mxu0 %v5793
        %5922 = vmatprep.subr.bf16.mxu0 0
        %5923 = vmatpush1.bf16.msra.mxu0 %v5792
        %5924 = vmatprep.subr.bf16.mxu0 0
        %5925 = vmatpush1.bf16.msra.mxu0 %v5791
        %5926 = vmatprep.subr.bf16.mxu0 0
        %5927 = vmatpush2.bf16.msra.mxu0 %v5806
        %5928 = vmatprep.subr.bf16.mxu0 0
        %5929 = vmatpush2.bf16.msra.mxu0 %v5805
        %5930 = vmatprep.subr.bf16.mxu0 0
        %5931 = vmatpush2.bf16.msra.mxu0 %v5804
        %5932 = vmatprep.subr.bf16.mxu0 0
        %5933 = vmatpush2.bf16.msra.mxu0 %v5803
        %5934 = vmatprep.subr.bf16.mxu0 0
        %5935 = vmatpush2.bf16.msra.mxu0 %v5802
        %5936 = vmatprep.subr.bf16.mxu0 0
        %5937 = vmatpush2.bf16.msra.mxu0 %v5801
        %5938 = vmatprep.subr.bf16.mxu0 0
        %5939 = vmatpush2.bf16.msra.mxu0 %v5800
        %5940 = vmatprep.subr.bf16.mxu0 0
        %5941 = vmatpush2.bf16.msra.mxu0 %v5799
        %5942 = vmatprep.mubr.bf16.mxu0 %v5490
        %5943 = vmatmul.mubr.bf16.gmra.mxu0 %v5489
        %v5944 = vpop.f32.mrf.mxu0
        %v5945 = vadd.f32 %v5645, %v5944
        %v5946 = vpop.f32.mrf.mxu0
        %v5947 = vpop.f32.mrf.mxu0
        %v5948 = vadd.f32 %v5645, %v5947
        %v5949 = vpop.f32.mrf.mxu0
        %5950 = vmatprep.mubr.bf16.mxu0 %v5495
        %5951 = vmatmul.mubr.bf16.gmra.mxu0 %v5494
        %v5952 = vpop.f32.mrf.mxu0
        %v5953 = vadd.f32 %v5645, %v5952
        %v5954 = vpop.f32.mrf.mxu0
        %v5955 = vpop.f32.mrf.mxu0
        %v5956 = vadd.f32 %v5645, %v5955
        %v5957 = vpop.f32.mrf.mxu0
        %5958 = vmatprep.mubr.bf16.mxu0 %v5500
        %5959 = vmatmul.mubr.bf16.gmra.mxu0 %v5499
        %v5960 = vpop.f32.mrf.mxu0
        %v5961 = vadd.f32 %v5645, %v5960
        %v5962 = vpop.f32.mrf.mxu0
        %v5963 = vpop.f32.mrf.mxu0
        %v5964 = vadd.f32 %v5645, %v5963
        %v5965 = vpop.f32.mrf.mxu0
        %5966 = vmatprep.mubr.bf16.mxu0 %v5505
        %5967 = vmatmul.mubr.bf16.gmra.mxu0 %v5504
        %v5968 = vpop.f32.mrf.mxu0
        %v5969 = vadd.f32 %v5645, %v5968
        %v5970 = vpop.f32.mrf.mxu0
        %v5971 = vpop.f32.mrf.mxu0
        %v5972 = vadd.f32 %v5645, %v5971
        %v5973 = vpop.f32.mrf.mxu0
        %5974 = vmatprep.mubr.bf16.mxu0 %v5510
        %5975 = vmatmul.mubr.bf16.gmra.mxu0 %v5509
        %v5976 = vpop.f32.mrf.mxu0
        %v5977 = vadd.f32 %v5645, %v5976
        %v5978 = vpop.f32.mrf.mxu0
        %v5979 = vpop.f32.mrf.mxu0
        %v5980 = vadd.f32 %v5645, %v5979
        %v5981 = vpop.f32.mrf.mxu0
        %5982 = vmatprep.mubr.bf16.mxu0 %v5515
        %5983 = vmatmul.mubr.bf16.gmra.mxu0 %v5514
        %v5984 = vpop.f32.mrf.mxu0
        %v5985 = vadd.f32 %v5645, %v5984
        %v5986 = vpop.f32.mrf.mxu0
        %v5987 = vpop.f32.mrf.mxu0
        %v5988 = vadd.f32 %v5645, %v5987
        %v5989 = vpop.f32.mrf.mxu0
        %5990 = vmatprep.mubr.bf16.mxu0 %v5520
        %5991 = vmatmul.mubr.bf16.gmra.mxu0 %v5519
        %v5992 = vpop.f32.mrf.mxu0
        %v5993 = vadd.f32 %v5645, %v5992
        %v5994 = vpop.f32.mrf.mxu0
        %v5995 = vpop.f32.mrf.mxu0
        %v5996 = vadd.f32 %v5645, %v5995
        %v5997 = vpop.f32.mrf.mxu0
        %5998 = vmatprep.mubr.bf16.mxu0 %v5525
        %5999 = vmatmul.mubr.bf16.gmra.mxu0 %v5524
        %v6000 = vpop.f32.mrf.mxu0
        %v6001 = vadd.f32 %v5645, %v6000
        %v6002 = vpop.f32.mrf.mxu0
        %v6003 = vpop.f32.mrf.mxu0
        %v6004 = vadd.f32 %v5645, %v6003
        %v6005 = vpop.f32.mrf.mxu0
        %6006 = vmatprep.mubr.bf16.mxu0 %v5530
        %6007 = vmatmul.mubr.bf16.gmra.mxu0 %v5529
        %v6008 = vpop.f32.mrf.mxu0
        %v6009 = vadd.f32 %v5645, %v6008
        %v6010 = vpop.f32.mrf.mxu0
        %v6011 = vpop.f32.mrf.mxu0
        %v6012 = vadd.f32 %v5645, %v6011
        %v6013 = vpop.f32.mrf.mxu0
        %6014 = vmatprep.mubr.bf16.mxu0 %v5535
        %6015 = vmatmul.mubr.bf16.gmra.mxu0 %v5534
        %v6016 = vpop.f32.mrf.mxu0
        %v6017 = vadd.f32 %v5645, %v6016
        %v6018 = vpop.f32.mrf.mxu0
        %v6019 = vpop.f32.mrf.mxu0
        %v6020 = vadd.f32 %v5645, %v6019
        %v6021 = vpop.f32.mrf.mxu0
        %6022 = vmatprep.mubr.bf16.mxu0 %v5540
        %6023 = vmatmul.mubr.bf16.gmra.mxu0 %v5539
        %v6024 = vpop.f32.mrf.mxu0
        %v6025 = vadd.f32 %v5645, %v6024
        %v6026 = vpop.f32.mrf.mxu0
        %v6027 = vpop.f32.mrf.mxu0
        %v6028 = vadd.f32 %v5645, %v6027
        %v6029 = vpop.f32.mrf.mxu0
        %6030 = vmatprep.mubr.bf16.mxu0 %v5545
        %6031 = vmatmul.mubr.bf16.gmra.mxu0 %v5544
        %v6032 = vpop.f32.mrf.mxu0
        %v6033 = vadd.f32 %v5645, %v6032
        %v6034 = vpop.f32.mrf.mxu0
        %v6035 = vpop.f32.mrf.mxu0
        %v6036 = vadd.f32 %v5645, %v6035
        %v6037 = vpop.f32.mrf.mxu0
        %6038 = vmatprep.mubr.bf16.mxu0 %v5550
        %6039 = vmatmul.mubr.bf16.gmra.mxu0 %v5549
        %v6040 = vpop.f32.mrf.mxu0
        %v6041 = vadd.f32 %v5645, %v6040
        %v6042 = vpop.f32.mrf.mxu0
        %v6043 = vpop.f32.mrf.mxu0
        %v6044 = vadd.f32 %v5645, %v6043
        %v6045 = vpop.f32.mrf.mxu0
        %6046 = vmatprep.mubr.bf16.mxu0 %v5555
        %6047 = vmatmul.mubr.bf16.gmra.mxu0 %v5554
        %v6048 = vpop.f32.mrf.mxu0
        %v6049 = vadd.f32 %v5645, %v6048
        %v6050 = vpop.f32.mrf.mxu0
        %v6051 = vpop.f32.mrf.mxu0
        %v6052 = vadd.f32 %v5645, %v6051
        %v6053 = vpop.f32.mrf.mxu0
        %6054 = vmatprep.mubr.bf16.mxu0 %v5560
        %6055 = vmatmul.mubr.bf16.gmra.mxu0 %v5559
        %v6056 = vpop.f32.mrf.mxu0
        %v6057 = vadd.f32 %v5645, %v6056
        %v6058 = vpop.f32.mrf.mxu0
        %v6059 = vpop.f32.mrf.mxu0
        %v6060 = vadd.f32 %v5645, %v6059
        %v6061 = vpop.f32.mrf.mxu0
        %6062 = vmatprep.mubr.bf16.mxu0 %v5565
        %6063 = vmatmul.mubr.bf16.gmra.mxu0 %v5564
        %v6064 = vpop.f32.mrf.mxu0
        %v6065 = vadd.f32 %v5645, %v6064
        %v6066 = vpop.f32.mrf.mxu0
        %v6067 = vpop.f32.mrf.mxu0
        %v6068 = vadd.f32 %v5645, %v6067
        %v6069 = vpop.f32.mrf.mxu0
        %6070 = vdwg.mxu0
        %6071 = vmatprep.subr.bf16.mxu0 0
        %6072 = vmatpush1.bf16.msra.mxu0 %v5814
        %6073 = vmatprep.subr.bf16.mxu0 0
        %6074 = vmatpush1.bf16.msra.mxu0 %v5813
        %6075 = vmatprep.subr.bf16.mxu0 0
        %6076 = vmatpush1.bf16.msra.mxu0 %v5812
        %6077 = vmatprep.subr.bf16.mxu0 0
        %6078 = vmatpush1.bf16.msra.mxu0 %v5811
        %6079 = vmatprep.subr.bf16.mxu0 0
        %6080 = vmatpush1.bf16.msra.mxu0 %v5810
        %6081 = vmatprep.subr.bf16.mxu0 0
        %6082 = vmatpush1.bf16.msra.mxu0 %v5809
        %6083 = vmatprep.subr.bf16.mxu0 0
        %6084 = vmatpush1.bf16.msra.mxu0 %v5808
        %6085 = vmatprep.subr.bf16.mxu0 0
        %6086 = vmatpush1.bf16.msra.mxu0 %v5807
        %6087 = vmatprep.subr.bf16.mxu0 0
        %6088 = vmatpush2.bf16.msra.mxu0 %v5822
        %6089 = vmatprep.subr.bf16.mxu0 0
        %6090 = vmatpush2.bf16.msra.mxu0 %v5821
        %6091 = vmatprep.subr.bf16.mxu0 0
        %6092 = vmatpush2.bf16.msra.mxu0 %v5820
        %6093 = vmatprep.subr.bf16.mxu0 0
        %6094 = vmatpush2.bf16.msra.mxu0 %v5819
        %6095 = vmatprep.subr.bf16.mxu0 0
        %6096 = vmatpush2.bf16.msra.mxu0 %v5818
        %6097 = vmatprep.subr.bf16.mxu0 0
        %6098 = vmatpush2.bf16.msra.mxu0 %v5817
        %6099 = vmatprep.subr.bf16.mxu0 0
        %6100 = vmatpush2.bf16.msra.mxu0 %v5816
        %6101 = vmatprep.subr.bf16.mxu0 0
        %6102 = vmatpush2.bf16.msra.mxu0 %v5815
        %6103 = vmatprep.mubr.bf16.mxu0 %v5492
        %6104 = vmatmul.mubr.bf16.gmra.mxu0 %v5491
        %v6105 = vpop.f32.mrf.mxu0
        %v6106 = vadd.f32 %v5945, %v6105
        %v6107 = vpop.f32.mrf.mxu0
        %v6108 = vpop.f32.mrf.mxu0
        %v6109 = vadd.f32 %v5948, %v6108
        %v6110 = vpop.f32.mrf.mxu0
        %6111 = vmatprep.mubr.bf16.mxu0 %v5497
        %6112 = vmatmul.mubr.bf16.gmra.mxu0 %v5496
        %v6113 = vpop.f32.mrf.mxu0
        %v6114 = vadd.f32 %v5953, %v6113
        %v6115 = vpop.f32.mrf.mxu0
        %v6116 = vpop.f32.mrf.mxu0
        %v6117 = vadd.f32 %v5956, %v6116
        %v6118 = vpop.f32.mrf.mxu0
        %6119 = vmatprep.mubr.bf16.mxu0 %v5502
        %6120 = vmatmul.mubr.bf16.gmra.mxu0 %v5501
        %v6121 = vpop.f32.mrf.mxu0
        %v6122 = vadd.f32 %v5961, %v6121
        %v6123 = vpop.f32.mrf.mxu0
        %v6124 = vpop.f32.mrf.mxu0
        %v6125 = vadd.f32 %v5964, %v6124
        %v6126 = vpop.f32.mrf.mxu0
        %6127 = vmatprep.mubr.bf16.mxu0 %v5507
        %6128 = vmatmul.mubr.bf16.gmra.mxu0 %v5506
        %v6129 = vpop.f32.mrf.mxu0
        %v6130 = vadd.f32 %v5969, %v6129
        %v6131 = vpop.f32.mrf.mxu0
        %v6132 = vpop.f32.mrf.mxu0
        %v6133 = vadd.f32 %v5972, %v6132
        %v6134 = vpop.f32.mrf.mxu0
        %6135 = vmatprep.mubr.bf16.mxu0 %v5512
        %6136 = vmatmul.mubr.bf16.gmra.mxu0 %v5511
        %v6137 = vpop.f32.mrf.mxu0
        %v6138 = vadd.f32 %v5977, %v6137
        %v6139 = vpop.f32.mrf.mxu0
        %v6140 = vpop.f32.mrf.mxu0
        %v6141 = vadd.f32 %v5980, %v6140
        %v6142 = vpop.f32.mrf.mxu0
        %6143 = vmatprep.mubr.bf16.mxu0 %v5517
        %6144 = vmatmul.mubr.bf16.gmra.mxu0 %v5516
        %v6145 = vpop.f32.mrf.mxu0
        %v6146 = vadd.f32 %v5985, %v6145
        %v6147 = vpop.f32.mrf.mxu0
        %v6148 = vpop.f32.mrf.mxu0
        %v6149 = vadd.f32 %v5988, %v6148
        %v6150 = vpop.f32.mrf.mxu0
        %6151 = vmatprep.mubr.bf16.mxu0 %v5522
        %6152 = vmatmul.mubr.bf16.gmra.mxu0 %v5521
        %v6153 = vpop.f32.mrf.mxu0
        %v6154 = vadd.f32 %v5993, %v6153
        %v6155 = vpop.f32.mrf.mxu0
        %v6156 = vpop.f32.mrf.mxu0
        %v6157 = vadd.f32 %v5996, %v6156
        %v6158 = vpop.f32.mrf.mxu0
        %6159 = vmatprep.mubr.bf16.mxu0 %v5527
        %6160 = vmatmul.mubr.bf16.gmra.mxu0 %v5526
        %v6161 = vpop.f32.mrf.mxu0
        %v6162 = vadd.f32 %v6001, %v6161
        %v6163 = vpop.f32.mrf.mxu0
        %v6164 = vpop.f32.mrf.mxu0
        %v6165 = vadd.f32 %v6004, %v6164
        %v6166 = vpop.f32.mrf.mxu0
        %6167 = vmatprep.mubr.bf16.mxu0 %v5532
        %6168 = vmatmul.mubr.bf16.gmra.mxu0 %v5531
        %v6169 = vpop.f32.mrf.mxu0
        %v6170 = vadd.f32 %v6009, %v6169
        %v6171 = vpop.f32.mrf.mxu0
        %v6172 = vpop.f32.mrf.mxu0
        %v6173 = vadd.f32 %v6012, %v6172
        %v6174 = vpop.f32.mrf.mxu0
        %6175 = vmatprep.mubr.bf16.mxu0 %v5537
        %6176 = vmatmul.mubr.bf16.gmra.mxu0 %v5536
        %v6177 = vpop.f32.mrf.mxu0
        %v6178 = vadd.f32 %v6017, %v6177
        %v6179 = vpop.f32.mrf.mxu0
        %v6180 = vpop.f32.mrf.mxu0
        %v6181 = vadd.f32 %v6020, %v6180
        %v6182 = vpop.f32.mrf.mxu0
        %6183 = vmatprep.mubr.bf16.mxu0 %v5542
        %6184 = vmatmul.mubr.bf16.gmra.mxu0 %v5541
        %v6185 = vpop.f32.mrf.mxu0
        %v6186 = vadd.f32 %v6025, %v6185
        %v6187 = vpop.f32.mrf.mxu0
        %v6188 = vpop.f32.mrf.mxu0
        %v6189 = vadd.f32 %v6028, %v6188
        %v6190 = vpop.f32.mrf.mxu0
        %6191 = vmatprep.mubr.bf16.mxu0 %v5547
        %6192 = vmatmul.mubr.bf16.gmra.mxu0 %v5546
        %v6193 = vpop.f32.mrf.mxu0
        %v6194 = vadd.f32 %v6033, %v6193
        %v6195 = vpop.f32.mrf.mxu0
        %v6196 = vpop.f32.mrf.mxu0
        %v6197 = vadd.f32 %v6036, %v6196
        %v6198 = vpop.f32.mrf.mxu0
        %6199 = vmatprep.mubr.bf16.mxu0 %v5552
        %6200 = vmatmul.mubr.bf16.gmra.mxu0 %v5551
        %v6201 = vpop.f32.mrf.mxu0
        %v6202 = vadd.f32 %v6041, %v6201
        %v6203 = vpop.f32.mrf.mxu0
        %v6204 = vpop.f32.mrf.mxu0
        %v6205 = vadd.f32 %v6044, %v6204
        %v6206 = vpop.f32.mrf.mxu0
        %6207 = vmatprep.mubr.bf16.mxu0 %v5557
        %6208 = vmatmul.mubr.bf16.gmra.mxu0 %v5556
        %v6209 = vpop.f32.mrf.mxu0
        %v6210 = vadd.f32 %v6049, %v6209
        %v6211 = vpop.f32.mrf.mxu0
        %v6212 = vpop.f32.mrf.mxu0
        %v6213 = vadd.f32 %v6052, %v6212
        %v6214 = vpop.f32.mrf.mxu0
        %6215 = vmatprep.mubr.bf16.mxu0 %v5562
        %6216 = vmatmul.mubr.bf16.gmra.mxu0 %v5561
        %v6217 = vpop.f32.mrf.mxu0
        %v6218 = vadd.f32 %v6057, %v6217
        %v6219 = vpop.f32.mrf.mxu0
        %v6220 = vpop.f32.mrf.mxu0
        %v6221 = vadd.f32 %v6060, %v6220
        %v6222 = vpop.f32.mrf.mxu0
        %6223 = vmatprep.mubr.bf16.mxu0 %v5567
        %6224 = vmatmul.mubr.bf16.gmra.mxu0 %v5566
        %v6225 = vpop.f32.mrf.mxu0
        %v6226 = vadd.f32 %v6065, %v6225
        %v6227 = vpop.f32.mrf.mxu0
        %v6228 = vpop.f32.mrf.mxu0
        %v6229 = vadd.f32 %v6068, %v6228
        %v6230 = vpop.f32.mrf.mxu0
        %6231 = vdwg.mxu0
        %6232 = vmatprep.subr.bf16.mxu0 0
        %6233 = vmatpush1.bf16.msra.mxu0 0
        %6234 = vmatprep.subr.bf16.mxu0 0
        %6235 = vmatpush1.bf16.msra.mxu0 0
        %6236 = vmatprep.subr.bf16.mxu0 0
        %6237 = vmatpush1.bf16.msra.mxu0 0
        %6238 = vmatprep.subr.bf16.mxu0 0
        %6239 = vmatpush1.bf16.msra.mxu0 0
        %6240 = vmatprep.subr.bf16.mxu0 0
        %6241 = vmatpush1.bf16.msra.mxu0 %v5826
        %6242 = vmatprep.subr.bf16.mxu0 0
        %6243 = vmatpush1.bf16.msra.mxu0 %v5825
        %6244 = vmatprep.subr.bf16.mxu0 0
        %6245 = vmatpush1.bf16.msra.mxu0 %v5824
        %6246 = vmatprep.subr.bf16.mxu0 0
        %6247 = vmatpush1.bf16.msra.mxu0 %v5823
        %6248 = vmatprep.subr.bf16.mxu0 0
        %6249 = vmatpush2.bf16.msra.mxu0 0
        %6250 = vmatprep.subr.bf16.mxu0 0
        %6251 = vmatpush2.bf16.msra.mxu0 0
        %6252 = vmatprep.subr.bf16.mxu0 0
        %6253 = vmatpush2.bf16.msra.mxu0 0
        %6254 = vmatprep.subr.bf16.mxu0 0
        %6255 = vmatpush2.bf16.msra.mxu0 0
        %6256 = vmatprep.subr.bf16.mxu0 0
        %6257 = vmatpush2.bf16.msra.mxu0 0
        %6258 = vmatprep.subr.bf16.mxu0 0
        %6259 = vmatpush2.bf16.msra.mxu0 0
        %6260 = vmatprep.subr.bf16.mxu0 0
        %6261 = vmatpush2.bf16.msra.mxu0 0
        %6262 = vmatprep.subr.bf16.mxu0 0
        %6263 = vmatpush2.bf16.msra.mxu0 0
        %6264 = vmatprep.mubr.bf16.mxu0 0
        %6265 = vmatmul.mubr.bf16.gmra.mxu0 %v5864
        %v6266 = vpop.f32.mrf.mxu0
        %v6267 = vadd.f32 %v6106, %v6266
        %v6268 = vpop.f32.mrf.mxu0
        %v6269 = vpop.f32.mrf.mxu0
        %v6270 = vadd.f32 %v6109, %v6269
        %v6271 = vpop.f32.mrf.mxu0
        %6272 = vmatprep.mubr.bf16.mxu0 0
        %6273 = vmatmul.mubr.bf16.gmra.mxu0 %v5867
        %v6274 = vpop.f32.mrf.mxu0
        %v6275 = vadd.f32 %v6114, %v6274
        %v6276 = vpop.f32.mrf.mxu0
        %v6277 = vpop.f32.mrf.mxu0
        %v6278 = vadd.f32 %v6117, %v6277
        %v6279 = vpop.f32.mrf.mxu0
        %6280 = vmatprep.mubr.bf16.mxu0 0
        %6281 = vmatmul.mubr.bf16.gmra.mxu0 %v5870
        %v6282 = vpop.f32.mrf.mxu0
        %v6283 = vadd.f32 %v6122, %v6282
        %v6284 = vpop.f32.mrf.mxu0
        %v6285 = vpop.f32.mrf.mxu0
        %v6286 = vadd.f32 %v6125, %v6285
        %v6287 = vpop.f32.mrf.mxu0
        %6288 = vmatprep.mubr.bf16.mxu0 0
        %6289 = vmatmul.mubr.bf16.gmra.mxu0 %v5873
        %v6290 = vpop.f32.mrf.mxu0
        %v6291 = vadd.f32 %v6130, %v6290
        %v6292 = vpop.f32.mrf.mxu0
        %v6293 = vpop.f32.mrf.mxu0
        %v6294 = vadd.f32 %v6133, %v6293
        %v6295 = vpop.f32.mrf.mxu0
        %6296 = vmatprep.mubr.bf16.mxu0 0
        %6297 = vmatmul.mubr.bf16.gmra.mxu0 %v5876
        %v6298 = vpop.f32.mrf.mxu0
        %v6299 = vadd.f32 %v6138, %v6298
        %v6300 = vpop.f32.mrf.mxu0
        %v6301 = vpop.f32.mrf.mxu0
        %v6302 = vadd.f32 %v6141, %v6301
        %v6303 = vpop.f32.mrf.mxu0
        %6304 = vmatprep.mubr.bf16.mxu0 0
        %6305 = vmatmul.mubr.bf16.gmra.mxu0 %v5879
        %v6306 = vpop.f32.mrf.mxu0
        %v6307 = vadd.f32 %v6146, %v6306
        %v6308 = vpop.f32.mrf.mxu0
        %v6309 = vpop.f32.mrf.mxu0
        %v6310 = vadd.f32 %v6149, %v6309
        %v6311 = vpop.f32.mrf.mxu0
        %6312 = vmatprep.mubr.bf16.mxu0 0
        %6313 = vmatmul.mubr.bf16.gmra.mxu0 %v5882
        %v6314 = vpop.f32.mrf.mxu0
        %v6315 = vadd.f32 %v6154, %v6314
        %v6316 = vpop.f32.mrf.mxu0
        %v6317 = vpop.f32.mrf.mxu0
        %v6318 = vadd.f32 %v6157, %v6317
        %v6319 = vpop.f32.mrf.mxu0
        %6320 = vmatprep.mubr.bf16.mxu0 0
        %6321 = vmatmul.mubr.bf16.gmra.mxu0 %v5885
        %v6322 = vpop.f32.mrf.mxu0
        %v6323 = vadd.f32 %v6162, %v6322
        %v6324 = vpop.f32.mrf.mxu0
        %v6325 = vpop.f32.mrf.mxu0
        %v6326 = vadd.f32 %v6165, %v6325
        %v6327 = vpop.f32.mrf.mxu0
        %6328 = vmatprep.mubr.bf16.mxu0 0
        %6329 = vmatmul.mubr.bf16.gmra.mxu0 %v5888
        %v6330 = vpop.f32.mrf.mxu0
        %v6331 = vadd.f32 %v6170, %v6330
        %v6332 = vpop.f32.mrf.mxu0
        %v6333 = vpop.f32.mrf.mxu0
        %v6334 = vadd.f32 %v6173, %v6333
        %v6335 = vpop.f32.mrf.mxu0
        %6336 = vmatprep.mubr.bf16.mxu0 0
        %6337 = vmatmul.mubr.bf16.gmra.mxu0 %v5891
        %v6338 = vpop.f32.mrf.mxu0
        %v6339 = vadd.f32 %v6178, %v6338
        %v6340 = vpop.f32.mrf.mxu0
        %v6341 = vpop.f32.mrf.mxu0
        %v6342 = vadd.f32 %v6181, %v6341
        %v6343 = vpop.f32.mrf.mxu0
        %6344 = vmatprep.mubr.bf16.mxu0 0
        %6345 = vmatmul.mubr.bf16.gmra.mxu0 %v5894
        %v6346 = vpop.f32.mrf.mxu0
        %v6347 = vadd.f32 %v6186, %v6346
        %v6348 = vpop.f32.mrf.mxu0
        %v6349 = vpop.f32.mrf.mxu0
        %v6350 = vadd.f32 %v6189, %v6349
        %v6351 = vpop.f32.mrf.mxu0
        %6352 = vmatprep.mubr.bf16.mxu0 0
        %6353 = vmatmul.mubr.bf16.gmra.mxu0 %v5897
        %v6354 = vpop.f32.mrf.mxu0
        %v6355 = vadd.f32 %v6194, %v6354
        %v6356 = vpop.f32.mrf.mxu0
        %v6357 = vpop.f32.mrf.mxu0
        %v6358 = vadd.f32 %v6197, %v6357
        %v6359 = vpop.f32.mrf.mxu0
        %6360 = vmatprep.mubr.bf16.mxu0 0
        %6361 = vmatmul.mubr.bf16.gmra.mxu0 %v5900
        %v6362 = vpop.f32.mrf.mxu0
        %v6363 = vadd.f32 %v6202, %v6362
        %v6364 = vpop.f32.mrf.mxu0
        %v6365 = vpop.f32.mrf.mxu0
        %v6366 = vadd.f32 %v6205, %v6365
        %v6367 = vpop.f32.mrf.mxu0
        %6368 = vmatprep.mubr.bf16.mxu0 0
        %6369 = vmatmul.mubr.bf16.gmra.mxu0 %v5903
        %v6370 = vpop.f32.mrf.mxu0
        %v6371 = vadd.f32 %v6210, %v6370
        %v6372 = vpop.f32.mrf.mxu0
        %v6373 = vpop.f32.mrf.mxu0
        %v6374 = vadd.f32 %v6213, %v6373
        %v6375 = vpop.f32.mrf.mxu0
        %6376 = vmatprep.mubr.bf16.mxu0 0
        %6377 = vmatmul.mubr.bf16.gmra.mxu0 %v5906
        %v6378 = vpop.f32.mrf.mxu0
        %v6379 = vadd.f32 %v6218, %v6378
        %v6380 = vpop.f32.mrf.mxu0
        %v6381 = vpop.f32.mrf.mxu0
        %v6382 = vadd.f32 %v6221, %v6381
        %v6383 = vpop.f32.mrf.mxu0
        %6384 = vmatprep.mubr.bf16.mxu0 0
        %6385 = vmatmul.mubr.bf16.gmra.mxu0 %v5908
        %v6386 = vpop.f32.mrf.mxu0
        %v6387 = vadd.f32 %v6226, %v6386
        %v6388 = vpop.f32.mrf.mxu0
        %v6389 = vpop.f32.mrf.mxu0
        %v6390 = vadd.f32 %v6229, %v6389
        %v6391 = vpop.f32.mrf.mxu0
        %6392 = vdwg.mxu0
        %v6393 = vpack.c.bf16 %v495, %v494
        %v6394 = vpack.c.bf16 %v497, %v496
        %v6395 = vpack.c.bf16 %v499, %v498
        %v6396 = vpack.c.bf16 %v501, %v500
        %v6397 = vpack.c.bf16 %v503, %v502
        %v6398 = vpack.c.bf16 %v505, %v504
        %v6399 = vpack.c.bf16 %v507, %v506
        %v6400 = vpack.c.bf16 %v509, %v508
        %v6401 = vpack.c.bf16 %v511, %v510
        %v6402 = vpack.c.bf16 %v513, %v512
        %v6403 = vpack.c.bf16 %v515, %v514
        %v6404 = vpack.c.bf16 %v517, %v516
        %v6405 = vpack.c.bf16 %v519, %v518
        %v6406 = vpack.c.bf16 %v521, %v520
        %v6407 = vpack.c.bf16 %v523, %v522
        %v6408 = vpack.c.bf16 %v525, %v524
        %v6409 = vld [vmem:[%s13] sm:$0xf]
        %v6410 = vld [vmem:[%s13 + $0x4] sm:$0xf]
        %v6411 = vld [vmem:[%s13 + $0x8] sm:$0xf]
        %v6412 = vld [vmem:[%s13 + $0xc] sm:$0xf]
        %v6413 = vld [vmem:[%s14] sm:$0x1]
        %v6415 = vlaneseq
        %v6416 = vshrl.u32 %v6415, 7
        %v6417 = vsub.s32 0, %v6416
        %v6418 = vrot.slane %v6413, %v6417
        %v6424 = vunpack.c.l.b16 %v6409
        %v6425 = vunpack.c.l.b16 %v6410
        %v6426 = vunpack.c.l.b16 %v6411
        %v6427 = vunpack.c.l.b16 %v6412
        %v6428 = vpack.c.b16 %v6425, %v6424
        %v6429 = vpack.c.b16 %v6427, %v6426
        %v6433 = vsel %vm536, %v6393, 0
        %v6436 = vsel %vm536, %v6394, 0
        %v6439 = vsel %vm536, %v6395, 0
        %v6442 = vsel %vm536, %v6396, 0
        %v6445 = vsel %vm536, %v6397, 0
        %v6448 = vsel %vm536, %v6398, 0
        %v6451 = vsel %vm536, %v6399, 0
        %v6454 = vsel %vm536, %v6400, 0
        %v6457 = vsel %vm536, %v6401, 0
        %v6460 = vsel %vm536, %v6402, 0
        %v6463 = vsel %vm536, %v6403, 0
        %v6466 = vsel %vm536, %v6404, 0
        %v6469 = vsel %vm536, %v6405, 0
        %v6472 = vsel %vm536, %v6406, 0
        %v6475 = vsel %vm536, %v6407, 0
        %v6478 = vsel %vm536, %v6408, 0
        %6480 = vmatprep.subr.bf16.mxu0 0
        %6481 = vmatpush1.bf16.msra.mxu0 0
        %6482 = vmatprep.subr.bf16.mxu0 0
        %6483 = vmatpush1.bf16.msra.mxu0 0
        %6484 = vmatprep.subr.bf16.mxu0 0
        %6485 = vmatpush1.bf16.msra.mxu0 0
        %6486 = vmatprep.subr.bf16.mxu0 0
        %6487 = vmatpush1.bf16.msra.mxu0 0
        %6488 = vmatprep.subr.bf16.mxu0 0
        %6489 = vmatpush1.bf16.msra.mxu0 0
        %6490 = vmatprep.subr.bf16.mxu0 0
        %6491 = vmatpush1.bf16.msra.mxu0 0
        %6492 = vmatprep.subr.bf16.mxu0 0
        %6493 = vmatpush1.bf16.msra.mxu0 %v6429
        %6494 = vmatprep.subr.bf16.mxu0 0
        %6495 = vmatpush1.bf16.msra.mxu0 %v6428
        %6496 = vmatprep.subr.bf16.mxu0 0
        %6497 = vmatpush2.bf16.msra.mxu0 0
        %6498 = vmatprep.subr.bf16.mxu0 0
        %6499 = vmatpush2.bf16.msra.mxu0 0
        %6500 = vmatprep.subr.bf16.mxu0 0
        %6501 = vmatpush2.bf16.msra.mxu0 0
        %6502 = vmatprep.subr.bf16.mxu0 0
        %6503 = vmatpush2.bf16.msra.mxu0 0
        %6504 = vmatprep.subr.bf16.mxu0 0
        %6505 = vmatpush2.bf16.msra.mxu0 0
        %6506 = vmatprep.subr.bf16.mxu0 0
        %6507 = vmatpush2.bf16.msra.mxu0 0
        %6508 = vmatprep.subr.bf16.mxu0 0
        %6509 = vmatpush2.bf16.msra.mxu0 0
        %6510 = vmatprep.subr.bf16.mxu0 0
        %6511 = vmatpush2.bf16.msra.mxu0 0
        %6512 = vmatprep.mubr.bf16.mxu0 0
        %6513 = vmatmul.mubr.bf16.gmra.mxu0 %v6433
        %v6514 = vpop.f32.mrf.mxu0
        %v6515 = vadd.f32 %v6418, %v6514
        %v6516 = vpop.f32.mrf.mxu0
        %v6517 = vpop.f32.mrf.mxu0
        %v6518 = vadd.f32 %v6418, %v6517
        %v6519 = vpop.f32.mrf.mxu0
        %6520 = vmatprep.mubr.bf16.mxu0 0
        %6521 = vmatmul.mubr.bf16.gmra.mxu0 %v6436
        %v6522 = vpop.f32.mrf.mxu0
        %v6523 = vadd.f32 %v6418, %v6522
        %v6524 = vpop.f32.mrf.mxu0
        %v6525 = vpop.f32.mrf.mxu0
        %v6526 = vadd.f32 %v6418, %v6525
        %v6527 = vpop.f32.mrf.mxu0
        %6528 = vmatprep.mubr.bf16.mxu0 0
        %6529 = vmatmul.mubr.bf16.gmra.mxu0 %v6439
        %v6530 = vpop.f32.mrf.mxu0
        %v6531 = vadd.f32 %v6418, %v6530
        %v6532 = vpop.f32.mrf.mxu0
        %v6533 = vpop.f32.mrf.mxu0
        %v6534 = vadd.f32 %v6418, %v6533
        %v6535 = vpop.f32.mrf.mxu0
        %6536 = vmatprep.mubr.bf16.mxu0 0
        %6537 = vmatmul.mubr.bf16.gmra.mxu0 %v6442
        %v6538 = vpop.f32.mrf.mxu0
        %v6539 = vadd.f32 %v6418, %v6538
        %v6540 = vpop.f32.mrf.mxu0
        %v6541 = vpop.f32.mrf.mxu0
        %v6542 = vadd.f32 %v6418, %v6541
        %v6543 = vpop.f32.mrf.mxu0
        %6544 = vmatprep.mubr.bf16.mxu0 0
        %6545 = vmatmul.mubr.bf16.gmra.mxu0 %v6445
        %v6546 = vpop.f32.mrf.mxu0
        %v6547 = vadd.f32 %v6418, %v6546
        %v6548 = vpop.f32.mrf.mxu0
        %v6549 = vpop.f32.mrf.mxu0
        %v6550 = vadd.f32 %v6418, %v6549
        %v6551 = vpop.f32.mrf.mxu0
        %6552 = vmatprep.mubr.bf16.mxu0 0
        %6553 = vmatmul.mubr.bf16.gmra.mxu0 %v6448
        %v6554 = vpop.f32.mrf.mxu0
        %v6555 = vadd.f32 %v6418, %v6554
        %v6556 = vpop.f32.mrf.mxu0
        %v6557 = vpop.f32.mrf.mxu0
        %v6558 = vadd.f32 %v6418, %v6557
        %v6559 = vpop.f32.mrf.mxu0
        %6560 = vmatprep.mubr.bf16.mxu0 0
        %6561 = vmatmul.mubr.bf16.gmra.mxu0 %v6451
        %v6562 = vpop.f32.mrf.mxu0
        %v6563 = vadd.f32 %v6418, %v6562
        %v6564 = vpop.f32.mrf.mxu0
        %v6565 = vpop.f32.mrf.mxu0
        %v6566 = vadd.f32 %v6418, %v6565
        %v6567 = vpop.f32.mrf.mxu0
        %6568 = vmatprep.mubr.bf16.mxu0 0
        %6569 = vmatmul.mubr.bf16.gmra.mxu0 %v6454
        %v6570 = vpop.f32.mrf.mxu0
        %v6571 = vadd.f32 %v6418, %v6570
        %v6572 = vpop.f32.mrf.mxu0
        %v6573 = vpop.f32.mrf.mxu0
        %v6574 = vadd.f32 %v6418, %v6573
        %v6575 = vpop.f32.mrf.mxu0
        %6576 = vmatprep.mubr.bf16.mxu0 0
        %6577 = vmatmul.mubr.bf16.gmra.mxu0 %v6457
        %v6578 = vpop.f32.mrf.mxu0
        %v6579 = vadd.f32 %v6418, %v6578
        %v6580 = vpop.f32.mrf.mxu0
        %v6581 = vpop.f32.mrf.mxu0
        %v6582 = vadd.f32 %v6418, %v6581
        %v6583 = vpop.f32.mrf.mxu0
        %6584 = vmatprep.mubr.bf16.mxu0 0
        %6585 = vmatmul.mubr.bf16.gmra.mxu0 %v6460
        %v6586 = vpop.f32.mrf.mxu0
        %v6587 = vadd.f32 %v6418, %v6586
        %v6588 = vpop.f32.mrf.mxu0
        %v6589 = vpop.f32.mrf.mxu0
        %v6590 = vadd.f32 %v6418, %v6589
        %v6591 = vpop.f32.mrf.mxu0
        %6592 = vmatprep.mubr.bf16.mxu0 0
        %6593 = vmatmul.mubr.bf16.gmra.mxu0 %v6463
        %v6594 = vpop.f32.mrf.mxu0
        %v6595 = vadd.f32 %v6418, %v6594
        %v6596 = vpop.f32.mrf.mxu0
        %v6597 = vpop.f32.mrf.mxu0
        %v6598 = vadd.f32 %v6418, %v6597
        %v6599 = vpop.f32.mrf.mxu0
        %6600 = vmatprep.mubr.bf16.mxu0 0
        %6601 = vmatmul.mubr.bf16.gmra.mxu0 %v6466
        %v6602 = vpop.f32.mrf.mxu0
        %v6603 = vadd.f32 %v6418, %v6602
        %v6604 = vpop.f32.mrf.mxu0
        %v6605 = vpop.f32.mrf.mxu0
        %v6606 = vadd.f32 %v6418, %v6605
        %v6607 = vpop.f32.mrf.mxu0
        %6608 = vmatprep.mubr.bf16.mxu0 0
        %6609 = vmatmul.mubr.bf16.gmra.mxu0 %v6469
        %v6610 = vpop.f32.mrf.mxu0
        %v6611 = vadd.f32 %v6418, %v6610
        %v6612 = vpop.f32.mrf.mxu0
        %v6613 = vpop.f32.mrf.mxu0
        %v6614 = vadd.f32 %v6418, %v6613
        %v6615 = vpop.f32.mrf.mxu0
        %6616 = vmatprep.mubr.bf16.mxu0 0
        %6617 = vmatmul.mubr.bf16.gmra.mxu0 %v6472
        %v6618 = vpop.f32.mrf.mxu0
        %v6619 = vadd.f32 %v6418, %v6618
        %v6620 = vpop.f32.mrf.mxu0
        %v6621 = vpop.f32.mrf.mxu0
        %v6622 = vadd.f32 %v6418, %v6621
        %v6623 = vpop.f32.mrf.mxu0
        %6624 = vmatprep.mubr.bf16.mxu0 0
        %6625 = vmatmul.mubr.bf16.gmra.mxu0 %v6475
        %v6626 = vpop.f32.mrf.mxu0
        %v6627 = vadd.f32 %v6418, %v6626
        %v6628 = vpop.f32.mrf.mxu0
        %v6629 = vpop.f32.mrf.mxu0
        %v6630 = vadd.f32 %v6418, %v6629
        %v6631 = vpop.f32.mrf.mxu0
        %6632 = vmatprep.mubr.bf16.mxu0 0
        %6633 = vmatmul.mubr.bf16.gmra.mxu0 %v6478
        %v6634 = vpop.f32.mrf.mxu0
        %v6635 = vadd.f32 %v6418, %v6634
        %v6636 = vpop.f32.mrf.mxu0
        %v6637 = vpop.f32.mrf.mxu0
        %v6638 = vadd.f32 %v6418, %v6637
        %v6639 = vpop.f32.mrf.mxu0
        %6640 = vdwg.mxu0
        %v6641 = vadd.f32 %v6267, %v6515
        %v6642 = vadd.f32 %v6270, %v6518
        %v6643 = vadd.f32 %v6275, %v6523
        %v6644 = vadd.f32 %v6278, %v6526
        %v6645 = vadd.f32 %v6283, %v6531
        %v6646 = vadd.f32 %v6286, %v6534
        %v6647 = vadd.f32 %v6291, %v6539
        %v6648 = vadd.f32 %v6294, %v6542
        %v6649 = vadd.f32 %v6299, %v6547
        %v6650 = vadd.f32 %v6302, %v6550
        %v6651 = vadd.f32 %v6307, %v6555
        %v6652 = vadd.f32 %v6310, %v6558
        %v6653 = vadd.f32 %v6315, %v6563
        %v6654 = vadd.f32 %v6318, %v6566
        %v6655 = vadd.f32 %v6323, %v6571
        %v6656 = vadd.f32 %v6326, %v6574
        %v6657 = vadd.f32 %v6331, %v6579
        %v6658 = vadd.f32 %v6334, %v6582
        %v6659 = vadd.f32 %v6339, %v6587
        %v6660 = vadd.f32 %v6342, %v6590
        %v6661 = vadd.f32 %v6347, %v6595
        %v6662 = vadd.f32 %v6350, %v6598
        %v6663 = vadd.f32 %v6355, %v6603
        %v6664 = vadd.f32 %v6358, %v6606
        %v6665 = vadd.f32 %v6363, %v6611
        %v6666 = vadd.f32 %v6366, %v6614
        %v6667 = vadd.f32 %v6371, %v6619
        %v6668 = vadd.f32 %v6374, %v6622
        %v6669 = vadd.f32 %v6379, %v6627
        %v6670 = vadd.f32 %v6382, %v6630
        %v6671 = vadd.f32 %v6387, %v6635
        %v6672 = vadd.f32 %v6390, %v6638
        %6673 = vst.msk [vmem:[%s487] sm:$0xff] %vm3076, %v6641
        %6674 = vst.msk [vmem:[%s487 + $0x8] sm:$0xff] %vm3076, %v6642
        %6675 = vst.msk [vmem:[%s487 + $0x10] sm:$0xff] %vm3076, %v6643
        %6676 = vst.msk [vmem:[%s487 + $0x18] sm:$0xff] %vm3076, %v6644
        %6677 = vst.msk [vmem:[%s487 + $0x20] sm:$0xff] %vm3076, %v6645
        %6678 = vst.msk [vmem:[%s487 + $0x28] sm:$0xff] %vm3076, %v6646
        %6679 = vst.msk [vmem:[%s487 + $0x30] sm:$0xff] %vm3076, %v6647
        %6680 = vst.msk [vmem:[%s487 + $0x38] sm:$0xff] %vm3076, %v6648
        %6681 = vst.msk [vmem:[%s487 + $0x40] sm:$0xff] %vm3076, %v6649
        %6682 = vst.msk [vmem:[%s487 + $0x48] sm:$0xff] %vm3076, %v6650
        %6683 = vst.msk [vmem:[%s487 + $0x50] sm:$0xff] %vm3076, %v6651
        %6684 = vst.msk [vmem:[%s487 + $0x58] sm:$0xff] %vm3076, %v6652
        %6685 = vst.msk [vmem:[%s487 + $0x60] sm:$0xff] %vm3076, %v6653
        %6686 = vst.msk [vmem:[%s487 + $0x68] sm:$0xff] %vm3076, %v6654
        %6687 = vst.msk [vmem:[%s487 + $0x70] sm:$0xff] %vm3076, %v6655
        %6688 = vst.msk [vmem:[%s487 + $0x78] sm:$0xff] %vm3076, %v6656
        %6689 = vst.msk [vmem:[%s487 + $0x80] sm:$0xff] %vm3076, %v6657
        %6690 = vst.msk [vmem:[%s487 + $0x88] sm:$0xff] %vm3076, %v6658
        %6691 = vst.msk [vmem:[%s487 + $0x90] sm:$0xff] %vm3076, %v6659
        %6692 = vst.msk [vmem:[%s487 + $0x98] sm:$0xff] %vm3076, %v6660
        %6693 = vst.msk [vmem:[%s487 + $0xa0] sm:$0xff] %vm3076, %v6661
        %6694 = vst.msk [vmem:[%s487 + $0xa8] sm:$0xff] %vm3076, %v6662
        %6695 = vst.msk [vmem:[%s487 + $0xb0] sm:$0xff] %vm3076, %v6663
        %6696 = vst.msk [vmem:[%s487 + $0xb8] sm:$0xff] %vm3076, %v6664
        %6697 = vst.msk [vmem:[%s487 + $0xc0] sm:$0xff] %vm3076, %v6665
        %6698 = vst.msk [vmem:[%s487 + $0xc8] sm:$0xff] %vm3076, %v6666
        %6699 = vst.msk [vmem:[%s487 + $0xd0] sm:$0xff] %vm3076, %v6667
        %6700 = vst.msk [vmem:[%s487 + $0xd8] sm:$0xff] %vm3076, %v6668
        %6701 = vst.msk [vmem:[%s487 + $0xe0] sm:$0xff] %vm3076, %v6669
        %6702 = vst.msk [vmem:[%s487 + $0xe8] sm:$0xff] %vm3076, %v6670
        %6703 = vst.msk [vmem:[%s487 + $0xf0] sm:$0xff] %vm3076, %v6671
        %6704 = vst.msk [vmem:[%s487 + $0xf8] sm:$0xff] %vm3076, %v6672
        %s6705 = sand.u32 %s357, 1
        %s6706 = scalar_lea.sflag [#allocation3], %s6705
        %s6707 = sand.u32 %s357, 1
        %s6708 = smul.addr %s6707, 256
        %s6709 = scalar_lea.vmem [#allocation2], %s6708
        // Predicated region
        $region81: #{resnet_forward.1} parent=79 // pred_check
          %p6710 = pneg %p367
        $region82: #{resnet_forward.1} parent=79 // pred_check_branch
          %6712 = sbr.rel (%p6710) target = $region84
        $region83: #{resnet_forward.1} parent=79 // pred_region
          %s6714 = ssub.s32 4096, 4096
          %6715 = vsyncadd %s6706, %s6714
          %s6716 = smul.addr %s29, 32
          %s6717 = smul.addr %s6716, 128
          %s6718 = scalar_lea.hbm %s15, %s6717
          %s6719 = sshll.u32 %s6709, 4
          %s6720 = int_to_ptr.vmem [resolvable:$true] %s6719
          %6725 = dma.vmem_to_hbm [thread:$0]  %s6720, 4096, %s6718, %s6706, 128, 128, 8
        $region84: #{resnet_forward.1} parent=79 // pred_fallthru
          _
      $region80: #{resnet_forward.1} parent=5 // pred_fallthru
        _
      %p6726 = scmp.le.s32.totalorder 2, %s24
      // Predicated region
      $region85: #{resnet_forward.1} parent=5 // pred_check
        %p6727 = pneg %p6726
      $region86: #{resnet_forward.1} parent=5 // pred_check_branch
        %6729 = sbr.rel (%p6727) target = $region88
      $region87: #{resnet_forward.1} parent=5 // pred_region
        %s6730 = ssub.s32 %s24, 2
        // Predicated region
        $region89: #{resnet_forward.1} parent=87 // pred_check
          %p6731 = pneg %p373
        $region90: #{resnet_forward.1} parent=87 // pred_check_branch
          %6733 = sbr.rel (%p6731) target = $region92
        $region91: #{resnet_forward.1} parent=87 // pred_region
          %s6734 = sand.u32 %s358, 1
          %s6735 = scalar_lea.sflag [#allocation3], %s6734
          %s6736 = sand.u32 %s358, 1
          %s6737 = smul.addr %s6736, 256
          %s6738 = scalar_lea.vmem [#allocation2], %s6737
          %6739 = dma.done %s6735, 4096
        $region92: #{resnet_forward.1} parent=87 // pred_fallthru
          _
      $region88: #{resnet_forward.1} parent=5 // pred_fallthru
        _
    $region6: #{resnet_forward.1} parent=1 // loop_footer
      %s28 = sadd.s32 1, %s24
    $region7: #{resnet_forward.1} parent=1 // loop_footer_branch
      %23 = sbr.rel target = $region3
    $region8: #{resnet_forward.1} parent=1 // loop_exit
      _
    %6740 = vsyncpa [#allocation3], 1
    %s6741 = scalar_lea.sflag [#allocation3], 1
    %6742 = vsyncpa %s6741, 1

</llo_original>
